<compile_context>
chip_gen: v7x
topology: tpu7x:2x2x1
jax: 0.10.0
libtpu: 0.0.40
codegen_flags: <defaults>
</compile_context>

<pallas_src>
import math

import jax
import jax.numpy as jnp
from jax.experimental import pallas as pl
from jax.experimental.pallas import tpu as pltpu

# ----------------------------- model dims -----------------------------------
VOCAB = 64            # synthetic vocabulary
V_PAD = 128           # LM head padded to a full vreg width (lane-dense)
D_MODEL = 32          # hidden size
N_HEADS = 2
HEAD_DIM = D_MODEL // N_HEADS
D_FFN = 64            # SwiGLU intermediate size
S_MAX = 16            # fixed (padded) sequence length -> single compilation
MAX_NEW_TOKENS = 4
STOP_TOKEN_ID = 3     # plays the role of the '\n' stop token / eos_token_id
PROMPT_LEN = 8

NEG_INF = -1e30


# ----------------------------- Pallas kernel --------------------------------
def decode_kernel(plen_ref,                        # scalar prefetch (SMEM), (1,)
                  x0_ref, emb_ref, wqkv_ref, wo_ref, wgu_ref, wd_ref,
                  norms_ref, wlm_ref,              # VMEM inputs (weights resident)
                  out_ref,                         # packed (2T, 128) output
                  kc_ref, vc_ref):                 # VMEM scratch: K / V cache
    plen = plen_ref[0]                             # prompt length (runtime scalar)

    n1 = norms_ref[0:1, :]
    n2 = norms_ref[1:2, :]
    nf = norms_ref[2:3, :]

    def rmsnorm(h, g):
        var = jnp.mean(h * h, axis=-1, keepdims=True)
        return h * jax.lax.rsqrt(var + 1e-6) * g

    emb = emb_ref[...]
    wqkv = wqkv_ref[...]
    wo = wo_ref[...]
    wgu = wgu_ref[...]
    wd = wd_ref[...]
    wlm = wlm_ref[...]

    # ---- prefill: populate the K/V cache with one batched matmul -----------
    # (k/v depend only on the input embeddings in this single-layer model, so
    # batched prefill + single-row decode is numerically exact.)
    x0 = x0_ref[...]                                            # (S, D)
    kv0 = jnp.dot(rmsnorm(x0, n1), wqkv,
                  preferred_element_type=jnp.float32)           # (S, 3D)
    kc_ref[...] = kv0[:, D_MODEL:2 * D_MODEL]
    vc_ref[...] = kv0[:, 2 * D_MODEL:3 * D_MODEL]
    # Cache rows >= plen are zero; the attention column mask (lane <= pos)
    # guarantees they are never attended to.

    # ---- hoisted iotas / per-head lane masks --------------------------------
    lane_d = jax.lax.broadcasted_iota(jnp.int32, (1, D_MODEL), 1)
    lane_s = jax.lax.broadcasted_iota(jnp.int32, (1, S_MAX), 1)
    lane_v = jax.lax.broadcasted_iota(jnp.int32, (1, V_PAD), 1)
    lane_voc = jax.lax.broadcasted_iota(jnp.int32, (1, VOCAB), 1)
    scale = 1.0 / math.sqrt(HEAD_DIM)
    hmasks = [jnp.where((lane_d >= hd * HEAD_DIM) &
                        (lane_d < (hd + 1) * HEAD_DIM), 1.0, 0.0)
              for hd in range(N_HEADS)]                          # (1, D) each

    def qkT(a, b):  # a @ b.T without materializing a transpose
        return jax.lax.dot_general(a, b, (((1,), (1,)), ((), ())),
                                   preferred_element_type=jnp.float32)

    # current row = last prompt row (dynamic single-row load)
    x_row = x0_ref[pl.ds(plen - 1, 1), :]                        # (1, D)

    tok_rows, prob_rows = [], []

    # Fully-unrolled decode loop: MAX_NEW_TOKENS is tiny and fixed, so the
    # unroll gives the scheduler full visibility and static output indices.
    for t in range(MAX_NEW_TOKENS):
        pos = plen - 1 + t                                       # row of x_row

        # ---- single-row attention over the K/V cache ------------------------
        h = rmsnorm(x_row, n1)
        qkv = jnp.dot(h, wqkv, preferred_element_type=jnp.float32)   # (1, 3D)
        q = qkv[:, 0:D_MODEL]
        k = qkv[:, D_MODEL:2 * D_MODEL]
        v = qkv[:, 2 * D_MODEL:3 * D_MODEL]
        # append this row's k/v: dynamic single-row stores, no full-buffer select
        kc_ref[pl.ds(pos, 1), :] = k
        vc_ref[pl.ds(pos, 1), :] = v

        k_all = kc_ref[...]                                      # (S, D)
        v_all = vc_ref[...]                                      # (S, D)
        valid = lane_s <= pos                                    # (1, S) column mask

        attn = jnp.zeros((1, D_MODEL), jnp.float32)
        for hm in hmasks:   # static unroll of 2; masks replace head slicing
            s = qkT(q * hm, k_all) * scale                       # (1, S)
            s = jnp.where(valid, s, NEG_INF)
            p = jax.nn.softmax(s, axis=-1)
            attn = attn + jnp.dot(p, v_all * hm,
                                  preferred_element_type=jnp.float32)
        x_row = x_row + jnp.dot(attn, wo, preferred_element_type=jnp.float32)

        # ---- SwiGLU MLP (fused gate|up matmul), single row -------------------
        h2 = rmsnorm(x_row, n2)
        gu = jnp.dot(h2, wgu, preferred_element_type=jnp.float32)    # (1, 2F)
        ff = jnp.dot(jax.nn.silu(gu[:, 0:D_FFN]) * gu[:, D_FFN:2 * D_FFN],
                     wd, preferred_element_type=jnp.float32)
        x_row = x_row + ff

        # ---- LM head on the single current row (lane-dense padded vocab) ----
        hf = rmsnorm(x_row, nf)                                  # (1, D)
        logits = jnp.dot(hf, wlm, preferred_element_type=jnp.float32)  # (1, 128)
        logits = jnp.where(lane_v < VOCAB, logits, NEG_INF)

        mx = jnp.max(logits, axis=-1, keepdims=True)             # (1, 1)
        # greedy argmax (first max) via float min-reduce over lane indices
        idx_f = jnp.where(logits >= mx, lane_v.astype(jnp.float32), float(V_PAD))
        next_vec = jnp.min(idx_f, axis=-1, keepdims=True).astype(jnp.int32)
        # transition prob of the greedy token: exp(max - logsumexp) = 1/sum(exp)
        denom = jnp.sum(jnp.exp(logits - mx), axis=-1, keepdims=True)
        prob = jnp.minimum(pl.reciprocal(denom, approx=True), 1.0)    # (1, 1)

        tok_rows.append(jnp.broadcast_to(next_vec.astype(jnp.float32), (1, 128)))
        prob_rows.append(jnp.broadcast_to(prob, (1, 128)))

        # ---- embedding of the generated token feeds the next iteration ------
        onehot = jnp.where(lane_voc == next_vec, 1.0, 0.0)       # (1, VOCAB)
        x_row = jnp.dot(onehot, emb, preferred_element_type=jnp.float32)

    # single packed writeback: rows [0:T) token ids (f32), rows [T:2T) probs
    out_ref[...] = jnp.concatenate(tok_rows + prob_rows, axis=0)


# ----------------------------- wrapper ---------------------------------------
def decode(plen_arr, x0, params):
    """Runs the entire greedy decode loop in a single pallas_call.

    Returns a (2*MAX_NEW_TOKENS, 128) f32 array; the host reads
    out[t, 0] = token id of step t (as f32) and out[MAX_NEW_TOKENS + t, 0] =
    its normalized transition probability.
    """
    emb, wqkv, wo, wgu, wd, norms, wlm = params
    grid_spec = pltpu.PrefetchScalarGridSpec(
        num_scalar_prefetch=1,
        grid=(1,),   # single step: the decode loop lives inside the kernel
        in_specs=[
            pl.BlockSpec((S_MAX, D_MODEL), lambda i, plen: (0, 0)),        # x0
            pl.BlockSpec((VOCAB, D_MODEL), lambda i, plen: (0, 0)),        # emb
            pl.BlockSpec((D_MODEL, 3 * D_MODEL), lambda i, plen: (0, 0)),  # wqkv
            pl.BlockSpec((D_MODEL, D_MODEL), lambda i, plen: (0, 0)),      # wo
            pl.BlockSpec((D_MODEL, 2 * D_FFN), lambda i, plen: (0, 0)),    # wgu
            pl.BlockSpec((D_FFN, D_MODEL), lambda i, plen: (0, 0)),        # wd
            pl.BlockSpec((3, D_MODEL), lambda i, plen: (0, 0)),            # norms
            pl.BlockSpec((D_MODEL, V_PAD), lambda i, plen: (0, 0)),        # lm head
        ],
        out_specs=pl.BlockSpec((2 * MAX_NEW_TOKENS, 128), lambda i, plen: (0, 0)),
        scratch_shapes=[pltpu.VMEM((S_MAX, D_MODEL), jnp.float32),  # K cache
                        pltpu.VMEM((S_MAX, D_MODEL), jnp.float32)],  # V cache
    )
    return pl.pallas_call(
        decode_kernel,
        grid_spec=grid_spec,
        out_shape=jax.ShapeDtypeStruct((2 * MAX_NEW_TOKENS, 128), jnp.float32),
        compiler_params=pltpu.CompilerParams(
            dimension_semantics=("arbitrary",),
            vmem_limit_bytes=32 * 1024 * 1024),   # explicit budget (v5e default 16 MiB)
    )(plen_arr, x0, emb, wqkv, wo, wgu, wd, norms, wlm)


def init_params(key):
    ks = jax.random.split(key, 9)

    def w(k, shape, fan_in):
        return jax.random.normal(k, shape, jnp.float32) / math.sqrt(fan_in)

    emb = w(ks[0], (VOCAB, D_MODEL), D_MODEL)
    wq = w(ks[1], (D_MODEL, D_MODEL), D_MODEL)
    wk = w(ks[2], (D_MODEL, D_MODEL), D_MODEL)
    wv = w(ks[3], (D_MODEL, D_MODEL), D_MODEL)
    wqkv = jnp.concatenate([wq, wk, wv], axis=1)            # fused QKV (D, 3D)
    wo = w(ks[4], (D_MODEL, D_MODEL), D_MODEL)
    wg = w(ks[5], (D_MODEL, D_FFN), D_MODEL)
    wu = w(ks[6], (D_MODEL, D_FFN), D_MODEL)
    wgu = jnp.concatenate([wg, wu], axis=1)                 # fused gate|up (D, 2F)
    wd = w(ks[7], (D_FFN, D_MODEL), D_FFN)
    norms = jnp.ones((3, D_MODEL), jnp.float32)             # pre-attn / pre-mlp / final
    wlm = w(ks[8], (D_MODEL, VOCAB), D_MODEL)
    wlm_pad = jnp.zeros((D_MODEL, V_PAD), jnp.float32).at[:, :VOCAB].set(wlm)
    return emb, wqkv, wo, wgu, wd, norms, wlm_pad


def greedy_generate(prompt_ids, params,
                    max_new_tokens=MAX_NEW_TOKENS, stop_token_id=STOP_TOKEN_ID):
    """Greedy (temperature=0, do_sample=False) generation with stop-token check.

    Mirrors LLMCompletion.forward(return_prob=True): returns
    (generated_token_ids, transition_probs) where transition_probs[i] is the
    normalized probability of the i-th generated token.  The whole decode loop
    runs on-chip in one pallas_call; the host only truncates at the stop token.
    """
    assert max_new_tokens == MAX_NEW_TOKENS
    emb = params[0]
    plen = int(prompt_ids.shape[0])
    assert plen + max_new_tokens <= S_MAX

    # prompt embedding lookup hoisted out of the kernel (plain XLA gather)
    x0 = jnp.zeros((S_MAX, D_MODEL), jnp.float32).at[:plen].set(
        jnp.take(emb, prompt_ids.astype(jnp.int32), axis=0))
    plen_arr = jnp.array([plen], jnp.int32)

    out = decode(plen_arr, x0, params)
    out = jax.block_until_ready(out)

    generated, trans_probs = [], []
    for i in range(max_new_tokens):
        tid = int(round(float(out[i, 0])))
        generated.append(tid)
        trans_probs.append(float(out[max_new_tokens + i, 0]))
        if tid == stop_token_id:                 # StopOnTokens / eos analogue
            break
    return generated, trans_probs


if __name__ == "__main__":
    key = jax.random.PRNGKey(0)
    k_param, k_prompt = jax.random.split(key)
    params = init_params(k_param)

    # deterministic synthetic "prompt" of 8 token ids
    prompt_ids = jax.random.randint(k_prompt, (PROMPT_LEN,), minval=4,
                                    maxval=VOCAB, dtype=jnp.int32)

    gen_ids, gen_probs = greedy_generate(prompt_ids, params)
    assert len(gen_ids) >= 1 and len(gen_ids) == len(gen_probs)
    assert all(0 <= t < VOCAB for t in gen_ids)
    assert all(0.0 <= p <= 1.0 for p in gen_probs)
    print("KERNEL_OK")
</pallas_src>

<mosaic_0001>
module attributes {stable_mosaic.version = 11 : i64} {
  func.func @decode_kernel(%arg0: i32, %arg1: memref<1xi32, #tpu.memory_space<smem>>, %arg2: memref<16x32xf32, #tpu.memory_space<vmem>>, %arg3: memref<64x32xf32, #tpu.memory_space<vmem>>, %arg4: memref<32x96xf32, #tpu.memory_space<vmem>>, %arg5: memref<32x32xf32, #tpu.memory_space<vmem>>, %arg6: memref<32x128xf32, #tpu.memory_space<vmem>>, %arg7: memref<64x32xf32, #tpu.memory_space<vmem>>, %arg8: memref<3x32xf32, #tpu.memory_space<vmem>>, %arg9: memref<32x128xf32, #tpu.memory_space<vmem>>, %arg10: memref<8x128xf32, #tpu.memory_space<vmem>>, %arg11: memref<16x32xf32, #tpu.memory_space<vmem>>, %arg12: memref<16x32xf32, #tpu.memory_space<vmem>>) attributes {dimension_semantics = [#tpu.dimension_semantics<arbitrary>], iteration_bounds = array<i64: 1>, scalar_prefetch = 1 : i64, scratch_operands = 2 : i64, tpu.core_type = #tpu.core_type<tc>, window_params = [{pipeline_mode = #tpu.pipeline_mode<synchronous>, transform_indices = @transform_0, window_bounds = array<i64: 16, 32>}, {pipeline_mode = #tpu.pipeline_mode<synchronous>, transform_indices = @transform_1, window_bounds = array<i64: 64, 32>}, {pipeline_mode = #tpu.pipeline_mode<synchronous>, transform_indices = @transform_2, window_bounds = array<i64: 32, 96>}, {pipeline_mode = #tpu.pipeline_mode<synchronous>, transform_indices = @transform_3, window_bounds = array<i64: 32, 32>}, {pipeline_mode = #tpu.pipeline_mode<synchronous>, transform_indices = @transform_4, window_bounds = array<i64: 32, 128>}, {pipeline_mode = #tpu.pipeline_mode<synchronous>, transform_indices = @transform_5, window_bounds = array<i64: 64, 32>}, {pipeline_mode = #tpu.pipeline_mode<synchronous>, transform_indices = @transform_6, window_bounds = array<i64: 3, 32>}, {pipeline_mode = #tpu.pipeline_mode<synchronous>, transform_indices = @transform_7, window_bounds = array<i64: 32, 128>}, {pipeline_mode = #tpu.pipeline_mode<synchronous>, transform_indices = @transform_8, window_bounds = array<i64: 8, 128>}]} {
    %c0 = arith.constant 0 : index
    %0 = memref.load %arg1[%c0] : memref<1xi32, #tpu.memory_space<smem>>
    %c0_0 = arith.constant 0 : index
    %c0_1 = arith.constant 0 : index
    %1 = vector.load %arg8[%c0_0, %c0_1] : memref<3x32xf32, #tpu.memory_space<vmem>>, vector<1x32xf32>
    %c1 = arith.constant 1 : index
    %c0_2 = arith.constant 0 : index
    %2 = vector.load %arg8[%c1, %c0_2] : memref<3x32xf32, #tpu.memory_space<vmem>>, vector<1x32xf32>
    %c2 = arith.constant 2 : index
    %c0_3 = arith.constant 0 : index
    %3 = vector.load %arg8[%c2, %c0_3] : memref<3x32xf32, #tpu.memory_space<vmem>>, vector<1x32xf32>
    %c0_4 = arith.constant 0 : index
    %c0_5 = arith.constant 0 : index
    %4 = vector.load %arg3[%c0_4, %c0_5] : memref<64x32xf32, #tpu.memory_space<vmem>>, vector<64x32xf32>
    %c0_6 = arith.constant 0 : index
    %c0_7 = arith.constant 0 : index
    %5 = vector.load %arg4[%c0_6, %c0_7] : memref<32x96xf32, #tpu.memory_space<vmem>>, vector<32x96xf32>
    %c0_8 = arith.constant 0 : index
    %c0_9 = arith.constant 0 : index
    %6 = vector.load %arg5[%c0_8, %c0_9] : memref<32x32xf32, #tpu.memory_space<vmem>>, vector<32x32xf32>
    %c0_10 = arith.constant 0 : index
    %c0_11 = arith.constant 0 : index
    %7 = vector.load %arg6[%c0_10, %c0_11] : memref<32x128xf32, #tpu.memory_space<vmem>>, vector<32x128xf32>
    %c0_12 = arith.constant 0 : index
    %c0_13 = arith.constant 0 : index
    %8 = vector.load %arg7[%c0_12, %c0_13] : memref<64x32xf32, #tpu.memory_space<vmem>>, vector<64x32xf32>
    %c0_14 = arith.constant 0 : index
    %c0_15 = arith.constant 0 : index
    %9 = vector.load %arg9[%c0_14, %c0_15] : memref<32x128xf32, #tpu.memory_space<vmem>>, vector<32x128xf32>
    %c0_16 = arith.constant 0 : index
    %c0_17 = arith.constant 0 : index
    %10 = vector.load %arg2[%c0_16, %c0_17] : memref<16x32xf32, #tpu.memory_space<vmem>>, vector<16x32xf32>
    %11 = arith.mulf %10, %10 : vector<16x32xf32>
    %cst = arith.constant dense<0.000000e+00> : vector<16xf32>
    %12 = vector.multi_reduction <add>, %11, %cst [1] : vector<16x32xf32> to vector<16xf32>
    %13 = vector.shape_cast %12 : vector<16xf32> to vector<16x1xf32>
    %cst_18 = arith.constant 3.200000e+01 : f32
    %14 = vector.broadcast %cst_18 : f32 to vector<16x1xf32>
    %15 = arith.divf %13, %14 : vector<16x1xf32>
    %cst_19 = arith.constant 9.99999997E-7 : f32
    %16 = vector.broadcast %cst_19 : f32 to vector<16x1xf32>
    %17 = arith.addf %15, %16 : vector<16x1xf32>
    %18 = math.rsqrt %17 : vector<16x1xf32>
    %19 = vector.broadcast %18 : vector<16x1xf32> to vector<16x32xf32>
    %20 = arith.mulf %10, %19 : vector<16x32xf32>
    %21 = vector.broadcast %1 : vector<1x32xf32> to vector<16x32xf32>
    %22 = arith.mulf %20, %21 : vector<16x32xf32>
    %cst_20 = arith.constant dense<0.000000e+00> : vector<16x96xf32>
    %23 = tpu.matmul %22, %5, %cst_20 {dimension_numbers = #tpu.dot_dimension_numbers<[1], [0], [0], [1], [0, 0, 1, 1], [], []>} : vector<16x32xf32>, vector<32x96xf32>, vector<16x96xf32> -> vector<16x96xf32>
    %24 = vector.extract_strided_slice %23 {offsets = [0, 32], sizes = [16, 32], strides = [1, 1]} : vector<16x96xf32> to vector<16x32xf32>
    %c0_21 = arith.constant 0 : index
    %c0_22 = arith.constant 0 : index
    %25 = vector.load %arg11[%c0_21, %c0_22] : memref<16x32xf32, #tpu.memory_space<vmem>>, vector<16x32xf32>
    tpu.vector_store %arg11[%c0_21, %c0_22], %24 {strides = array<i32>} : memref<16x32xf32, #tpu.memory_space<vmem>>, vector<16x32xf32>,
    %26 = vector.extract_strided_slice %23 {offsets = [0, 64], sizes = [16, 32], strides = [1, 1]} : vector<16x96xf32> to vector<16x32xf32>
    %c0_23 = arith.constant 0 : index
    %c0_24 = arith.constant 0 : index
    %27 = vector.load %arg12[%c0_23, %c0_24] : memref<16x32xf32, #tpu.memory_space<vmem>>, vector<16x32xf32>
    tpu.vector_store %arg12[%c0_23, %c0_24], %26 {strides = array<i32>} : memref<16x32xf32, #tpu.memory_space<vmem>>, vector<16x32xf32>,
    %28 = tpu.iota {dimensions = array<i32: 1>} : vector<1x32xi32>
    %29 = tpu.iota {dimensions = array<i32: 1>} : vector<1x16xi32>
    %30 = tpu.iota {dimensions = array<i32: 1>} : vector<1x128xi32>
    %31 = tpu.iota {dimensions = array<i32: 1>} : vector<1x64xi32>
    %c0_i32 = arith.constant 0 : i32
    %32 = vector.broadcast %c0_i32 : i32 to vector<1x32xi32>
    %33 = arith.cmpi sge, %28, %32 : vector<1x32xi32>
    %c16_i32 = arith.constant 16 : i32
    %34 = vector.broadcast %c16_i32 : i32 to vector<1x32xi32>
    %35 = arith.cmpi slt, %28, %34 : vector<1x32xi32>
    %36 = arith.andi %33, %35 : vector<1x32xi1>
    %cst_25 = arith.constant 1.000000e+00 : f32
    %cst_26 = arith.constant 0.000000e+00 : f32
    %37 = vector.broadcast %cst_25 : f32 to vector<1x32xf32>
    %38 = vector.broadcast %cst_26 : f32 to vector<1x32xf32>
    %39 = arith.select %36, %37, %38 : vector<1x32xi1>, vector<1x32xf32>
    %c16_i32_27 = arith.constant 16 : i32
    %40 = vector.broadcast %c16_i32_27 : i32 to vector<1x32xi32>
    %41 = arith.cmpi sge, %28, %40 : vector<1x32xi32>
    %c32_i32 = arith.constant 32 : i32
    %42 = vector.broadcast %c32_i32 : i32 to vector<1x32xi32>
    %43 = arith.cmpi slt, %28, %42 : vector<1x32xi32>
    %44 = arith.andi %41, %43 : vector<1x32xi1>
    %cst_28 = arith.constant 1.000000e+00 : f32
    %cst_29 = arith.constant 0.000000e+00 : f32
    %45 = vector.broadcast %cst_28 : f32 to vector<1x32xf32>
    %46 = vector.broadcast %cst_29 : f32 to vector<1x32xf32>
    %47 = arith.select %44, %45, %46 : vector<1x32xi1>, vector<1x32xf32>
    %c1_i32 = arith.constant 1 : i32
    %48 = arith.subi %0, %c1_i32 : i32
    %49 = arith.index_cast %48 : i32 to index
    %c0_30 = arith.constant 0 : index
    %50 = vector.load %arg2[%49, %c0_30] : memref<16x32xf32, #tpu.memory_space<vmem>>, vector<1x32xf32>
    %c1_i32_31 = arith.constant 1 : i32
    %51 = arith.subi %0, %c1_i32_31 : i32
    %c0_i32_32 = arith.constant 0 : i32
    %52 = arith.addi %51, %c0_i32_32 : i32
    %53 = arith.mulf %50, %50 : vector<1x32xf32>
    %cst_33 = arith.constant dense<0.000000e+00> : vector<1xf32>
    %54 = vector.multi_reduction <add>, %53, %cst_33 [1] : vector<1x32xf32> to vector<1xf32>
    %55 = vector.shape_cast %54 : vector<1xf32> to vector<1x1xf32>
    %cst_34 = arith.constant 3.200000e+01 : f32
    %56 = vector.broadcast %cst_34 : f32 to vector<1x1xf32>
    %57 = arith.divf %55, %56 : vector<1x1xf32>
    %cst_35 = arith.constant 9.99999997E-7 : f32
    %58 = vector.broadcast %cst_35 : f32 to vector<1x1xf32>
    %59 = arith.addf %57, %58 : vector<1x1xf32>
    %60 = math.rsqrt %59 : vector<1x1xf32>
    %61 = vector.broadcast %60 : vector<1x1xf32> to vector<1x32xf32>
    %62 = arith.mulf %50, %61 : vector<1x32xf32>
    %63 = arith.mulf %62, %1 : vector<1x32xf32>
    %cst_36 = arith.constant dense<0.000000e+00> : vector<1x96xf32>
    %64 = tpu.matmul %63, %5, %cst_36 {dimension_numbers = #tpu.dot_dimension_numbers<[1], [0], [0], [1], [0, 0, 1, 1], [], []>} : vector<1x32xf32>, vector<32x96xf32>, vector<1x96xf32> -> vector<1x96xf32>
    %65 = vector.extract_strided_slice %64 {offsets = [0, 0], sizes = [1, 32], strides = [1, 1]} : vector<1x96xf32> to vector<1x32xf32>
    %66 = vector.extract_strided_slice %64 {offsets = [0, 32], sizes = [1, 32], strides = [1, 1]} : vector<1x96xf32> to vector<1x32xf32>
    %67 = vector.extract_strided_slice %64 {offsets = [0, 64], sizes = [1, 32], strides = [1, 1]} : vector<1x96xf32> to vector<1x32xf32>
    %68 = arith.index_cast %52 : i32 to index
    %c0_37 = arith.constant 0 : index
    %69 = vector.load %arg11[%68, %c0_37] : memref<16x32xf32, #tpu.memory_space<vmem>>, vector<1x32xf32>
    tpu.vector_store %arg11[%68, %c0_37], %66 {strides = array<i32>} : memref<16x32xf32, #tpu.memory_space<vmem>>, vector<1x32xf32>,
    %70 = arith.index_cast %52 : i32 to index
    %c0_38 = arith.constant 0 : index
    %71 = vector.load %arg12[%70, %c0_38] : memref<16x32xf32, #tpu.memory_space<vmem>>, vector<1x32xf32>
    tpu.vector_store %arg12[%70, %c0_38], %67 {strides = array<i32>} : memref<16x32xf32, #tpu.memory_space<vmem>>, vector<1x32xf32>,
    %c0_39 = arith.constant 0 : index
    %c0_40 = arith.constant 0 : index
    %72 = vector.load %arg11[%c0_39, %c0_40] : memref<16x32xf32, #tpu.memory_space<vmem>>, vector<16x32xf32>
    %c0_41 = arith.constant 0 : index
    %c0_42 = arith.constant 0 : index
    %73 = vector.load %arg12[%c0_41, %c0_42] : memref<16x32xf32, #tpu.memory_space<vmem>>, vector<16x32xf32>
    %74 = vector.broadcast %52 : i32 to vector<1x16xi32>
    %75 = arith.cmpi sle, %29, %74 : vector<1x16xi32>
    %cst_43 = arith.constant 0.000000e+00 : f32
    %76 = vector.broadcast %cst_43 : f32 to vector<1x32xf32>
    %77 = arith.mulf %65, %39 : vector<1x32xf32>
    %cst_44 = arith.constant dense<0.000000e+00> : vector<1x16xf32>
    %78 = tpu.matmul %77, %72, %cst_44 {dimension_numbers = #tpu.dot_dimension_numbers<[1], [1], [0], [0], [0, 0, 1, 0], [], []>} : vector<1x32xf32>, vector<16x32xf32>, vector<1x16xf32> -> vector<1x16xf32>
    %cst_45 = arith.constant 2.500000e-01 : f32
    %79 = vector.broadcast %cst_45 : f32 to vector<1x16xf32>
    %80 = arith.mulf %78, %79 : vector<1x16xf32>
    %cst_46 = arith.constant -1.000000e+30 : f32
    %81 = vector.broadcast %cst_46 : f32 to vector<1x16xf32>
    %82 = arith.select %75, %80, %81 : vector<1x16xi1>, vector<1x16xf32>
    %cst_47 = arith.constant dense<0xFF800000> : vector<1xf32>
    %83 = vector.multi_reduction <maximumf>, %82, %cst_47 [1] : vector<1x16xf32> to vector<1xf32>
    %cst_48 = arith.constant 0xFF800000 : f32
    %84 = vector.broadcast %cst_48 : f32 to vector<1xf32>
    %85 = arith.maximumf %84, %83 : vector<1xf32>
    %86 = vector.shape_cast %85 : vector<1xf32> to vector<1x1xf32>
    %87 = vector.broadcast %86 : vector<1x1xf32> to vector<1x16xf32>
    %88 = arith.subf %82, %87 : vector<1x16xf32>
    %89 = math.exp %88 : vector<1x16xf32>
    %cst_49 = arith.constant dense<0.000000e+00> : vector<1xf32>
    %90 = vector.multi_reduction <add>, %89, %cst_49 [1] : vector<1x16xf32> to vector<1xf32>
    %91 = vector.shape_cast %90 : vector<1xf32> to vector<1x1xf32>
    %92 = vector.broadcast %91 : vector<1x1xf32> to vector<1x16xf32>
    %93 = arith.divf %89, %92 : vector<1x16xf32>
    %94 = vector.broadcast %39 : vector<1x32xf32> to vector<16x32xf32>
    %95 = arith.mulf %73, %94 : vector<16x32xf32>
    %cst_50 = arith.constant dense<0.000000e+00> : vector<1x32xf32>
    %96 = tpu.matmul %93, %95, %cst_50 {dimension_numbers = #tpu.dot_dimension_numbers<[1], [0], [0], [1], [0, 0, 1, 1], [], []>} : vector<1x16xf32>, vector<16x32xf32>, vector<1x32xf32> -> vector<1x32xf32>
    %97 = arith.addf %76, %96 : vector<1x32xf32>
    %98 = arith.mulf %65, %47 : vector<1x32xf32>
    %cst_51 = arith.constant dense<0.000000e+00> : vector<1x16xf32>
    %99 = tpu.matmul %98, %72, %cst_51 {dimension_numbers = #tpu.dot_dimension_numbers<[1], [1], [0], [0], [0, 0, 1, 0], [], []>} : vector<1x32xf32>, vector<16x32xf32>, vector<1x16xf32> -> vector<1x16xf32>
    %cst_52 = arith.constant 2.500000e-01 : f32
    %100 = vector.broadcast %cst_52 : f32 to vector<1x16xf32>
    %101 = arith.mulf %99, %100 : vector<1x16xf32>
    %cst_53 = arith.constant -1.000000e+30 : f32
    %102 = vector.broadcast %cst_53 : f32 to vector<1x16xf32>
    %103 = arith.select %75, %101, %102 : vector<1x16xi1>, vector<1x16xf32>
    %cst_54 = arith.constant dense<0xFF800000> : vector<1xf32>
    %104 = vector.multi_reduction <maximumf>, %103, %cst_54 [1] : vector<1x16xf32> to vector<1xf32>
    %cst_55 = arith.constant 0xFF800000 : f32
    %105 = vector.broadcast %cst_55 : f32 to vector<1xf32>
    %106 = arith.maximumf %105, %104 : vector<1xf32>
    %107 = vector.shape_cast %106 : vector<1xf32> to vector<1x1xf32>
    %108 = vector.broadcast %107 : vector<1x1xf32> to vector<1x16xf32>
    %109 = arith.subf %103, %108 : vector<1x16xf32>
    %110 = math.exp %109 : vector<1x16xf32>
    %cst_56 = arith.constant dense<0.000000e+00> : vector<1xf32>
    %111 = vector.multi_reduction <add>, %110, %cst_56 [1] : vector<1x16xf32> to vector<1xf32>
    %112 = vector.shape_cast %111 : vector<1xf32> to vector<1x1xf32>
    %113 = vector.broadcast %112 : vector<1x1xf32> to vector<1x16xf32>
    %114 = arith.divf %110, %113 : vector<1x16xf32>
    %115 = vector.broadcast %47 : vector<1x32xf32> to vector<16x32xf32>
    %116 = arith.mulf %73, %115 : vector<16x32xf32>
    %cst_57 = arith.constant dense<0.000000e+00> : vector<1x32xf32>
    %117 = tpu.matmul %114, %116, %cst_57 {dimension_numbers = #tpu.dot_dimension_numbers<[1], [0], [0], [1], [0, 0, 1, 1], [], []>} : vector<1x16xf32>, vector<16x32xf32>, vector<1x32xf32> -> vector<1x32xf32>
    %118 = arith.addf %97, %117 : vector<1x32xf32>
    %cst_58 = arith.constant dense<0.000000e+00> : vector<1x32xf32>
    %119 = tpu.matmul %118, %6, %cst_58 {dimension_numbers = #tpu.dot_dimension_numbers<[1], [0], [0], [1], [0, 0, 1, 1], [], []>} : vector<1x32xf32>, vector<32x32xf32>, vector<1x32xf32> -> vector<1x32xf32>
    %120 = arith.addf %50, %119 : vector<1x32xf32>
    %121 = arith.mulf %120, %120 : vector<1x32xf32>
    %cst_59 = arith.constant dense<0.000000e+00> : vector<1xf32>
    %122 = vector.multi_reduction <add>, %121, %cst_59 [1] : vector<1x32xf32> to vector<1xf32>
    %123 = vector.shape_cast %122 : vector<1xf32> to vector<1x1xf32>
    %cst_60 = arith.constant 3.200000e+01 : f32
    %124 = vector.broadcast %cst_60 : f32 to vector<1x1xf32>
    %125 = arith.divf %123, %124 : vector<1x1xf32>
    %cst_61 = arith.constant 9.99999997E-7 : f32
    %126 = vector.broadcast %cst_61 : f32 to vector<1x1xf32>
    %127 = arith.addf %125, %126 : vector<1x1xf32>
    %128 = math.rsqrt %127 : vector<1x1xf32>
    %129 = vector.broadcast %128 : vector<1x1xf32> to vector<1x32xf32>
    %130 = arith.mulf %120, %129 : vector<1x32xf32>
    %131 = arith.mulf %130, %2 : vector<1x32xf32>
    %cst_62 = arith.constant dense<0.000000e+00> : vector<1x128xf32>
    %132 = tpu.matmul %131, %7, %cst_62 {dimension_numbers = #tpu.dot_dimension_numbers<[1], [0], [0], [1], [0, 0, 1, 1], [], []>} : vector<1x32xf32>, vector<32x128xf32>, vector<1x128xf32> -> vector<1x128xf32>
    %133 = vector.extract_strided_slice %132 {offsets = [0, 0], sizes = [1, 64], strides = [1, 1]} : vector<1x128xf32> to vector<1x64xf32>
    %134 = arith.negf %133 : vector<1x64xf32>
    %135 = math.exp %134 : vector<1x64xf32>
    %cst_63 = arith.constant 1.000000e+00 : f32
    %136 = vector.broadcast %cst_63 : f32 to vector<1x64xf32>
    %137 = arith.addf %136, %135 : vector<1x64xf32>
    %138 = arith.divf %136, %137 : vector<1x64xf32>
    %139 = arith.mulf %133, %138 : vector<1x64xf32>
    %140 = vector.extract_strided_slice %132 {offsets = [0, 64], sizes = [1, 64], strides = [1, 1]} : vector<1x128xf32> to vector<1x64xf32>
    %141 = arith.mulf %139, %140 : vector<1x64xf32>
    %cst_64 = arith.constant dense<0.000000e+00> : vector<1x32xf32>
    %142 = tpu.matmul %141, %8, %cst_64 {dimension_numbers = #tpu.dot_dimension_numbers<[1], [0], [0], [1], [0, 0, 1, 1], [], []>} : vector<1x64xf32>, vector<64x32xf32>, vector<1x32xf32> -> vector<1x32xf32>
    %143 = arith.addf %120, %142 : vector<1x32xf32>
    %144 = arith.mulf %143, %143 : vector<1x32xf32>
    %cst_65 = arith.constant dense<0.000000e+00> : vector<1xf32>
    %145 = vector.multi_reduction <add>, %144, %cst_65 [1] : vector<1x32xf32> to vector<1xf32>
    %146 = vector.shape_cast %145 : vector<1xf32> to vector<1x1xf32>
    %cst_66 = arith.constant 3.200000e+01 : f32
    %147 = vector.broadcast %cst_66 : f32 to vector<1x1xf32>
    %148 = arith.divf %146, %147 : vector<1x1xf32>
    %cst_67 = arith.constant 9.99999997E-7 : f32
    %149 = vector.broadcast %cst_67 : f32 to vector<1x1xf32>
    %150 = arith.addf %148, %149 : vector<1x1xf32>
    %151 = math.rsqrt %150 : vector<1x1xf32>
    %152 = vector.broadcast %151 : vector<1x1xf32> to vector<1x32xf32>
    %153 = arith.mulf %143, %152 : vector<1x32xf32>
    %154 = arith.mulf %153, %3 : vector<1x32xf32>
    %cst_68 = arith.constant dense<0.000000e+00> : vector<1x128xf32>
    %155 = tpu.matmul %154, %9, %cst_68 {dimension_numbers = #tpu.dot_dimension_numbers<[1], [0], [0], [1], [0, 0, 1, 1], [], []>} : vector<1x32xf32>, vector<32x128xf32>, vector<1x128xf32> -> vector<1x128xf32>
    %c64_i32 = arith.constant 64 : i32
    %156 = vector.broadcast %c64_i32 : i32 to vector<1x128xi32>
    %157 = arith.cmpi slt, %30, %156 : vector<1x128xi32>
    %cst_69 = arith.constant -1.000000e+30 : f32
    %158 = vector.broadcast %cst_69 : f32 to vector<1x128xf32>
    %159 = arith.select %157, %155, %158 : vector<1x128xi1>, vector<1x128xf32>
    %cst_70 = arith.constant dense<0xFF800000> : vector<1xf32>
    %160 = vector.multi_reduction <maximumf>, %159, %cst_70 [1] : vector<1x128xf32> to vector<1xf32>
    %161 = vector.shape_cast %160 : vector<1xf32> to vector<1x1xf32>
    %162 = vector.broadcast %161 : vector<1x1xf32> to vector<1x128xf32>
    %163 = arith.cmpf oge, %159, %162 : vector<1x128xf32>
    %164 = arith.sitofp %30 : vector<1x128xi32> to vector<1x128xf32>
    %cst_71 = arith.constant 1.280000e+02 : f32
    %165 = vector.broadcast %cst_71 : f32 to vector<1x128xf32>
    %166 = arith.select %163, %164, %165 : vector<1x128xi1>, vector<1x128xf32>
    %cst_72 = arith.constant dense<0x7F800000> : vector<1xf32>
    %167 = vector.multi_reduction <minimumf>, %166, %cst_72 [1] : vector<1x128xf32> to vector<1xf32>
    %168 = vector.shape_cast %167 : vector<1xf32> to vector<1x1xf32>
    %169 = arith.fptosi %168 : vector<1x1xf32> to vector<1x1xi32>
    %170 = vector.broadcast %161 : vector<1x1xf32> to vector<1x128xf32>
    %171 = arith.subf %159, %170 : vector<1x128xf32>
    %172 = math.exp %171 : vector<1x128xf32>
    %cst_73 = arith.constant dense<0.000000e+00> : vector<1xf32>
    %173 = vector.multi_reduction <add>, %172, %cst_73 [1] : vector<1x128xf32> to vector<1xf32>
    %174 = vector.shape_cast %173 : vector<1xf32> to vector<1x1xf32>
    %175 = tpu.reciprocal %174 {approx = true} : vector<1x1xf32> -> vector<1x1xf32>
    %cst_74 = arith.constant 1.000000e+00 : f32
    %176 = vector.broadcast %cst_74 : f32 to vector<1x1xf32>
    %177 = arith.minimumf %175, %176 : vector<1x1xf32>
    %178 = arith.sitofp %169 : vector<1x1xi32> to vector<1x1xf32>
    %179 = vector.shape_cast %178 : vector<1x1xf32> to vector<1x1xf32>
    %180 = vector.broadcast %179 : vector<1x1xf32> to vector<1x128xf32>
    %181 = vector.shape_cast %177 : vector<1x1xf32> to vector<1x1xf32>
    %182 = vector.broadcast %181 : vector<1x1xf32> to vector<1x128xf32>
    %183 = vector.broadcast %169 : vector<1x1xi32> to vector<1x64xi32>
    %184 = arith.cmpi eq, %31, %183 : vector<1x64xi32>
    %cst_75 = arith.constant 1.000000e+00 : f32
    %cst_76 = arith.constant 0.000000e+00 : f32
    %185 = vector.broadcast %cst_75 : f32 to vector<1x64xf32>
    %186 = vector.broadcast %cst_76 : f32 to vector<1x64xf32>
    %187 = arith.select %184, %185, %186 : vector<1x64xi1>, vector<1x64xf32>
    %cst_77 = arith.constant dense<0.000000e+00> : vector<1x32xf32>
    %188 = tpu.matmul %187, %4, %cst_77 {dimension_numbers = #tpu.dot_dimension_numbers<[1], [0], [0], [1], [0, 0, 1, 1], [], []>} : vector<1x64xf32>, vector<64x32xf32>, vector<1x32xf32> -> vector<1x32xf32>
    %c1_i32_78 = arith.constant 1 : i32
    %189 = arith.subi %0, %c1_i32_78 : i32
    %c1_i32_79 = arith.constant 1 : i32
    %190 = arith.addi %189, %c1_i32_79 : i32
    %191 = arith.mulf %188, %188 : vector<1x32xf32>
    %cst_80 = arith.constant dense<0.000000e+00> : vector<1xf32>
    %192 = vector.multi_reduction <add>, %191, %cst_80 [1] : vector<1x32xf32> to vector<1xf32>
    %193 = vector.shape_cast %192 : vector<1xf32> to vector<1x1xf32>
    %cst_81 = arith.constant 3.200000e+01 : f32
    %194 = vector.broadcast %cst_81 : f32 to vector<1x1xf32>
    %195 = arith.divf %193, %194 : vector<1x1xf32>
    %cst_82 = arith.constant 9.99999997E-7 : f32
    %196 = vector.broadcast %cst_82 : f32 to vector<1x1xf32>
    %197 = arith.addf %195, %196 : vector<1x1xf32>
    %198 = math.rsqrt %197 : vector<1x1xf32>
    %199 = vector.broadcast %198 : vector<1x1xf32> to vector<1x32xf32>
    %200 = arith.mulf %188, %199 : vector<1x32xf32>
    %201 = arith.mulf %200, %1 : vector<1x32xf32>
    %cst_83 = arith.constant dense<0.000000e+00> : vector<1x96xf32>
    %202 = tpu.matmul %201, %5, %cst_83 {dimension_numbers = #tpu.dot_dimension_numbers<[1], [0], [0], [1], [0, 0, 1, 1], [], []>} : vector<1x32xf32>, vector<32x96xf32>, vector<1x96xf32> -> vector<1x96xf32>
    %203 = vector.extract_strided_slice %202 {offsets = [0, 0], sizes = [1, 32], strides = [1, 1]} : vector<1x96xf32> to vector<1x32xf32>
    %204 = vector.extract_strided_slice %202 {offsets = [0, 32], sizes = [1, 32], strides = [1, 1]} : vector<1x96xf32> to vector<1x32xf32>
    %205 = vector.extract_strided_slice %202 {offsets = [0, 64], sizes = [1, 32], strides = [1, 1]} : vector<1x96xf32> to vector<1x32xf32>
    %206 = arith.index_cast %190 : i32 to index
    %c0_84 = arith.constant 0 : index
    %207 = vector.load %arg11[%206, %c0_84] : memref<16x32xf32, #tpu.memory_space<vmem>>, vector<1x32xf32>
    tpu.vector_store %arg11[%206, %c0_84], %204 {strides = array<i32>} : memref<16x32xf32, #tpu.memory_space<vmem>>, vector<1x32xf32>,
    %208 = arith.index_cast %190 : i32 to index
    %c0_85 = arith.constant 0 : index
    %209 = vector.load %arg12[%208, %c0_85] : memref<16x32xf32, #tpu.memory_space<vmem>>, vector<1x32xf32>
    tpu.vector_store %arg12[%208, %c0_85], %205 {strides = array<i32>} : memref<16x32xf32, #tpu.memory_space<vmem>>, vector<1x32xf32>,
    %c0_86 = arith.constant 0 : index
    %c0_87 = arith.constant 0 : index
    %210 = vector.load %arg11[%c0_86, %c0_87] : memref<16x32xf32, #tpu.memory_space<vmem>>, vector<16x32xf32>
    %c0_88 = arith.constant 0 : index
    %c0_89 = arith.constant 0 : index
    %211 = vector.load %arg12[%c0_88, %c0_89] : memref<16x32xf32, #tpu.memory_space<vmem>>, vector<16x32xf32>
    %212 = vector.broadcast %190 : i32 to vector<1x16xi32>
    %213 = arith.cmpi sle, %29, %212 : vector<1x16xi32>
    %cst_90 = arith.constant 0.000000e+00 : f32
    %214 = vector.broadcast %cst_90 : f32 to vector<1x32xf32>
    %215 = arith.mulf %203, %39 : vector<1x32xf32>
    %cst_91 = arith.constant dense<0.000000e+00> : vector<1x16xf32>
    %216 = tpu.matmul %215, %210, %cst_91 {dimension_numbers = #tpu.dot_dimension_numbers<[1], [1], [0], [0], [0, 0, 1, 0], [], []>} : vector<1x32xf32>, vector<16x32xf32>, vector<1x16xf32> -> vector<1x16xf32>
    %cst_92 = arith.constant 2.500000e-01 : f32
    %217 = vector.broadcast %cst_92 : f32 to vector<1x16xf32>
    %218 = arith.mulf %216, %217 : vector<1x16xf32>
    %cst_93 = arith.constant -1.000000e+30 : f32
    %219 = vector.broadcast %cst_93 : f32 to vector<1x16xf32>
    %220 = arith.select %213, %218, %219 : vector<1x16xi1>, vector<1x16xf32>
    %cst_94 = arith.constant dense<0xFF800000> : vector<1xf32>
    %221 = vector.multi_reduction <maximumf>, %220, %cst_94 [1] : vector<1x16xf32> to vector<1xf32>
    %cst_95 = arith.constant 0xFF800000 : f32
    %222 = vector.broadcast %cst_95 : f32 to vector<1xf32>
    %223 = arith.maximumf %222, %221 : vector<1xf32>
    %224 = vector.shape_cast %223 : vector<1xf32> to vector<1x1xf32>
    %225 = vector.broadcast %224 : vector<1x1xf32> to vector<1x16xf32>
    %226 = arith.subf %220, %225 : vector<1x16xf32>
    %227 = math.exp %226 : vector<1x16xf32>
    %cst_96 = arith.constant dense<0.000000e+00> : vector<1xf32>
    %228 = vector.multi_reduction <add>, %227, %cst_96 [1] : vector<1x16xf32> to vector<1xf32>
    %229 = vector.shape_cast %228 : vector<1xf32> to vector<1x1xf32>
    %230 = vector.broadcast %229 : vector<1x1xf32> to vector<1x16xf32>
    %231 = arith.divf %227, %230 : vector<1x16xf32>
    %232 = vector.broadcast %39 : vector<1x32xf32> to vector<16x32xf32>
    %233 = arith.mulf %211, %232 : vector<16x32xf32>
    %cst_97 = arith.constant dense<0.000000e+00> : vector<1x32xf32>
    %234 = tpu.matmul %231, %233, %cst_97 {dimension_numbers = #tpu.dot_dimension_numbers<[1], [0], [0], [1], [0, 0, 1, 1], [], []>} : vector<1x16xf32>, vector<16x32xf32>, vector<1x32xf32> -> vector<1x32xf32>
    %235 = arith.addf %214, %234 : vector<1x32xf32>
    %236 = arith.mulf %203, %47 : vector<1x32xf32>
    %cst_98 = arith.constant dense<0.000000e+00> : vector<1x16xf32>
    %237 = tpu.matmul %236, %210, %cst_98 {dimension_numbers = #tpu.dot_dimension_numbers<[1], [1], [0], [0], [0, 0, 1, 0], [], []>} : vector<1x32xf32>, vector<16x32xf32>, vector<1x16xf32> -> vector<1x16xf32>
    %cst_99 = arith.constant 2.500000e-01 : f32
    %238 = vector.broadcast %cst_99 : f32 to vector<1x16xf32>
    %239 = arith.mulf %237, %238 : vector<1x16xf32>
    %cst_100 = arith.constant -1.000000e+30 : f32
    %240 = vector.broadcast %cst_100 : f32 to vector<1x16xf32>
    %241 = arith.select %213, %239, %240 : vector<1x16xi1>, vector<1x16xf32>
    %cst_101 = arith.constant dense<0xFF800000> : vector<1xf32>
    %242 = vector.multi_reduction <maximumf>, %241, %cst_101 [1] : vector<1x16xf32> to vector<1xf32>
    %cst_102 = arith.constant 0xFF800000 : f32
    %243 = vector.broadcast %cst_102 : f32 to vector<1xf32>
    %244 = arith.maximumf %243, %242 : vector<1xf32>
    %245 = vector.shape_cast %244 : vector<1xf32> to vector<1x1xf32>
    %246 = vector.broadcast %245 : vector<1x1xf32> to vector<1x16xf32>
    %247 = arith.subf %241, %246 : vector<1x16xf32>
    %248 = math.exp %247 : vector<1x16xf32>
    %cst_103 = arith.constant dense<0.000000e+00> : vector<1xf32>
    %249 = vector.multi_reduction <add>, %248, %cst_103 [1] : vector<1x16xf32> to vector<1xf32>
    %250 = vector.shape_cast %249 : vector<1xf32> to vector<1x1xf32>
    %251 = vector.broadcast %250 : vector<1x1xf32> to vector<1x16xf32>
    %252 = arith.divf %248, %251 : vector<1x16xf32>
    %253 = vector.broadcast %47 : vector<1x32xf32> to vector<16x32xf32>
    %254 = arith.mulf %211, %253 : vector<16x32xf32>
    %cst_104 = arith.constant dense<0.000000e+00> : vector<1x32xf32>
    %255 = tpu.matmul %252, %254, %cst_104 {dimension_numbers = #tpu.dot_dimension_numbers<[1], [0], [0], [1], [0, 0, 1, 1], [], []>} : vector<1x16xf32>, vector<16x32xf32>, vector<1x32xf32> -> vector<1x32xf32>
    %256 = arith.addf %235, %255 : vector<1x32xf32>
    %cst_105 = arith.constant dense<0.000000e+00> : vector<1x32xf32>
    %257 = tpu.matmul %256, %6, %cst_105 {dimension_numbers = #tpu.dot_dimension_numbers<[1], [0], [0], [1], [0, 0, 1, 1], [], []>} : vector<1x32xf32>, vector<32x32xf32>, vector<1x32xf32> -> vector<1x32xf32>
    %258 = arith.addf %188, %257 : vector<1x32xf32>
    %259 = arith.mulf %258, %258 : vector<1x32xf32>
    %cst_106 = arith.constant dense<0.000000e+00> : vector<1xf32>
    %260 = vector.multi_reduction <add>, %259, %cst_106 [1] : vector<1x32xf32> to vector<1xf32>
    %261 = vector.shape_cast %260 : vector<1xf32> to vector<1x1xf32>
    %cst_107 = arith.constant 3.200000e+01 : f32
    %262 = vector.broadcast %cst_107 : f32 to vector<1x1xf32>
    %263 = arith.divf %261, %262 : vector<1x1xf32>
    %cst_108 = arith.constant 9.99999997E-7 : f32
    %264 = vector.broadcast %cst_108 : f32 to vector<1x1xf32>
    %265 = arith.addf %263, %264 : vector<1x1xf32>
    %266 = math.rsqrt %265 : vector<1x1xf32>
    %267 = vector.broadcast %266 : vector<1x1xf32> to vector<1x32xf32>
    %268 = arith.mulf %258, %267 : vector<1x32xf32>
    %269 = arith.mulf %268, %2 : vector<1x32xf32>
    %cst_109 = arith.constant dense<0.000000e+00> : vector<1x128xf32>
    %270 = tpu.matmul %269, %7, %cst_109 {dimension_numbers = #tpu.dot_dimension_numbers<[1], [0], [0], [1], [0, 0, 1, 1], [], []>} : vector<1x32xf32>, vector<32x128xf32>, vector<1x128xf32> -> vector<1x128xf32>
    %271 = vector.extract_strided_slice %270 {offsets = [0, 0], sizes = [1, 64], strides = [1, 1]} : vector<1x128xf32> to vector<1x64xf32>
    %272 = arith.negf %271 : vector<1x64xf32>
    %273 = math.exp %272 : vector<1x64xf32>
    %cst_110 = arith.constant 1.000000e+00 : f32
    %274 = vector.broadcast %cst_110 : f32 to vector<1x64xf32>
    %275 = arith.addf %274, %273 : vector<1x64xf32>
    %276 = arith.divf %274, %275 : vector<1x64xf32>
    %277 = arith.mulf %271, %276 : vector<1x64xf32>
    %278 = vector.extract_strided_slice %270 {offsets = [0, 64], sizes = [1, 64], strides = [1, 1]} : vector<1x128xf32> to vector<1x64xf32>
    %279 = arith.mulf %277, %278 : vector<1x64xf32>
    %cst_111 = arith.constant dense<0.000000e+00> : vector<1x32xf32>
    %280 = tpu.matmul %279, %8, %cst_111 {dimension_numbers = #tpu.dot_dimension_numbers<[1], [0], [0], [1], [0, 0, 1, 1], [], []>} : vector<1x64xf32>, vector<64x32xf32>, vector<1x32xf32> -> vector<1x32xf32>
    %281 = arith.addf %258, %280 : vector<1x32xf32>
    %282 = arith.mulf %281, %281 : vector<1x32xf32>
    %cst_112 = arith.constant dense<0.000000e+00> : vector<1xf32>
    %283 = vector.multi_reduction <add>, %282, %cst_112 [1] : vector<1x32xf32> to vector<1xf32>
    %284 = vector.shape_cast %283 : vector<1xf32> to vector<1x1xf32>
    %cst_113 = arith.constant 3.200000e+01 : f32
    %285 = vector.broadcast %cst_113 : f32 to vector<1x1xf32>
    %286 = arith.divf %284, %285 : vector<1x1xf32>
    %cst_114 = arith.constant 9.99999997E-7 : f32
    %287 = vector.broadcast %cst_114 : f32 to vector<1x1xf32>
    %288 = arith.addf %286, %287 : vector<1x1xf32>
    %289 = math.rsqrt %288 : vector<1x1xf32>
    %290 = vector.broadcast %289 : vector<1x1xf32> to vector<1x32xf32>
    %291 = arith.mulf %281, %290 : vector<1x32xf32>
    %292 = arith.mulf %291, %3 : vector<1x32xf32>
    %cst_115 = arith.constant dense<0.000000e+00> : vector<1x128xf32>
    %293 = tpu.matmul %292, %9, %cst_115 {dimension_numbers = #tpu.dot_dimension_numbers<[1], [0], [0], [1], [0, 0, 1, 1], [], []>} : vector<1x32xf32>, vector<32x128xf32>, vector<1x128xf32> -> vector<1x128xf32>
    %c64_i32_116 = arith.constant 64 : i32
    %294 = vector.broadcast %c64_i32_116 : i32 to vector<1x128xi32>
    %295 = arith.cmpi slt, %30, %294 : vector<1x128xi32>
    %cst_117 = arith.constant -1.000000e+30 : f32
    %296 = vector.broadcast %cst_117 : f32 to vector<1x128xf32>
    %297 = arith.select %295, %293, %296 : vector<1x128xi1>, vector<1x128xf32>
    %cst_118 = arith.constant dense<0xFF800000> : vector<1xf32>
    %298 = vector.multi_reduction <maximumf>, %297, %cst_118 [1] : vector<1x128xf32> to vector<1xf32>
    %299 = vector.shape_cast %298 : vector<1xf32> to vector<1x1xf32>
    %300 = vector.broadcast %299 : vector<1x1xf32> to vector<1x128xf32>
    %301 = arith.cmpf oge, %297, %300 : vector<1x128xf32>
    %302 = arith.sitofp %30 : vector<1x128xi32> to vector<1x128xf32>
    %cst_119 = arith.constant 1.280000e+02 : f32
    %303 = vector.broadcast %cst_119 : f32 to vector<1x128xf32>
    %304 = arith.select %301, %302, %303 : vector<1x128xi1>, vector<1x128xf32>
    %cst_120 = arith.constant dense<0x7F800000> : vector<1xf32>
    %305 = vector.multi_reduction <minimumf>, %304, %cst_120 [1] : vector<1x128xf32> to vector<1xf32>
    %306 = vector.shape_cast %305 : vector<1xf32> to vector<1x1xf32>
    %307 = arith.fptosi %306 : vector<1x1xf32> to vector<1x1xi32>
    %308 = vector.broadcast %299 : vector<1x1xf32> to vector<1x128xf32>
    %309 = arith.subf %297, %308 : vector<1x128xf32>
    %310 = math.exp %309 : vector<1x128xf32>
    %cst_121 = arith.constant dense<0.000000e+00> : vector<1xf32>
    %311 = vector.multi_reduction <add>, %310, %cst_121 [1] : vector<1x128xf32> to vector<1xf32>
    %312 = vector.shape_cast %311 : vector<1xf32> to vector<1x1xf32>
    %313 = tpu.reciprocal %312 {approx = true} : vector<1x1xf32> -> vector<1x1xf32>
    %cst_122 = arith.constant 1.000000e+00 : f32
    %314 = vector.broadcast %cst_122 : f32 to vector<1x1xf32>
    %315 = arith.minimumf %313, %314 : vector<1x1xf32>
    %316 = arith.sitofp %307 : vector<1x1xi32> to vector<1x1xf32>
    %317 = vector.shape_cast %316 : vector<1x1xf32> to vector<1x1xf32>
    %318 = vector.broadcast %317 : vector<1x1xf32> to vector<1x128xf32>
    %319 = vector.shape_cast %315 : vector<1x1xf32> to vector<1x1xf32>
    %320 = vector.broadcast %319 : vector<1x1xf32> to vector<1x128xf32>
    %321 = vector.broadcast %307 : vector<1x1xi32> to vector<1x64xi32>
    %322 = arith.cmpi eq, %31, %321 : vector<1x64xi32>
    %cst_123 = arith.constant 1.000000e+00 : f32
    %cst_124 = arith.constant 0.000000e+00 : f32
    %323 = vector.broadcast %cst_123 : f32 to vector<1x64xf32>
    %324 = vector.broadcast %cst_124 : f32 to vector<1x64xf32>
    %325 = arith.select %322, %323, %324 : vector<1x64xi1>, vector<1x64xf32>
    %cst_125 = arith.constant dense<0.000000e+00> : vector<1x32xf32>
    %326 = tpu.matmul %325, %4, %cst_125 {dimension_numbers = #tpu.dot_dimension_numbers<[1], [0], [0], [1], [0, 0, 1, 1], [], []>} : vector<1x64xf32>, vector<64x32xf32>, vector<1x32xf32> -> vector<1x32xf32>
    %c1_i32_126 = arith.constant 1 : i32
    %327 = arith.subi %0, %c1_i32_126 : i32
    %c2_i32 = arith.constant 2 : i32
    %328 = arith.addi %327, %c2_i32 : i32
    %329 = arith.mulf %326, %326 : vector<1x32xf32>
    %cst_127 = arith.constant dense<0.000000e+00> : vector<1xf32>
    %330 = vector.multi_reduction <add>, %329, %cst_127 [1] : vector<1x32xf32> to vector<1xf32>
    %331 = vector.shape_cast %330 : vector<1xf32> to vector<1x1xf32>
    %cst_128 = arith.constant 3.200000e+01 : f32
    %332 = vector.broadcast %cst_128 : f32 to vector<1x1xf32>
    %333 = arith.divf %331, %332 : vector<1x1xf32>
    %cst_129 = arith.constant 9.99999997E-7 : f32
    %334 = vector.broadcast %cst_129 : f32 to vector<1x1xf32>
    %335 = arith.addf %333, %334 : vector<1x1xf32>
    %336 = math.rsqrt %335 : vector<1x1xf32>
    %337 = vector.broadcast %336 : vector<1x1xf32> to vector<1x32xf32>
    %338 = arith.mulf %326, %337 : vector<1x32xf32>
    %339 = arith.mulf %338, %1 : vector<1x32xf32>
    %cst_130 = arith.constant dense<0.000000e+00> : vector<1x96xf32>
    %340 = tpu.matmul %339, %5, %cst_130 {dimension_numbers = #tpu.dot_dimension_numbers<[1], [0], [0], [1], [0, 0, 1, 1], [], []>} : vector<1x32xf32>, vector<32x96xf32>, vector<1x96xf32> -> vector<1x96xf32>
    %341 = vector.extract_strided_slice %340 {offsets = [0, 0], sizes = [1, 32], strides = [1, 1]} : vector<1x96xf32> to vector<1x32xf32>
    %342 = vector.extract_strided_slice %340 {offsets = [0, 32], sizes = [1, 32], strides = [1, 1]} : vector<1x96xf32> to vector<1x32xf32>
    %343 = vector.extract_strided_slice %340 {offsets = [0, 64], sizes = [1, 32], strides = [1, 1]} : vector<1x96xf32> to vector<1x32xf32>
    %344 = arith.index_cast %328 : i32 to index
    %c0_131 = arith.constant 0 : index
    %345 = vector.load %arg11[%344, %c0_131] : memref<16x32xf32, #tpu.memory_space<vmem>>, vector<1x32xf32>
    tpu.vector_store %arg11[%344, %c0_131], %342 {strides = array<i32>} : memref<16x32xf32, #tpu.memory_space<vmem>>, vector<1x32xf32>,
    %346 = arith.index_cast %328 : i32 to index
    %c0_132 = arith.constant 0 : index
    %347 = vector.load %arg12[%346, %c0_132] : memref<16x32xf32, #tpu.memory_space<vmem>>, vector<1x32xf32>
    tpu.vector_store %arg12[%346, %c0_132], %343 {strides = array<i32>} : memref<16x32xf32, #tpu.memory_space<vmem>>, vector<1x32xf32>,
    %c0_133 = arith.constant 0 : index
    %c0_134 = arith.constant 0 : index
    %348 = vector.load %arg11[%c0_133, %c0_134] : memref<16x32xf32, #tpu.memory_space<vmem>>, vector<16x32xf32>
    %c0_135 = arith.constant 0 : index
    %c0_136 = arith.constant 0 : index
    %349 = vector.load %arg12[%c0_135, %c0_136] : memref<16x32xf32, #tpu.memory_space<vmem>>, vector<16x32xf32>
    %350 = vector.broadcast %328 : i32 to vector<1x16xi32>
    %351 = arith.cmpi sle, %29, %350 : vector<1x16xi32>
    %cst_137 = arith.constant 0.000000e+00 : f32
    %352 = vector.broadcast %cst_137 : f32 to vector<1x32xf32>
    %353 = arith.mulf %341, %39 : vector<1x32xf32>
    %cst_138 = arith.constant dense<0.000000e+00> : vector<1x16xf32>
    %354 = tpu.matmul %353, %348, %cst_138 {dimension_numbers = #tpu.dot_dimension_numbers<[1], [1], [0], [0], [0, 0, 1, 0], [], []>} : vector<1x32xf32>, vector<16x32xf32>, vector<1x16xf32> -> vector<1x16xf32>
    %cst_139 = arith.constant 2.500000e-01 : f32
    %355 = vector.broadcast %cst_139 : f32 to vector<1x16xf32>
    %356 = arith.mulf %354, %355 : vector<1x16xf32>
    %cst_140 = arith.constant -1.000000e+30 : f32
    %357 = vector.broadcast %cst_140 : f32 to vector<1x16xf32>
    %358 = arith.select %351, %356, %357 : vector<1x16xi1>, vector<1x16xf32>
    %cst_141 = arith.constant dense<0xFF800000> : vector<1xf32>
    %359 = vector.multi_reduction <maximumf>, %358, %cst_141 [1] : vector<1x16xf32> to vector<1xf32>
    %cst_142 = arith.constant 0xFF800000 : f32
    %360 = vector.broadcast %cst_142 : f32 to vector<1xf32>
    %361 = arith.maximumf %360, %359 : vector<1xf32>
    %362 = vector.shape_cast %361 : vector<1xf32> to vector<1x1xf32>
    %363 = vector.broadcast %362 : vector<1x1xf32> to vector<1x16xf32>
    %364 = arith.subf %358, %363 : vector<1x16xf32>
    %365 = math.exp %364 : vector<1x16xf32>
    %cst_143 = arith.constant dense<0.000000e+00> : vector<1xf32>
    %366 = vector.multi_reduction <add>, %365, %cst_143 [1] : vector<1x16xf32> to vector<1xf32>
    %367 = vector.shape_cast %366 : vector<1xf32> to vector<1x1xf32>
    %368 = vector.broadcast %367 : vector<1x1xf32> to vector<1x16xf32>
    %369 = arith.divf %365, %368 : vector<1x16xf32>
    %370 = vector.broadcast %39 : vector<1x32xf32> to vector<16x32xf32>
    %371 = arith.mulf %349, %370 : vector<16x32xf32>
    %cst_144 = arith.constant dense<0.000000e+00> : vector<1x32xf32>
    %372 = tpu.matmul %369, %371, %cst_144 {dimension_numbers = #tpu.dot_dimension_numbers<[1], [0], [0], [1], [0, 0, 1, 1], [], []>} : vector<1x16xf32>, vector<16x32xf32>, vector<1x32xf32> -> vector<1x32xf32>
    %373 = arith.addf %352, %372 : vector<1x32xf32>
    %374 = arith.mulf %341, %47 : vector<1x32xf32>
    %cst_145 = arith.constant dense<0.000000e+00> : vector<1x16xf32>
    %375 = tpu.matmul %374, %348, %cst_145 {dimension_numbers = #tpu.dot_dimension_numbers<[1], [1], [0], [0], [0, 0, 1, 0], [], []>} : vector<1x32xf32>, vector<16x32xf32>, vector<1x16xf32> -> vector<1x16xf32>
    %cst_146 = arith.constant 2.500000e-01 : f32
    %376 = vector.broadcast %cst_146 : f32 to vector<1x16xf32>
    %377 = arith.mulf %375, %376 : vector<1x16xf32>
    %cst_147 = arith.constant -1.000000e+30 : f32
    %378 = vector.broadcast %cst_147 : f32 to vector<1x16xf32>
    %379 = arith.select %351, %377, %378 : vector<1x16xi1>, vector<1x16xf32>
    %cst_148 = arith.constant dense<0xFF800000> : vector<1xf32>
    %380 = vector.multi_reduction <maximumf>, %379, %cst_148 [1] : vector<1x16xf32> to vector<1xf32>
    %cst_149 = arith.constant 0xFF800000 : f32
    %381 = vector.broadcast %cst_149 : f32 to vector<1xf32>
    %382 = arith.maximumf %381, %380 : vector<1xf32>
    %383 = vector.shape_cast %382 : vector<1xf32> to vector<1x1xf32>
    %384 = vector.broadcast %383 : vector<1x1xf32> to vector<1x16xf32>
    %385 = arith.subf %379, %384 : vector<1x16xf32>
    %386 = math.exp %385 : vector<1x16xf32>
    %cst_150 = arith.constant dense<0.000000e+00> : vector<1xf32>
    %387 = vector.multi_reduction <add>, %386, %cst_150 [1] : vector<1x16xf32> to vector<1xf32>
    %388 = vector.shape_cast %387 : vector<1xf32> to vector<1x1xf32>
    %389 = vector.broadcast %388 : vector<1x1xf32> to vector<1x16xf32>
    %390 = arith.divf %386, %389 : vector<1x16xf32>
    %391 = vector.broadcast %47 : vector<1x32xf32> to vector<16x32xf32>
    %392 = arith.mulf %349, %391 : vector<16x32xf32>
    %cst_151 = arith.constant dense<0.000000e+00> : vector<1x32xf32>
    %393 = tpu.matmul %390, %392, %cst_151 {dimension_numbers = #tpu.dot_dimension_numbers<[1], [0], [0], [1], [0, 0, 1, 1], [], []>} : vector<1x16xf32>, vector<16x32xf32>, vector<1x32xf32> -> vector<1x32xf32>
    %394 = arith.addf %373, %393 : vector<1x32xf32>
    %cst_152 = arith.constant dense<0.000000e+00> : vector<1x32xf32>
    %395 = tpu.matmul %394, %6, %cst_152 {dimension_numbers = #tpu.dot_dimension_numbers<[1], [0], [0], [1], [0, 0, 1, 1], [], []>} : vector<1x32xf32>, vector<32x32xf32>, vector<1x32xf32> -> vector<1x32xf32>
    %396 = arith.addf %326, %395 : vector<1x32xf32>
    %397 = arith.mulf %396, %396 : vector<1x32xf32>
    %cst_153 = arith.constant dense<0.000000e+00> : vector<1xf32>
    %398 = vector.multi_reduction <add>, %397, %cst_153 [1] : vector<1x32xf32> to vector<1xf32>
    %399 = vector.shape_cast %398 : vector<1xf32> to vector<1x1xf32>
    %cst_154 = arith.constant 3.200000e+01 : f32
    %400 = vector.broadcast %cst_154 : f32 to vector<1x1xf32>
    %401 = arith.divf %399, %400 : vector<1x1xf32>
    %cst_155 = arith.constant 9.99999997E-7 : f32
    %402 = vector.broadcast %cst_155 : f32 to vector<1x1xf32>
    %403 = arith.addf %401, %402 : vector<1x1xf32>
    %404 = math.rsqrt %403 : vector<1x1xf32>
    %405 = vector.broadcast %404 : vector<1x1xf32> to vector<1x32xf32>
    %406 = arith.mulf %396, %405 : vector<1x32xf32>
    %407 = arith.mulf %406, %2 : vector<1x32xf32>
    %cst_156 = arith.constant dense<0.000000e+00> : vector<1x128xf32>
    %408 = tpu.matmul %407, %7, %cst_156 {dimension_numbers = #tpu.dot_dimension_numbers<[1], [0], [0], [1], [0, 0, 1, 1], [], []>} : vector<1x32xf32>, vector<32x128xf32>, vector<1x128xf32> -> vector<1x128xf32>
    %409 = vector.extract_strided_slice %408 {offsets = [0, 0], sizes = [1, 64], strides = [1, 1]} : vector<1x128xf32> to vector<1x64xf32>
    %410 = arith.negf %409 : vector<1x64xf32>
    %411 = math.exp %410 : vector<1x64xf32>
    %cst_157 = arith.constant 1.000000e+00 : f32
    %412 = vector.broadcast %cst_157 : f32 to vector<1x64xf32>
    %413 = arith.addf %412, %411 : vector<1x64xf32>
    %414 = arith.divf %412, %413 : vector<1x64xf32>
    %415 = arith.mulf %409, %414 : vector<1x64xf32>
    %416 = vector.extract_strided_slice %408 {offsets = [0, 64], sizes = [1, 64], strides = [1, 1]} : vector<1x128xf32> to vector<1x64xf32>
    %417 = arith.mulf %415, %416 : vector<1x64xf32>
    %cst_158 = arith.constant dense<0.000000e+00> : vector<1x32xf32>
    %418 = tpu.matmul %417, %8, %cst_158 {dimension_numbers = #tpu.dot_dimension_numbers<[1], [0], [0], [1], [0, 0, 1, 1], [], []>} : vector<1x64xf32>, vector<64x32xf32>, vector<1x32xf32> -> vector<1x32xf32>
    %419 = arith.addf %396, %418 : vector<1x32xf32>
    %420 = arith.mulf %419, %419 : vector<1x32xf32>
    %cst_159 = arith.constant dense<0.000000e+00> : vector<1xf32>
    %421 = vector.multi_reduction <add>, %420, %cst_159 [1] : vector<1x32xf32> to vector<1xf32>
    %422 = vector.shape_cast %421 : vector<1xf32> to vector<1x1xf32>
    %cst_160 = arith.constant 3.200000e+01 : f32
    %423 = vector.broadcast %cst_160 : f32 to vector<1x1xf32>
    %424 = arith.divf %422, %423 : vector<1x1xf32>
    %cst_161 = arith.constant 9.99999997E-7 : f32
    %425 = vector.broadcast %cst_161 : f32 to vector<1x1xf32>
    %426 = arith.addf %424, %425 : vector<1x1xf32>
    %427 = math.rsqrt %426 : vector<1x1xf32>
    %428 = vector.broadcast %427 : vector<1x1xf32> to vector<1x32xf32>
    %429 = arith.mulf %419, %428 : vector<1x32xf32>
    %430 = arith.mulf %429, %3 : vector<1x32xf32>
    %cst_162 = arith.constant dense<0.000000e+00> : vector<1x128xf32>
    %431 = tpu.matmul %430, %9, %cst_162 {dimension_numbers = #tpu.dot_dimension_numbers<[1], [0], [0], [1], [0, 0, 1, 1], [], []>} : vector<1x32xf32>, vector<32x128xf32>, vector<1x128xf32> -> vector<1x128xf32>
    %c64_i32_163 = arith.constant 64 : i32
    %432 = vector.broadcast %c64_i32_163 : i32 to vector<1x128xi32>
    %433 = arith.cmpi slt, %30, %432 : vector<1x128xi32>
    %cst_164 = arith.constant -1.000000e+30 : f32
    %434 = vector.broadcast %cst_164 : f32 to vector<1x128xf32>
    %435 = arith.select %433, %431, %434 : vector<1x128xi1>, vector<1x128xf32>
    %cst_165 = arith.constant dense<0xFF800000> : vector<1xf32>
    %436 = vector.multi_reduction <maximumf>, %435, %cst_165 [1] : vector<1x128xf32> to vector<1xf32>
    %437 = vector.shape_cast %436 : vector<1xf32> to vector<1x1xf32>
    %438 = vector.broadcast %437 : vector<1x1xf32> to vector<1x128xf32>
    %439 = arith.cmpf oge, %435, %438 : vector<1x128xf32>
    %440 = arith.sitofp %30 : vector<1x128xi32> to vector<1x128xf32>
    %cst_166 = arith.constant 1.280000e+02 : f32
    %441 = vector.broadcast %cst_166 : f32 to vector<1x128xf32>
    %442 = arith.select %439, %440, %441 : vector<1x128xi1>, vector<1x128xf32>
    %cst_167 = arith.constant dense<0x7F800000> : vector<1xf32>
    %443 = vector.multi_reduction <minimumf>, %442, %cst_167 [1] : vector<1x128xf32> to vector<1xf32>
    %444 = vector.shape_cast %443 : vector<1xf32> to vector<1x1xf32>
    %445 = arith.fptosi %444 : vector<1x1xf32> to vector<1x1xi32>
    %446 = vector.broadcast %437 : vector<1x1xf32> to vector<1x128xf32>
    %447 = arith.subf %435, %446 : vector<1x128xf32>
    %448 = math.exp %447 : vector<1x128xf32>
    %cst_168 = arith.constant dense<0.000000e+00> : vector<1xf32>
    %449 = vector.multi_reduction <add>, %448, %cst_168 [1] : vector<1x128xf32> to vector<1xf32>
    %450 = vector.shape_cast %449 : vector<1xf32> to vector<1x1xf32>
    %451 = tpu.reciprocal %450 {approx = true} : vector<1x1xf32> -> vector<1x1xf32>
    %cst_169 = arith.constant 1.000000e+00 : f32
    %452 = vector.broadcast %cst_169 : f32 to vector<1x1xf32>
    %453 = arith.minimumf %451, %452 : vector<1x1xf32>
    %454 = arith.sitofp %445 : vector<1x1xi32> to vector<1x1xf32>
    %455 = vector.shape_cast %454 : vector<1x1xf32> to vector<1x1xf32>
    %456 = vector.broadcast %455 : vector<1x1xf32> to vector<1x128xf32>
    %457 = vector.shape_cast %453 : vector<1x1xf32> to vector<1x1xf32>
    %458 = vector.broadcast %457 : vector<1x1xf32> to vector<1x128xf32>
    %459 = vector.broadcast %445 : vector<1x1xi32> to vector<1x64xi32>
    %460 = arith.cmpi eq, %31, %459 : vector<1x64xi32>
    %cst_170 = arith.constant 1.000000e+00 : f32
    %cst_171 = arith.constant 0.000000e+00 : f32
    %461 = vector.broadcast %cst_170 : f32 to vector<1x64xf32>
    %462 = vector.broadcast %cst_171 : f32 to vector<1x64xf32>
    %463 = arith.select %460, %461, %462 : vector<1x64xi1>, vector<1x64xf32>
    %cst_172 = arith.constant dense<0.000000e+00> : vector<1x32xf32>
    %464 = tpu.matmul %463, %4, %cst_172 {dimension_numbers = #tpu.dot_dimension_numbers<[1], [0], [0], [1], [0, 0, 1, 1], [], []>} : vector<1x64xf32>, vector<64x32xf32>, vector<1x32xf32> -> vector<1x32xf32>
    %c1_i32_173 = arith.constant 1 : i32
    %465 = arith.subi %0, %c1_i32_173 : i32
    %c3_i32 = arith.constant 3 : i32
    %466 = arith.addi %465, %c3_i32 : i32
    %467 = arith.mulf %464, %464 : vector<1x32xf32>
    %cst_174 = arith.constant dense<0.000000e+00> : vector<1xf32>
    %468 = vector.multi_reduction <add>, %467, %cst_174 [1] : vector<1x32xf32> to vector<1xf32>
    %469 = vector.shape_cast %468 : vector<1xf32> to vector<1x1xf32>
    %cst_175 = arith.constant 3.200000e+01 : f32
    %470 = vector.broadcast %cst_175 : f32 to vector<1x1xf32>
    %471 = arith.divf %469, %470 : vector<1x1xf32>
    %cst_176 = arith.constant 9.99999997E-7 : f32
    %472 = vector.broadcast %cst_176 : f32 to vector<1x1xf32>
    %473 = arith.addf %471, %472 : vector<1x1xf32>
    %474 = math.rsqrt %473 : vector<1x1xf32>
    %475 = vector.broadcast %474 : vector<1x1xf32> to vector<1x32xf32>
    %476 = arith.mulf %464, %475 : vector<1x32xf32>
    %477 = arith.mulf %476, %1 : vector<1x32xf32>
    %cst_177 = arith.constant dense<0.000000e+00> : vector<1x96xf32>
    %478 = tpu.matmul %477, %5, %cst_177 {dimension_numbers = #tpu.dot_dimension_numbers<[1], [0], [0], [1], [0, 0, 1, 1], [], []>} : vector<1x32xf32>, vector<32x96xf32>, vector<1x96xf32> -> vector<1x96xf32>
    %479 = vector.extract_strided_slice %478 {offsets = [0, 0], sizes = [1, 32], strides = [1, 1]} : vector<1x96xf32> to vector<1x32xf32>
    %480 = vector.extract_strided_slice %478 {offsets = [0, 32], sizes = [1, 32], strides = [1, 1]} : vector<1x96xf32> to vector<1x32xf32>
    %481 = vector.extract_strided_slice %478 {offsets = [0, 64], sizes = [1, 32], strides = [1, 1]} : vector<1x96xf32> to vector<1x32xf32>
    %482 = arith.index_cast %466 : i32 to index
    %c0_178 = arith.constant 0 : index
    %483 = vector.load %arg11[%482, %c0_178] : memref<16x32xf32, #tpu.memory_space<vmem>>, vector<1x32xf32>
    tpu.vector_store %arg11[%482, %c0_178], %480 {strides = array<i32>} : memref<16x32xf32, #tpu.memory_space<vmem>>, vector<1x32xf32>,
    %484 = arith.index_cast %466 : i32 to index
    %c0_179 = arith.constant 0 : index
    %485 = vector.load %arg12[%484, %c0_179] : memref<16x32xf32, #tpu.memory_space<vmem>>, vector<1x32xf32>
    tpu.vector_store %arg12[%484, %c0_179], %481 {strides = array<i32>} : memref<16x32xf32, #tpu.memory_space<vmem>>, vector<1x32xf32>,
    %c0_180 = arith.constant 0 : index
    %c0_181 = arith.constant 0 : index
    %486 = vector.load %arg11[%c0_180, %c0_181] : memref<16x32xf32, #tpu.memory_space<vmem>>, vector<16x32xf32>
    %c0_182 = arith.constant 0 : index
    %c0_183 = arith.constant 0 : index
    %487 = vector.load %arg12[%c0_182, %c0_183] : memref<16x32xf32, #tpu.memory_space<vmem>>, vector<16x32xf32>
    %488 = vector.broadcast %466 : i32 to vector<1x16xi32>
    %489 = arith.cmpi sle, %29, %488 : vector<1x16xi32>
    %cst_184 = arith.constant 0.000000e+00 : f32
    %490 = vector.broadcast %cst_184 : f32 to vector<1x32xf32>
    %491 = arith.mulf %479, %39 : vector<1x32xf32>
    %cst_185 = arith.constant dense<0.000000e+00> : vector<1x16xf32>
    %492 = tpu.matmul %491, %486, %cst_185 {dimension_numbers = #tpu.dot_dimension_numbers<[1], [1], [0], [0], [0, 0, 1, 0], [], []>} : vector<1x32xf32>, vector<16x32xf32>, vector<1x16xf32> -> vector<1x16xf32>
    %cst_186 = arith.constant 2.500000e-01 : f32
    %493 = vector.broadcast %cst_186 : f32 to vector<1x16xf32>
    %494 = arith.mulf %492, %493 : vector<1x16xf32>
    %cst_187 = arith.constant -1.000000e+30 : f32
    %495 = vector.broadcast %cst_187 : f32 to vector<1x16xf32>
    %496 = arith.select %489, %494, %495 : vector<1x16xi1>, vector<1x16xf32>
    %cst_188 = arith.constant dense<0xFF800000> : vector<1xf32>
    %497 = vector.multi_reduction <maximumf>, %496, %cst_188 [1] : vector<1x16xf32> to vector<1xf32>
    %cst_189 = arith.constant 0xFF800000 : f32
    %498 = vector.broadcast %cst_189 : f32 to vector<1xf32>
    %499 = arith.maximumf %498, %497 : vector<1xf32>
    %500 = vector.shape_cast %499 : vector<1xf32> to vector<1x1xf32>
    %501 = vector.broadcast %500 : vector<1x1xf32> to vector<1x16xf32>
    %502 = arith.subf %496, %501 : vector<1x16xf32>
    %503 = math.exp %502 : vector<1x16xf32>
    %cst_190 = arith.constant dense<0.000000e+00> : vector<1xf32>
    %504 = vector.multi_reduction <add>, %503, %cst_190 [1] : vector<1x16xf32> to vector<1xf32>
    %505 = vector.shape_cast %504 : vector<1xf32> to vector<1x1xf32>
    %506 = vector.broadcast %505 : vector<1x1xf32> to vector<1x16xf32>
    %507 = arith.divf %503, %506 : vector<1x16xf32>
    %508 = vector.broadcast %39 : vector<1x32xf32> to vector<16x32xf32>
    %509 = arith.mulf %487, %508 : vector<16x32xf32>
    %cst_191 = arith.constant dense<0.000000e+00> : vector<1x32xf32>
    %510 = tpu.matmul %507, %509, %cst_191 {dimension_numbers = #tpu.dot_dimension_numbers<[1], [0], [0], [1], [0, 0, 1, 1], [], []>} : vector<1x16xf32>, vector<16x32xf32>, vector<1x32xf32> -> vector<1x32xf32>
    %511 = arith.addf %490, %510 : vector<1x32xf32>
    %512 = arith.mulf %479, %47 : vector<1x32xf32>
    %cst_192 = arith.constant dense<0.000000e+00> : vector<1x16xf32>
    %513 = tpu.matmul %512, %486, %cst_192 {dimension_numbers = #tpu.dot_dimension_numbers<[1], [1], [0], [0], [0, 0, 1, 0], [], []>} : vector<1x32xf32>, vector<16x32xf32>, vector<1x16xf32> -> vector<1x16xf32>
    %cst_193 = arith.constant 2.500000e-01 : f32
    %514 = vector.broadcast %cst_193 : f32 to vector<1x16xf32>
    %515 = arith.mulf %513, %514 : vector<1x16xf32>
    %cst_194 = arith.constant -1.000000e+30 : f32
    %516 = vector.broadcast %cst_194 : f32 to vector<1x16xf32>
    %517 = arith.select %489, %515, %516 : vector<1x16xi1>, vector<1x16xf32>
    %cst_195 = arith.constant dense<0xFF800000> : vector<1xf32>
    %518 = vector.multi_reduction <maximumf>, %517, %cst_195 [1] : vector<1x16xf32> to vector<1xf32>
    %cst_196 = arith.constant 0xFF800000 : f32
    %519 = vector.broadcast %cst_196 : f32 to vector<1xf32>
    %520 = arith.maximumf %519, %518 : vector<1xf32>
    %521 = vector.shape_cast %520 : vector<1xf32> to vector<1x1xf32>
    %522 = vector.broadcast %521 : vector<1x1xf32> to vector<1x16xf32>
    %523 = arith.subf %517, %522 : vector<1x16xf32>
    %524 = math.exp %523 : vector<1x16xf32>
    %cst_197 = arith.constant dense<0.000000e+00> : vector<1xf32>
    %525 = vector.multi_reduction <add>, %524, %cst_197 [1] : vector<1x16xf32> to vector<1xf32>
    %526 = vector.shape_cast %525 : vector<1xf32> to vector<1x1xf32>
    %527 = vector.broadcast %526 : vector<1x1xf32> to vector<1x16xf32>
    %528 = arith.divf %524, %527 : vector<1x16xf32>
    %529 = vector.broadcast %47 : vector<1x32xf32> to vector<16x32xf32>
    %530 = arith.mulf %487, %529 : vector<16x32xf32>
    %cst_198 = arith.constant dense<0.000000e+00> : vector<1x32xf32>
    %531 = tpu.matmul %528, %530, %cst_198 {dimension_numbers = #tpu.dot_dimension_numbers<[1], [0], [0], [1], [0, 0, 1, 1], [], []>} : vector<1x16xf32>, vector<16x32xf32>, vector<1x32xf32> -> vector<1x32xf32>
    %532 = arith.addf %511, %531 : vector<1x32xf32>
    %cst_199 = arith.constant dense<0.000000e+00> : vector<1x32xf32>
    %533 = tpu.matmul %532, %6, %cst_199 {dimension_numbers = #tpu.dot_dimension_numbers<[1], [0], [0], [1], [0, 0, 1, 1], [], []>} : vector<1x32xf32>, vector<32x32xf32>, vector<1x32xf32> -> vector<1x32xf32>
    %534 = arith.addf %464, %533 : vector<1x32xf32>
    %535 = arith.mulf %534, %534 : vector<1x32xf32>
    %cst_200 = arith.constant dense<0.000000e+00> : vector<1xf32>
    %536 = vector.multi_reduction <add>, %535, %cst_200 [1] : vector<1x32xf32> to vector<1xf32>
    %537 = vector.shape_cast %536 : vector<1xf32> to vector<1x1xf32>
    %cst_201 = arith.constant 3.200000e+01 : f32
    %538 = vector.broadcast %cst_201 : f32 to vector<1x1xf32>
    %539 = arith.divf %537, %538 : vector<1x1xf32>
    %cst_202 = arith.constant 9.99999997E-7 : f32
    %540 = vector.broadcast %cst_202 : f32 to vector<1x1xf32>
    %541 = arith.addf %539, %540 : vector<1x1xf32>
    %542 = math.rsqrt %541 : vector<1x1xf32>
    %543 = vector.broadcast %542 : vector<1x1xf32> to vector<1x32xf32>
    %544 = arith.mulf %534, %543 : vector<1x32xf32>
    %545 = arith.mulf %544, %2 : vector<1x32xf32>
    %cst_203 = arith.constant dense<0.000000e+00> : vector<1x128xf32>
    %546 = tpu.matmul %545, %7, %cst_203 {dimension_numbers = #tpu.dot_dimension_numbers<[1], [0], [0], [1], [0, 0, 1, 1], [], []>} : vector<1x32xf32>, vector<32x128xf32>, vector<1x128xf32> -> vector<1x128xf32>
    %547 = vector.extract_strided_slice %546 {offsets = [0, 0], sizes = [1, 64], strides = [1, 1]} : vector<1x128xf32> to vector<1x64xf32>
    %548 = arith.negf %547 : vector<1x64xf32>
    %549 = math.exp %548 : vector<1x64xf32>
    %cst_204 = arith.constant 1.000000e+00 : f32
    %550 = vector.broadcast %cst_204 : f32 to vector<1x64xf32>
    %551 = arith.addf %550, %549 : vector<1x64xf32>
    %552 = arith.divf %550, %551 : vector<1x64xf32>
    %553 = arith.mulf %547, %552 : vector<1x64xf32>
    %554 = vector.extract_strided_slice %546 {offsets = [0, 64], sizes = [1, 64], strides = [1, 1]} : vector<1x128xf32> to vector<1x64xf32>
    %555 = arith.mulf %553, %554 : vector<1x64xf32>
    %cst_205 = arith.constant dense<0.000000e+00> : vector<1x32xf32>
    %556 = tpu.matmul %555, %8, %cst_205 {dimension_numbers = #tpu.dot_dimension_numbers<[1], [0], [0], [1], [0, 0, 1, 1], [], []>} : vector<1x64xf32>, vector<64x32xf32>, vector<1x32xf32> -> vector<1x32xf32>
    %557 = arith.addf %534, %556 : vector<1x32xf32>
    %558 = arith.mulf %557, %557 : vector<1x32xf32>
    %cst_206 = arith.constant dense<0.000000e+00> : vector<1xf32>
    %559 = vector.multi_reduction <add>, %558, %cst_206 [1] : vector<1x32xf32> to vector<1xf32>
    %560 = vector.shape_cast %559 : vector<1xf32> to vector<1x1xf32>
    %cst_207 = arith.constant 3.200000e+01 : f32
    %561 = vector.broadcast %cst_207 : f32 to vector<1x1xf32>
    %562 = arith.divf %560, %561 : vector<1x1xf32>
    %cst_208 = arith.constant 9.99999997E-7 : f32
    %563 = vector.broadcast %cst_208 : f32 to vector<1x1xf32>
    %564 = arith.addf %562, %563 : vector<1x1xf32>
    %565 = math.rsqrt %564 : vector<1x1xf32>
    %566 = vector.broadcast %565 : vector<1x1xf32> to vector<1x32xf32>
    %567 = arith.mulf %557, %566 : vector<1x32xf32>
    %568 = arith.mulf %567, %3 : vector<1x32xf32>
    %cst_209 = arith.constant dense<0.000000e+00> : vector<1x128xf32>
    %569 = tpu.matmul %568, %9, %cst_209 {dimension_numbers = #tpu.dot_dimension_numbers<[1], [0], [0], [1], [0, 0, 1, 1], [], []>} : vector<1x32xf32>, vector<32x128xf32>, vector<1x128xf32> -> vector<1x128xf32>
    %c64_i32_210 = arith.constant 64 : i32
    %570 = vector.broadcast %c64_i32_210 : i32 to vector<1x128xi32>
    %571 = arith.cmpi slt, %30, %570 : vector<1x128xi32>
    %cst_211 = arith.constant -1.000000e+30 : f32
    %572 = vector.broadcast %cst_211 : f32 to vector<1x128xf32>
    %573 = arith.select %571, %569, %572 : vector<1x128xi1>, vector<1x128xf32>
    %cst_212 = arith.constant dense<0xFF800000> : vector<1xf32>
    %574 = vector.multi_reduction <maximumf>, %573, %cst_212 [1] : vector<1x128xf32> to vector<1xf32>
    %575 = vector.shape_cast %574 : vector<1xf32> to vector<1x1xf32>
    %576 = vector.broadcast %575 : vector<1x1xf32> to vector<1x128xf32>
    %577 = arith.cmpf oge, %573, %576 : vector<1x128xf32>
    %578 = arith.sitofp %30 : vector<1x128xi32> to vector<1x128xf32>
    %cst_213 = arith.constant 1.280000e+02 : f32
    %579 = vector.broadcast %cst_213 : f32 to vector<1x128xf32>
    %580 = arith.select %577, %578, %579 : vector<1x128xi1>, vector<1x128xf32>
    %cst_214 = arith.constant dense<0x7F800000> : vector<1xf32>
    %581 = vector.multi_reduction <minimumf>, %580, %cst_214 [1] : vector<1x128xf32> to vector<1xf32>
    %582 = vector.shape_cast %581 : vector<1xf32> to vector<1x1xf32>
    %583 = arith.fptosi %582 : vector<1x1xf32> to vector<1x1xi32>
    %584 = vector.broadcast %575 : vector<1x1xf32> to vector<1x128xf32>
    %585 = arith.subf %573, %584 : vector<1x128xf32>
    %586 = math.exp %585 : vector<1x128xf32>
    %cst_215 = arith.constant dense<0.000000e+00> : vector<1xf32>
    %587 = vector.multi_reduction <add>, %586, %cst_215 [1] : vector<1x128xf32> to vector<1xf32>
    %588 = vector.shape_cast %587 : vector<1xf32> to vector<1x1xf32>
    %589 = tpu.reciprocal %588 {approx = true} : vector<1x1xf32> -> vector<1x1xf32>
    %cst_216 = arith.constant 1.000000e+00 : f32
    %590 = vector.broadcast %cst_216 : f32 to vector<1x1xf32>
    %591 = arith.minimumf %589, %590 : vector<1x1xf32>
    %592 = arith.sitofp %583 : vector<1x1xi32> to vector<1x1xf32>
    %593 = vector.shape_cast %592 : vector<1x1xf32> to vector<1x1xf32>
    %594 = vector.broadcast %593 : vector<1x1xf32> to vector<1x128xf32>
    %595 = vector.shape_cast %591 : vector<1x1xf32> to vector<1x1xf32>
    %596 = vector.broadcast %595 : vector<1x1xf32> to vector<1x128xf32>
    %597 = tpu.concatenate %180, %318, %456, %594, %182, %320, %458, %596 in 0 : vector<1x128xf32>, vector<1x128xf32>, vector<1x128xf32>, vector<1x128xf32>, vector<1x128xf32>, vector<1x128xf32>, vector<1x128xf32>, vector<1x128xf32> -> vector<8x128xf32>
    %c0_217 = arith.constant 0 : index
    %c0_218 = arith.constant 0 : index
    %598 = vector.load %arg10[%c0_217, %c0_218] : memref<8x128xf32, #tpu.memory_space<vmem>>, vector<8x128xf32>
    tpu.vector_store %arg10[%c0_217, %c0_218], %597 {strides = array<i32>} : memref<8x128xf32, #tpu.memory_space<vmem>>, vector<8x128xf32>,
    return
  }
  func.func @transform_0(%arg0: i32, %arg1: memref<1xi32, #tpu.memory_space<smem>>) -> (i32, i32) {
    %c0_i32 = arith.constant 0 : i32
    %c0_i32_0 = arith.constant 0 : i32
    %c0_i32_1 = arith.constant 0 : i32
    return %c0_i32, %c0_i32_0 : i32, i32
  }
  func.func @transform_1(%arg0: i32, %arg1: memref<1xi32, #tpu.memory_space<smem>>) -> (i32, i32) {
    %c0_i32 = arith.constant 0 : i32
    %c0_i32_0 = arith.constant 0 : i32
    %c0_i32_1 = arith.constant 0 : i32
    return %c0_i32, %c0_i32_0 : i32, i32
  }
  func.func @transform_2(%arg0: i32, %arg1: memref<1xi32, #tpu.memory_space<smem>>) -> (i32, i32) {
    %c0_i32 = arith.constant 0 : i32
    %c0_i32_0 = arith.constant 0 : i32
    %c0_i32_1 = arith.constant 0 : i32
    return %c0_i32, %c0_i32_0 : i32, i32
  }
  func.func @transform_3(%arg0: i32, %arg1: memref<1xi32, #tpu.memory_space<smem>>) -> (i32, i32) {
    %c0_i32 = arith.constant 0 : i32
    %c0_i32_0 = arith.constant 0 : i32
    %c0_i32_1 = arith.constant 0 : i32
    return %c0_i32, %c0_i32_0 : i32, i32
  }
  func.func @transform_4(%arg0: i32, %arg1: memref<1xi32, #tpu.memory_space<smem>>) -> (i32, i32) {
    %c0_i32 = arith.constant 0 : i32
    %c0_i32_0 = arith.constant 0 : i32
    %c0_i32_1 = arith.constant 0 : i32
    return %c0_i32, %c0_i32_0 : i32, i32
  }
  func.func @transform_5(%arg0: i32, %arg1: memref<1xi32, #tpu.memory_space<smem>>) -> (i32, i32) {
    %c0_i32 = arith.constant 0 : i32
    %c0_i32_0 = arith.constant 0 : i32
    %c0_i32_1 = arith.constant 0 : i32
    return %c0_i32, %c0_i32_0 : i32, i32
  }
  func.func @transform_6(%arg0: i32, %arg1: memref<1xi32, #tpu.memory_space<smem>>) -> (i32, i32) {
    %c0_i32 = arith.constant 0 : i32
    %c0_i32_0 = arith.constant 0 : i32
    %c0_i32_1 = arith.constant 0 : i32
    return %c0_i32, %c0_i32_0 : i32, i32
  }
  func.func @transform_7(%arg0: i32, %arg1: memref<1xi32, #tpu.memory_space<smem>>) -> (i32, i32) {
    %c0_i32 = arith.constant 0 : i32
    %c0_i32_0 = arith.constant 0 : i32
    %c0_i32_1 = arith.constant 0 : i32
    return %c0_i32, %c0_i32_0 : i32, i32
  }
  func.func @transform_8(%arg0: i32, %arg1: memref<1xi32, #tpu.memory_space<smem>>) -> (i32, i32) {
    %c0_i32 = arith.constant 0 : i32
    %c0_i32_0 = arith.constant 0 : i32
    %c0_i32_1 = arith.constant 0 : i32
    return %c0_i32, %c0_i32_0 : i32, i32
  }
}

</mosaic_0001>

<llo_original>
// kernel: tpu_custom_call.1
$region0: #{tpu_custom_call.1}
  #allocation0 [shape = 'u32[]', space=smem, size = 0x4, offset = 0x4, fixed_abs, tag = 'smem constant byte address 0x4 - core index']
  #allocation1 [shape = 'u32[144,128]{1,0:T(1,128)}', space=vmem, size = 0x12000, scoped, tag = 'internal scratch']
  #allocation2 [shape = 'f32[16,32]{1,0:T(8,128)}', space=vmem, size = 0x2000, scoped, tag = 'scratch operand']
  #allocation3 [shape = 'f32[16,32]{1,0:T(8,128)}', space=vmem, size = 0x2000, scoped, tag = 'scratch operand']
  #allocation4 [shape = 's32[1]{0}', space=sflag, size = 0x4, scoped, tag = 'scoped memory for tpu_custom_call.1']
  #allocation5 [shape = 's32[1]{0:T(128)S(6)}', space=smem, size = 0x200, scoped, tag = 'prefetched SMEM operand 0']
  %s0 = inlined_call_operand.<no memory space> [shape: s32[1], index: 0, kind: input, shape index: {}]
  %s1 = inlined_call_operand.vmem [shape: f32[16,32], index: 1, kind: input, shape index: {}]
  %s2 = inlined_call_operand.vmem [shape: f32[64,32], index: 2, kind: input, shape index: {}]
  %s3 = inlined_call_operand.vmem [shape: f32[32,96], index: 3, kind: input, shape index: {}]
  %s4 = inlined_call_operand.vmem [shape: f32[32,32], index: 4, kind: input, shape index: {}]
  %s5 = inlined_call_operand.vmem [shape: f32[32,128], index: 5, kind: input, shape index: {}]
  %s6 = inlined_call_operand.vmem [shape: f32[64,32], index: 6, kind: input, shape index: {}]
  %s7 = inlined_call_operand.vmem [shape: f32[3,32], index: 7, kind: input, shape index: {}]
  %s8 = inlined_call_operand.vmem [shape: f32[32,128], index: 8, kind: input, shape index: {}]
  %s9 = inlined_call_operand.hbm [shape: f32[8,128], index: 9, kind: output, shape index: {}]
  %s10 = sld [smem:[#allocation0]]
  $region42: #{tpu_custom_call.1} parent=0
    _
  %s12 = ssub.s32 1, %s10
  %s13 = scalar_select 0, %s12, %s10
  %14 = sst [smem:[#allocation5]] %s0
  $region1: #{tpu_custom_call.1} parent=0
    #allocation6 [shape = 'u8[4096]{0}', space=vmem, size = 0x1000, scoped, tag = 'output window, operand 0, single buffered']
    #allocation7 [shape = 's32[1]{0}', space=sflag, size = 0x4, scoped, tag = 'scoped memory for tpu_custom_call.1']
    %15 = vsyncpa [#allocation7], 0
    // Predicated region
    $region2: #{tpu_custom_call.1} parent=1 // pred_check
      _
    $region3: #{tpu_custom_call.1} parent=1 // pred_check_branch
      %17 = sbr.rel (0) target = $region5
    $region4: #{tpu_custom_call.1} parent=1 // pred_region
      _
    $region5: #{tpu_custom_call.1} parent=1 // pred_fallthru
      _
    // Predicated region
    $region6: #{tpu_custom_call.1} parent=1 // pred_check
      _
    $region7: #{tpu_custom_call.1} parent=1 // pred_check_branch
      %19 = sbr.rel (0) target = $region9
    $region8: #{tpu_custom_call.1} parent=1 // pred_region
      _
    $region9: #{tpu_custom_call.1} parent=1 // pred_fallthru
      _
    // Predicated region
    $region10: #{tpu_custom_call.1} parent=1 // pred_check
      _
    $region11: #{tpu_custom_call.1} parent=1 // pred_check_branch
      %21 = sbr.rel (0) target = $region13
    $region12: #{tpu_custom_call.1} parent=1 // pred_region
      _
    $region13: #{tpu_custom_call.1} parent=1 // pred_fallthru
      _
    // Predicated region
    $region14: #{tpu_custom_call.1} parent=1 // pred_check
      _
    $region15: #{tpu_custom_call.1} parent=1 // pred_check_branch
      %23 = sbr.rel (0) target = $region17
    $region16: #{tpu_custom_call.1} parent=1 // pred_region
      _
    $region17: #{tpu_custom_call.1} parent=1 // pred_fallthru
      _
    // Predicated region
    $region18: #{tpu_custom_call.1} parent=1 // pred_check
      _
    $region19: #{tpu_custom_call.1} parent=1 // pred_check_branch
      %25 = sbr.rel (0) target = $region21
    $region20: #{tpu_custom_call.1} parent=1 // pred_region
      _
    $region21: #{tpu_custom_call.1} parent=1 // pred_fallthru
      _
    // Predicated region
    $region22: #{tpu_custom_call.1} parent=1 // pred_check
      _
    $region23: #{tpu_custom_call.1} parent=1 // pred_check_branch
      %27 = sbr.rel (0) target = $region25
    $region24: #{tpu_custom_call.1} parent=1 // pred_region
      _
    $region25: #{tpu_custom_call.1} parent=1 // pred_fallthru
      _
    // Predicated region
    $region26: #{tpu_custom_call.1} parent=1 // pred_check
      _
    $region27: #{tpu_custom_call.1} parent=1 // pred_check_branch
      %29 = sbr.rel (0) target = $region29
    $region28: #{tpu_custom_call.1} parent=1 // pred_region
      _
    $region29: #{tpu_custom_call.1} parent=1 // pred_fallthru
      _
    // Predicated region
    $region30: #{tpu_custom_call.1} parent=1 // pred_check
      _
    $region31: #{tpu_custom_call.1} parent=1 // pred_check_branch
      %31 = sbr.rel (0) target = $region33
    $region32: #{tpu_custom_call.1} parent=1 // pred_region
      _
    $region33: #{tpu_custom_call.1} parent=1 // pred_fallthru
      _
    %s32 = sld [smem:[#allocation5]]
    %v33 = vld [vmem:[%s7] sm:$0x1]
    %v34 = vld [vmem:[%s7 + $0x1] sm:$0x1]
    %v35 = vld [vmem:[%s7 + $0x2] sm:$0x1]
    %v36 = vld [vmem:[%s2] sm:$0xff]
    %v37 = vld [vmem:[%s2 + $0x8] sm:$0xff]
    %v38 = vld [vmem:[%s2 + $0x10] sm:$0xff]
    %v39 = vld [vmem:[%s2 + $0x18] sm:$0xff]
    %v40 = vld [vmem:[%s2 + $0x20] sm:$0xff]
    %v41 = vld [vmem:[%s2 + $0x28] sm:$0xff]
    %v42 = vld [vmem:[%s2 + $0x30] sm:$0xff]
    %v43 = vld [vmem:[%s2 + $0x38] sm:$0xff]
    %v44 = vld [vmem:[%s3] sm:$0xff]
    %v45 = vld [vmem:[%s3 + $0x8] sm:$0xff]
    %v46 = vld [vmem:[%s3 + $0x10] sm:$0xff]
    %v47 = vld [vmem:[%s3 + $0x18] sm:$0xff]
    %v48 = vld [vmem:[%s4] sm:$0xff]
    %v49 = vld [vmem:[%s4 + $0x8] sm:$0xff]
    %v50 = vld [vmem:[%s4 + $0x10] sm:$0xff]
    %v51 = vld [vmem:[%s4 + $0x18] sm:$0xff]
    %v52 = vld [vmem:[%s5] sm:$0xff]
    %v53 = vld [vmem:[%s5 + $0x8] sm:$0xff]
    %v54 = vld [vmem:[%s5 + $0x10] sm:$0xff]
    %v55 = vld [vmem:[%s5 + $0x18] sm:$0xff]
    %v56 = vld [vmem:[%s6] sm:$0xff]
    %v57 = vld [vmem:[%s6 + $0x8] sm:$0xff]
    %v58 = vld [vmem:[%s6 + $0x10] sm:$0xff]
    %v59 = vld [vmem:[%s6 + $0x18] sm:$0xff]
    %v60 = vld [vmem:[%s6 + $0x20] sm:$0xff]
    %v61 = vld [vmem:[%s6 + $0x28] sm:$0xff]
    %v62 = vld [vmem:[%s6 + $0x30] sm:$0xff]
    %v63 = vld [vmem:[%s6 + $0x38] sm:$0xff]
    %v64 = vld [vmem:[%s8] sm:$0xff]
    %v65 = vld [vmem:[%s8 + $0x8] sm:$0xff]
    %v66 = vld [vmem:[%s8 + $0x10] sm:$0xff]
    %v67 = vld [vmem:[%s8 + $0x18] sm:$0xff]
    %v68 = vld [vmem:[%s1] sm:$0xff]
    %v69 = vld [vmem:[%s1 + $0x8] sm:$0xff]
    %v70 = vmul.f32 %v68, %v68
    %v71 = vmul.f32 %v69, %v69
    %vm72 = vcmask 261120
    %v73 = vsel %vm72, %v70, 0.0
    %74 = vadd.xlane.f32.xlu0 %v73
    %v75 = vpop.xlane.xlu0 %74
    %v76 = vsel %vm72, %v71, 0.0
    %77 = vadd.xlane.f32.xlu0 %v76
    %v78 = vpop.xlane.xlu0 %77
    %v79 = vrcp.pop 32.0
    %v80 = vmul.f32 %v75, %v79
    %v81 = vmul.f32 %v78, %v79
    %v82 = vadd.f32 %v80, 1e-06
    %v83 = vadd.f32 %v81, 1e-06
    %v84 = vrsqrt.pop %v82
    %v85 = vrsqrt.pop %v83
    %v86 = vmul.f32 %v68, %v84
    %v87 = vmul.f32 %v69, %v85
    %v88 = vlaneseq
    %v89 = vshrl.u32 %v88, 7
    %v90 = vsub.s32 0, %v89
    %v91 = vrot.slane %v33, %v90
    %v92 = vmul.f32 %v86, %v91
    %v93 = vmul.f32 %v87, %v91
    %v95 = vsel %vm72, %v92, 0
    %v98 = vsel %vm72, %v93, 0
    %100 = vmatprep.subr.mxu0 0.0
    %101 = vmatpush1.msra.mxu0 %v44
    %102 = vmatprep.subr.mxu0 0.0
    %103 = vmatpush1.msra.mxu0 %v45
    %104 = vmatprep.subr.mxu0 0.0
    %105 = vmatpush1.msra.mxu0 %v46
    %106 = vmatprep.subr.mxu0 0.0
    %107 = vmatpush1.msra.mxu0 %v47
    %108 = vmatprep.subr.mxu0 0.0
    %109 = vmatpush1.msra.mxu0 0.0
    %110 = vmatprep.subr.mxu0 0.0
    %111 = vmatpush1.msra.mxu0 0.0
    %112 = vmatprep.subr.mxu0 0.0
    %113 = vmatpush1.msra.mxu0 0.0
    %114 = vmatprep.subr.mxu0 0.0
    %115 = vmatpush1.msra.mxu0 0.0
    %116 = vmatprep.subr.mxu0 0.0
    %117 = vmatpush1.msra.mxu0 0.0
    %118 = vmatprep.subr.mxu0 0.0
    %119 = vmatpush1.msra.mxu0 0.0
    %120 = vmatprep.subr.mxu0 0.0
    %121 = vmatpush1.msra.mxu0 0.0
    %122 = vmatprep.subr.mxu0 0.0
    %123 = vmatpush1.msra.mxu0 0.0
    %124 = vmatprep.subr.mxu0 0.0
    %125 = vmatpush1.msra.mxu0 0.0
    %126 = vmatprep.subr.mxu0 0.0
    %127 = vmatpush1.msra.mxu0 0.0
    %128 = vmatprep.subr.mxu0 0.0
    %129 = vmatpush1.msra.mxu0 0.0
    %130 = vmatprep.subr.mxu0 0.0
    %131 = vmatpush1.msra.mxu0 0.0
    %132 = vmatprep.subr.mxu0 0.0
    %133 = vmatpush1.msra.mxu0 0.0
    %134 = vmatprep.subr.mxu0 0.0
    %135 = vmatpush1.msra.mxu0 0.0
    %136 = vmatprep.subr.mxu0 0.0
    %137 = vmatpush1.msra.mxu0 0.0
    %138 = vmatprep.subr.mxu0 0.0
    %139 = vmatpush1.msra.mxu0 0.0
    %140 = vmatprep.subr.mxu0 0.0
    %141 = vmatpush1.msra.mxu0 0.0
    %142 = vmatprep.subr.mxu0 0.0
    %143 = vmatpush1.msra.mxu0 0.0
    %144 = vmatprep.subr.mxu0 0.0
    %145 = vmatpush1.msra.mxu0 0.0
    %146 = vmatprep.subr.mxu0 0.0
    %147 = vmatpush1.msra.mxu0 0.0
    %148 = vmatprep.subr.mxu0 0.0
    %149 = vmatpush1.msra.mxu0 0.0
    %150 = vmatprep.subr.mxu0 0.0
    %151 = vmatpush1.msra.mxu0 0.0
    %152 = vmatprep.subr.mxu0 0.0
    %153 = vmatpush1.msra.mxu0 0.0
    %154 = vmatprep.subr.mxu0 0.0
    %155 = vmatpush1.msra.mxu0 0.0
    %156 = vmatprep.subr.mxu0 0.0
    %157 = vmatpush1.msra.mxu0 0.0
    %158 = vmatprep.subr.mxu0 0.0
    %159 = vmatpush1.msra.mxu0 0.0
    %160 = vmatprep.subr.mxu0 0.0
    %161 = vmatpush1.msra.mxu0 0.0
    %162 = vmatprep.subr.mxu0 0.0
    %163 = vmatpush1.msra.mxu0 0.0
    %164 = vmatprep.mubr.f32.mxu0 0.0
    %165 = vmatmul.mubr.f32.gmra.mrb[0].mxu0 %v95
    %v166 = vpop.f32.mrb[0].mxu0
    %v167 = vadd.f32 0.0, %v166
    %v168 = vpop.f32.mrb[0].mxu0
    %169 = vmatprep.mubr.f32.mxu0 0.0
    %170 = vmatmul.mubr.f32.gmra.mrb[0].mxu0 %v98
    %v171 = vpop.f32.mrb[0].mxu0
    %v172 = vadd.f32 0.0, %v171
    %v173 = vpop.f32.mrb[0].mxu0
    %174 = vdwg.mxu0
    %177 = vrot.lane.b32.xlu0 %v167, 96
    %v178 = vpop.permute.xlu0 %177
    %179 = vrot.lane.b32.xlu0 %v172, 96
    %v180 = vpop.permute.xlu0 %179
    %183 = vst.msk [vmem:[#allocation2] sm:$0xff] %vm72, %v178
    %184 = vst.msk [vmem:[#allocation2 + $0x8] sm:$0xff] %vm72, %v180
    %185 = vrot.lane.b32.xlu0 %v167, 64
    %v186 = vpop.permute.xlu0 %185
    %187 = vrot.lane.b32.xlu0 %v172, 64
    %v188 = vpop.permute.xlu0 %187
    %191 = vst.msk [vmem:[#allocation3] sm:$0xff] %vm72, %v186
    %192 = vst.msk [vmem:[#allocation3 + $0x8] sm:$0xff] %vm72, %v188
    %v193 = vlaneseq
    %v194 = vand.u32 %v193, 127
    %vm195 = vcmp.ge.s32.totalorder %v194, 0
    %vm196 = vcmp.lt.s32.totalorder %v194, 16
    %vm197 = vmand %vm195, %vm196
    %v198 = vsel %vm197, 1.0, 0.0
    %vm199 = vcmp.ge.s32.totalorder %v194, 16
    %vm200 = vcmp.lt.s32.totalorder %v194, 32
    %vm201 = vmand %vm199, %vm200
    %v202 = vsel %vm201, 1.0, 0.0
    %s203 = ssub.s32 %s32, 1
    %s204 = scalar_lea.vmem %s1, %s203
    %v205 = vld [vmem:[%s204] sm:$0x1]
    %v206 = vmul.f32 %v205, %v205
    %vm207 = vcmask 253952
    %v208 = vsel %vm207, %v206, 0.0
    %209 = vadd.xlane.f32.xlu0 %v208
    %v210 = vpop.xlane.xlu0 %209
    %v211 = vmul.f32 %v210, %v79
    %v212 = vadd.f32 %v211, 1e-06
    %v213 = vrsqrt.pop %v212
    %v214 = vmul.f32 %v205, %v213
    %v215 = vmul.f32 %v214, %v33
    %v217 = vsel %vm72, %v215, 0
    %219 = vmatprep.subr.mxu0 0.0
    %220 = vmatpush1.msra.mxu0 %v44
    %221 = vmatprep.subr.mxu0 0.0
    %222 = vmatpush1.msra.mxu0 %v45
    %223 = vmatprep.subr.mxu0 0.0
    %224 = vmatpush1.msra.mxu0 %v46
    %225 = vmatprep.subr.mxu0 0.0
    %226 = vmatpush1.msra.mxu0 %v47
    %227 = vmatprep.subr.mxu0 0.0
    %228 = vmatpush1.msra.mxu0 0.0
    %229 = vmatprep.subr.mxu0 0.0
    %230 = vmatpush1.msra.mxu0 0.0
    %231 = vmatprep.subr.mxu0 0.0
    %232 = vmatpush1.msra.mxu0 0.0
    %233 = vmatprep.subr.mxu0 0.0
    %234 = vmatpush1.msra.mxu0 0.0
    %235 = vmatprep.subr.mxu0 0.0
    %236 = vmatpush1.msra.mxu0 0.0
    %237 = vmatprep.subr.mxu0 0.0
    %238 = vmatpush1.msra.mxu0 0.0
    %239 = vmatprep.subr.mxu0 0.0
    %240 = vmatpush1.msra.mxu0 0.0
    %241 = vmatprep.subr.mxu0 0.0
    %242 = vmatpush1.msra.mxu0 0.0
    %243 = vmatprep.subr.mxu0 0.0
    %244 = vmatpush1.msra.mxu0 0.0
    %245 = vmatprep.subr.mxu0 0.0
    %246 = vmatpush1.msra.mxu0 0.0
    %247 = vmatprep.subr.mxu0 0.0
    %248 = vmatpush1.msra.mxu0 0.0
    %249 = vmatprep.subr.mxu0 0.0
    %250 = vmatpush1.msra.mxu0 0.0
    %251 = vmatprep.subr.mxu0 0.0
    %252 = vmatpush1.msra.mxu0 0.0
    %253 = vmatprep.subr.mxu0 0.0
    %254 = vmatpush1.msra.mxu0 0.0
    %255 = vmatprep.subr.mxu0 0.0
    %256 = vmatpush1.msra.mxu0 0.0
    %257 = vmatprep.subr.mxu0 0.0
    %258 = vmatpush1.msra.mxu0 0.0
    %259 = vmatprep.subr.mxu0 0.0
    %260 = vmatpush1.msra.mxu0 0.0
    %261 = vmatprep.subr.mxu0 0.0
    %262 = vmatpush1.msra.mxu0 0.0
    %263 = vmatprep.subr.mxu0 0.0
    %264 = vmatpush1.msra.mxu0 0.0
    %265 = vmatprep.subr.mxu0 0.0
    %266 = vmatpush1.msra.mxu0 0.0
    %267 = vmatprep.subr.mxu0 0.0
    %268 = vmatpush1.msra.mxu0 0.0
    %269 = vmatprep.subr.mxu0 0.0
    %270 = vmatpush1.msra.mxu0 0.0
    %271 = vmatprep.subr.mxu0 0.0
    %272 = vmatpush1.msra.mxu0 0.0
    %273 = vmatprep.subr.mxu0 0.0
    %274 = vmatpush1.msra.mxu0 0.0
    %275 = vmatprep.subr.mxu0 0.0
    %276 = vmatpush1.msra.mxu0 0.0
    %277 = vmatprep.subr.mxu0 0.0
    %278 = vmatpush1.msra.mxu0 0.0
    %279 = vmatprep.subr.mxu0 0.0
    %280 = vmatpush1.msra.mxu0 0.0
    %281 = vmatprep.subr.mxu0 0.0
    %282 = vmatpush1.msra.mxu0 0.0
    %283 = vmatprep.mubr.f32.mxu0 0.0
    %284 = vmatmul.mubr.f32.gmra.mrb[0].mxu0 %v217
    %v285 = vpop.f32.mrb[0].mxu0
    %v286 = vadd.f32 0.0, %v285
    %v287 = vpop.f32.mrb[0].mxu0
    %288 = vdwg.mxu0
    %290 = vrot.lane.b32.xlu0 %v286, 96
    %v291 = vpop.permute.xlu0 %290
    %s293 = scalar_lea.vmem [#allocation2], %s203
    %294 = vst.msk [vmem:[%s293] sm:$0x1] %vm207, %v291
    %295 = vrot.lane.b32.xlu0 %v286, 64
    %v296 = vpop.permute.xlu0 %295
    %s298 = scalar_lea.vmem [#allocation3], %s203
    %299 = vst.msk [vmem:[%s298] sm:$0x1] %vm207, %v296
    %v300 = vld [vmem:[#allocation2] sm:$0xff]
    %v301 = vld [vmem:[#allocation2 + $0x8] sm:$0xff]
    %v302 = vld [vmem:[#allocation3] sm:$0xff]
    %v303 = vld [vmem:[#allocation3 + $0x8] sm:$0xff]
    %v304 = vstv %s203
    %vm305 = vcmp.le.s32.totalorder %v194, %v304
    %v306 = vmul.f32 %v286, %v198
    %v308 = vsel %vm72, %v306, 0
    %v311 = vsel %vm72, %v300, 0
    %v314 = vsel %vm72, %v301, 0
    %316 = vmatprep.subr.mxu0 0.0
    %317 = vmatpush1.xpose.msra.mxu0 %v311
    %318 = vmatprep.subr.mxu0 0.0
    %319 = vmatpush1.xpose.msra.mxu0 %v314
    %320 = vmatprep.subr.mxu0 0.0
    %321 = vmatpush1.xpose.msra.mxu0 0.0
    %322 = vmatprep.subr.mxu0 0.0
    %323 = vmatpush1.xpose.msra.mxu0 0.0
    %324 = vmatprep.subr.mxu0 0.0
    %325 = vmatpush1.xpose.msra.mxu0 0.0
    %326 = vmatprep.subr.mxu0 0.0
    %327 = vmatpush1.xpose.msra.mxu0 0.0
    %328 = vmatprep.subr.mxu0 0.0
    %329 = vmatpush1.xpose.msra.mxu0 0.0
    %330 = vmatprep.subr.mxu0 0.0
    %331 = vmatpush1.xpose.msra.mxu0 0.0
    %332 = vmatprep.subr.mxu0 0.0
    %333 = vmatpush1.xpose.msra.mxu0 0.0
    %334 = vmatprep.subr.mxu0 0.0
    %335 = vmatpush1.xpose.msra.mxu0 0.0
    %336 = vmatprep.subr.mxu0 0.0
    %337 = vmatpush1.xpose.msra.mxu0 0.0
    %338 = vmatprep.subr.mxu0 0.0
    %339 = vmatpush1.xpose.msra.mxu0 0.0
    %340 = vmatprep.subr.mxu0 0.0
    %341 = vmatpush1.xpose.msra.mxu0 0.0
    %342 = vmatprep.subr.mxu0 0.0
    %343 = vmatpush1.xpose.msra.mxu0 0.0
    %344 = vmatprep.subr.mxu0 0.0
    %345 = vmatpush1.xpose.msra.mxu0 0.0
    %346 = vmatprep.subr.mxu0 0.0
    %347 = vmatpush1.xpose.msra.mxu0 0.0
    %348 = vmatprep.subr.mxu0 0.0
    %349 = vmatpush1.xpose.msra.mxu0 0.0
    %350 = vmatprep.subr.mxu0 0.0
    %351 = vmatpush1.xpose.msra.mxu0 0.0
    %352 = vmatprep.subr.mxu0 0.0
    %353 = vmatpush1.xpose.msra.mxu0 0.0
    %354 = vmatprep.subr.mxu0 0.0
    %355 = vmatpush1.xpose.msra.mxu0 0.0
    %356 = vmatprep.subr.mxu0 0.0
    %357 = vmatpush1.xpose.msra.mxu0 0.0
    %358 = vmatprep.subr.mxu0 0.0
    %359 = vmatpush1.xpose.msra.mxu0 0.0
    %360 = vmatprep.subr.mxu0 0.0
    %361 = vmatpush1.xpose.msra.mxu0 0.0
    %362 = vmatprep.subr.mxu0 0.0
    %363 = vmatpush1.xpose.msra.mxu0 0.0
    %364 = vmatprep.subr.mxu0 0.0
    %365 = vmatpush1.xpose.msra.mxu0 0.0
    %366 = vmatprep.subr.mxu0 0.0
    %367 = vmatpush1.xpose.msra.mxu0 0.0
    %368 = vmatprep.subr.mxu0 0.0
    %369 = vmatpush1.xpose.msra.mxu0 0.0
    %370 = vmatprep.subr.mxu0 0.0
    %371 = vmatpush1.xpose.msra.mxu0 0.0
    %372 = vmatprep.subr.mxu0 0.0
    %373 = vmatpush1.xpose.msra.mxu0 0.0
    %374 = vmatprep.subr.mxu0 0.0
    %375 = vmatpush1.xpose.msra.mxu0 0.0
    %376 = vmatprep.subr.mxu0 0.0
    %377 = vmatpush1.xpose.msra.mxu0 0.0
    %378 = vmatprep.subr.mxu0 0.0
    %379 = vmatpush1.xpose.msra.mxu0 0.0
    %380 = vmatprep.mubr.f32.mxu0 0.0
    %381 = vmatmul.mubr.f32.gmra.mrb[0].mxu0 %v308
    %v382 = vpop.f32.mrb[0].mxu0
    %v383 = vadd.f32 0.0, %v382
    %v384 = vpop.f32.mrb[0].mxu0
    %385 = vdwg.mxu0
    %v386 = vmul.f32 %v383, 0.25
    %v387 = vsel %vm305, %v386, -1e+30
    %vm388 = vcmask 122880
    %v389 = vsel %vm388, %v387, -inf
    %390 = vmax.xlane.f32.xlu0 %v389
    %v391 = vpop.xlane.xlu0 %390
    %v392 = vsub.f32 %v387, %v391
    %v393 = vmul.f32 %v392, 1.442695
    %v394 = vpow.pop %v393
    %v395 = vsel %vm388, %v394, 0.0
    %396 = vadd.xlane.f32.xlu0 %v395
    %v397 = vpop.xlane.xlu0 %396
    %v398 = vrcp.pop %v397
    %v399 = vmul.f32 %v394, %v398
    %v400 = vmul.f32 %v302, %v198
    %v401 = vmul.f32 %v303, %v198
    %v402 = vmul.f32 %v286, %v202
    %v404 = vsel %vm72, %v402, 0
    %406 = vmatprep.subr.mxu0 0.0
    %407 = vmatpush1.xpose.msra.mxu0 %v311
    %408 = vmatprep.subr.mxu0 0.0
    %409 = vmatpush1.xpose.msra.mxu0 %v314
    %410 = vmatprep.subr.mxu0 0.0
    %411 = vmatpush1.xpose.msra.mxu0 0.0
    %412 = vmatprep.subr.mxu0 0.0
    %413 = vmatpush1.xpose.msra.mxu0 0.0
    %414 = vmatprep.subr.mxu0 0.0
    %415 = vmatpush1.xpose.msra.mxu0 0.0
    %416 = vmatprep.subr.mxu0 0.0
    %417 = vmatpush1.xpose.msra.mxu0 0.0
    %418 = vmatprep.subr.mxu0 0.0
    %419 = vmatpush1.xpose.msra.mxu0 0.0
    %420 = vmatprep.subr.mxu0 0.0
    %421 = vmatpush1.xpose.msra.mxu0 0.0
    %422 = vmatprep.subr.mxu0 0.0
    %423 = vmatpush1.xpose.msra.mxu0 0.0
    %424 = vmatprep.subr.mxu0 0.0
    %425 = vmatpush1.xpose.msra.mxu0 0.0
    %426 = vmatprep.subr.mxu0 0.0
    %427 = vmatpush1.xpose.msra.mxu0 0.0
    %428 = vmatprep.subr.mxu0 0.0
    %429 = vmatpush1.xpose.msra.mxu0 0.0
    %430 = vmatprep.subr.mxu0 0.0
    %431 = vmatpush1.xpose.msra.mxu0 0.0
    %432 = vmatprep.subr.mxu0 0.0
    %433 = vmatpush1.xpose.msra.mxu0 0.0
    %434 = vmatprep.subr.mxu0 0.0
    %435 = vmatpush1.xpose.msra.mxu0 0.0
    %436 = vmatprep.subr.mxu0 0.0
    %437 = vmatpush1.xpose.msra.mxu0 0.0
    %438 = vmatprep.subr.mxu0 0.0
    %439 = vmatpush1.xpose.msra.mxu0 0.0
    %440 = vmatprep.subr.mxu0 0.0
    %441 = vmatpush1.xpose.msra.mxu0 0.0
    %442 = vmatprep.subr.mxu0 0.0
    %443 = vmatpush1.xpose.msra.mxu0 0.0
    %444 = vmatprep.subr.mxu0 0.0
    %445 = vmatpush1.xpose.msra.mxu0 0.0
    %446 = vmatprep.subr.mxu0 0.0
    %447 = vmatpush1.xpose.msra.mxu0 0.0
    %448 = vmatprep.subr.mxu0 0.0
    %449 = vmatpush1.xpose.msra.mxu0 0.0
    %450 = vmatprep.subr.mxu0 0.0
    %451 = vmatpush1.xpose.msra.mxu0 0.0
    %452 = vmatprep.subr.mxu0 0.0
    %453 = vmatpush1.xpose.msra.mxu0 0.0
    %454 = vmatprep.subr.mxu0 0.0
    %455 = vmatpush1.xpose.msra.mxu0 0.0
    %456 = vmatprep.subr.mxu0 0.0
    %457 = vmatpush1.xpose.msra.mxu0 0.0
    %458 = vmatprep.subr.mxu0 0.0
    %459 = vmatpush1.xpose.msra.mxu0 0.0
    %460 = vmatprep.subr.mxu0 0.0
    %461 = vmatpush1.xpose.msra.mxu0 0.0
    %462 = vmatprep.subr.mxu0 0.0
    %463 = vmatpush1.xpose.msra.mxu0 0.0
    %464 = vmatprep.subr.mxu0 0.0
    %465 = vmatpush1.xpose.msra.mxu0 0.0
    %466 = vmatprep.subr.mxu0 0.0
    %467 = vmatpush1.xpose.msra.mxu0 0.0
    %468 = vmatprep.subr.mxu0 0.0
    %469 = vmatpush1.xpose.msra.mxu0 0.0
    %470 = vmatprep.mubr.f32.mxu0 0.0
    %471 = vmatmul.mubr.f32.gmra.mrb[0].mxu0 %v404
    %v472 = vpop.f32.mrb[0].mxu0
    %v473 = vadd.f32 0.0, %v472
    %v474 = vpop.f32.mrb[0].mxu0
    %475 = vdwg.mxu0
    %v476 = vmul.f32 %v473, 0.25
    %v477 = vsel %vm305, %v476, -1e+30
    %v478 = vsel %vm388, %v477, -inf
    %479 = vmax.xlane.f32.xlu0 %v478
    %v480 = vpop.xlane.xlu0 %479
    %v481 = vsub.f32 %v477, %v480
    %v482 = vmul.f32 %v481, 1.442695
    %v483 = vpow.pop %v482
    %v484 = vsel %vm388, %v483, 0.0
    %485 = vadd.xlane.f32.xlu0 %v484
    %v486 = vpop.xlane.xlu0 %485
    %v487 = vrcp.pop %v486
    %v488 = vmul.f32 %v483, %v487
    %v489 = vmul.f32 %v302, %v202
    %v490 = vmul.f32 %v303, %v202
    %vm491 = vcmask 130048
    %v493 = vsel %vm491, %v488, 0
    %495 = vmatprep.subr.mxu0 0.0
    %496 = vmatpush1.msra.mxu0 %v489
    %497 = vmatprep.subr.mxu0 0.0
    %498 = vmatpush1.msra.mxu0 %v490
    %499 = vmatprep.subr.mxu0 0.0
    %500 = vmatpush1.msra.mxu0 0.0
    %501 = vmatprep.subr.mxu0 0.0
    %502 = vmatpush1.msra.mxu0 0.0
    %503 = vmatprep.subr.mxu0 0.0
    %504 = vmatpush1.msra.mxu0 0.0
    %505 = vmatprep.subr.mxu0 0.0
    %506 = vmatpush1.msra.mxu0 0.0
    %507 = vmatprep.subr.mxu0 0.0
    %508 = vmatpush1.msra.mxu0 0.0
    %509 = vmatprep.subr.mxu0 0.0
    %510 = vmatpush1.msra.mxu0 0.0
    %511 = vmatprep.subr.mxu0 0.0
    %512 = vmatpush1.msra.mxu0 0.0
    %513 = vmatprep.subr.mxu0 0.0
    %514 = vmatpush1.msra.mxu0 0.0
    %515 = vmatprep.subr.mxu0 0.0
    %516 = vmatpush1.msra.mxu0 0.0
    %517 = vmatprep.subr.mxu0 0.0
    %518 = vmatpush1.msra.mxu0 0.0
    %519 = vmatprep.subr.mxu0 0.0
    %520 = vmatpush1.msra.mxu0 0.0
    %521 = vmatprep.subr.mxu0 0.0
    %522 = vmatpush1.msra.mxu0 0.0
    %523 = vmatprep.subr.mxu0 0.0
    %524 = vmatpush1.msra.mxu0 0.0
    %525 = vmatprep.subr.mxu0 0.0
    %526 = vmatpush1.msra.mxu0 0.0
    %527 = vmatprep.subr.mxu0 0.0
    %528 = vmatpush1.msra.mxu0 0.0
    %529 = vmatprep.subr.mxu0 0.0
    %530 = vmatpush1.msra.mxu0 0.0
    %531 = vmatprep.subr.mxu0 0.0
    %532 = vmatpush1.msra.mxu0 0.0
    %533 = vmatprep.subr.mxu0 0.0
    %534 = vmatpush1.msra.mxu0 0.0
    %535 = vmatprep.subr.mxu0 0.0
    %536 = vmatpush1.msra.mxu0 0.0
    %537 = vmatprep.subr.mxu0 0.0
    %538 = vmatpush1.msra.mxu0 0.0
    %539 = vmatprep.subr.mxu0 0.0
    %540 = vmatpush1.msra.mxu0 0.0
    %541 = vmatprep.subr.mxu0 0.0
    %542 = vmatpush1.msra.mxu0 0.0
    %543 = vmatprep.subr.mxu0 0.0
    %544 = vmatpush1.msra.mxu0 0.0
    %545 = vmatprep.subr.mxu0 0.0
    %546 = vmatpush1.msra.mxu0 0.0
    %547 = vmatprep.subr.mxu0 0.0
    %548 = vmatpush1.msra.mxu0 0.0
    %549 = vmatprep.subr.mxu0 0.0
    %550 = vmatpush1.msra.mxu0 0.0
    %551 = vmatprep.subr.mxu0 0.0
    %552 = vmatpush1.msra.mxu0 0.0
    %553 = vmatprep.subr.mxu0 0.0
    %554 = vmatpush1.msra.mxu0 0.0
    %555 = vmatprep.subr.mxu0 0.0
    %556 = vmatpush1.msra.mxu0 0.0
    %557 = vmatprep.subr.mxu0 0.0
    %558 = vmatpush1.msra.mxu0 0.0
    %559 = vmatprep.mubr.f32.mxu0 0.0
    %560 = vmatmul.mubr.f32.gmra.mrb[0].mxu0 %v493
    %v561 = vpop.f32.mrb[0].mxu0
    %v562 = vadd.f32 0.0, %v561
    %v563 = vpop.f32.mrb[0].mxu0
    %564 = vdwg.mxu0
    %v566 = vsel %vm491, %v399, 0
    %568 = vmatprep.subr.mxu0 0.0
    %569 = vmatpush1.msra.mxu0 %v400
    %570 = vmatprep.subr.mxu0 0.0
    %571 = vmatpush1.msra.mxu0 %v401
    %572 = vmatprep.subr.mxu0 0.0
    %573 = vmatpush1.msra.mxu0 0.0
    %574 = vmatprep.subr.mxu0 0.0
    %575 = vmatpush1.msra.mxu0 0.0
    %576 = vmatprep.subr.mxu0 0.0
    %577 = vmatpush1.msra.mxu0 0.0
    %578 = vmatprep.subr.mxu0 0.0
    %579 = vmatpush1.msra.mxu0 0.0
    %580 = vmatprep.subr.mxu0 0.0
    %581 = vmatpush1.msra.mxu0 0.0
    %582 = vmatprep.subr.mxu0 0.0
    %583 = vmatpush1.msra.mxu0 0.0
    %584 = vmatprep.subr.mxu0 0.0
    %585 = vmatpush1.msra.mxu0 0.0
    %586 = vmatprep.subr.mxu0 0.0
    %587 = vmatpush1.msra.mxu0 0.0
    %588 = vmatprep.subr.mxu0 0.0
    %589 = vmatpush1.msra.mxu0 0.0
    %590 = vmatprep.subr.mxu0 0.0
    %591 = vmatpush1.msra.mxu0 0.0
    %592 = vmatprep.subr.mxu0 0.0
    %593 = vmatpush1.msra.mxu0 0.0
    %594 = vmatprep.subr.mxu0 0.0
    %595 = vmatpush1.msra.mxu0 0.0
    %596 = vmatprep.subr.mxu0 0.0
    %597 = vmatpush1.msra.mxu0 0.0
    %598 = vmatprep.subr.mxu0 0.0
    %599 = vmatpush1.msra.mxu0 0.0
    %600 = vmatprep.subr.mxu0 0.0
    %601 = vmatpush1.msra.mxu0 0.0
    %602 = vmatprep.subr.mxu0 0.0
    %603 = vmatpush1.msra.mxu0 0.0
    %604 = vmatprep.subr.mxu0 0.0
    %605 = vmatpush1.msra.mxu0 0.0
    %606 = vmatprep.subr.mxu0 0.0
    %607 = vmatpush1.msra.mxu0 0.0
    %608 = vmatprep.subr.mxu0 0.0
    %609 = vmatpush1.msra.mxu0 0.0
    %610 = vmatprep.subr.mxu0 0.0
    %611 = vmatpush1.msra.mxu0 0.0
    %612 = vmatprep.subr.mxu0 0.0
    %613 = vmatpush1.msra.mxu0 0.0
    %614 = vmatprep.subr.mxu0 0.0
    %615 = vmatpush1.msra.mxu0 0.0
    %616 = vmatprep.subr.mxu0 0.0
    %617 = vmatpush1.msra.mxu0 0.0
    %618 = vmatprep.subr.mxu0 0.0
    %619 = vmatpush1.msra.mxu0 0.0
    %620 = vmatprep.subr.mxu0 0.0
    %621 = vmatpush1.msra.mxu0 0.0
    %622 = vmatprep.subr.mxu0 0.0
    %623 = vmatpush1.msra.mxu0 0.0
    %624 = vmatprep.subr.mxu0 0.0
    %625 = vmatpush1.msra.mxu0 0.0
    %626 = vmatprep.subr.mxu0 0.0
    %627 = vmatpush1.msra.mxu0 0.0
    %628 = vmatprep.subr.mxu0 0.0
    %629 = vmatpush1.msra.mxu0 0.0
    %630 = vmatprep.subr.mxu0 0.0
    %631 = vmatpush1.msra.mxu0 0.0
    %632 = vmatprep.mubr.f32.mxu0 0.0
    %633 = vmatmul.mubr.f32.gmra.mrb[0].mxu0 %v566
    %v634 = vpop.f32.mrb[0].mxu0
    %v635 = vadd.f32 %v562, %v634
    %v636 = vpop.f32.mrb[0].mxu0
    %637 = vdwg.mxu0
    %v639 = vsel %vm72, %v635, 0
    %641 = vmatprep.subr.mxu0 0.0
    %642 = vmatpush1.msra.mxu0 %v48
    %643 = vmatprep.subr.mxu0 0.0
    %644 = vmatpush1.msra.mxu0 %v49
    %645 = vmatprep.subr.mxu0 0.0
    %646 = vmatpush1.msra.mxu0 %v50
    %647 = vmatprep.subr.mxu0 0.0
    %648 = vmatpush1.msra.mxu0 %v51
    %649 = vmatprep.subr.mxu0 0.0
    %650 = vmatpush1.msra.mxu0 0.0
    %651 = vmatprep.subr.mxu0 0.0
    %652 = vmatpush1.msra.mxu0 0.0
    %653 = vmatprep.subr.mxu0 0.0
    %654 = vmatpush1.msra.mxu0 0.0
    %655 = vmatprep.subr.mxu0 0.0
    %656 = vmatpush1.msra.mxu0 0.0
    %657 = vmatprep.subr.mxu0 0.0
    %658 = vmatpush1.msra.mxu0 0.0
    %659 = vmatprep.subr.mxu0 0.0
    %660 = vmatpush1.msra.mxu0 0.0
    %661 = vmatprep.subr.mxu0 0.0
    %662 = vmatpush1.msra.mxu0 0.0
    %663 = vmatprep.subr.mxu0 0.0
    %664 = vmatpush1.msra.mxu0 0.0
    %665 = vmatprep.subr.mxu0 0.0
    %666 = vmatpush1.msra.mxu0 0.0
    %667 = vmatprep.subr.mxu0 0.0
    %668 = vmatpush1.msra.mxu0 0.0
    %669 = vmatprep.subr.mxu0 0.0
    %670 = vmatpush1.msra.mxu0 0.0
    %671 = vmatprep.subr.mxu0 0.0
    %672 = vmatpush1.msra.mxu0 0.0
    %673 = vmatprep.subr.mxu0 0.0
    %674 = vmatpush1.msra.mxu0 0.0
    %675 = vmatprep.subr.mxu0 0.0
    %676 = vmatpush1.msra.mxu0 0.0
    %677 = vmatprep.subr.mxu0 0.0
    %678 = vmatpush1.msra.mxu0 0.0
    %679 = vmatprep.subr.mxu0 0.0
    %680 = vmatpush1.msra.mxu0 0.0
    %681 = vmatprep.subr.mxu0 0.0
    %682 = vmatpush1.msra.mxu0 0.0
    %683 = vmatprep.subr.mxu0 0.0
    %684 = vmatpush1.msra.mxu0 0.0
    %685 = vmatprep.subr.mxu0 0.0
    %686 = vmatpush1.msra.mxu0 0.0
    %687 = vmatprep.subr.mxu0 0.0
    %688 = vmatpush1.msra.mxu0 0.0
    %689 = vmatprep.subr.mxu0 0.0
    %690 = vmatpush1.msra.mxu0 0.0
    %691 = vmatprep.subr.mxu0 0.0
    %692 = vmatpush1.msra.mxu0 0.0
    %693 = vmatprep.subr.mxu0 0.0
    %694 = vmatpush1.msra.mxu0 0.0
    %695 = vmatprep.subr.mxu0 0.0
    %696 = vmatpush1.msra.mxu0 0.0
    %697 = vmatprep.subr.mxu0 0.0
    %698 = vmatpush1.msra.mxu0 0.0
    %699 = vmatprep.subr.mxu0 0.0
    %700 = vmatpush1.msra.mxu0 0.0
    %701 = vmatprep.subr.mxu0 0.0
    %702 = vmatpush1.msra.mxu0 0.0
    %703 = vmatprep.subr.mxu0 0.0
    %704 = vmatpush1.msra.mxu0 0.0
    %705 = vmatprep.mubr.f32.mxu0 0.0
    %706 = vmatmul.mubr.f32.gmra.mrb[0].mxu0 %v639
    %v707 = vpop.f32.mrb[0].mxu0
    %v708 = vadd.f32 0.0, %v707
    %v709 = vpop.f32.mrb[0].mxu0
    %710 = vdwg.mxu0
    %v711 = vadd.f32 %v205, %v708
    %v712 = vmul.f32 %v711, %v711
    %v713 = vsel %vm207, %v712, 0.0
    %714 = vadd.xlane.f32.xlu0 %v713
    %v715 = vpop.xlane.xlu0 %714
    %v716 = vmul.f32 %v715, %v79
    %v717 = vadd.f32 %v716, 1e-06
    %v718 = vrsqrt.pop %v717
    %v719 = vmul.f32 %v711, %v718
    %v720 = vmul.f32 %v719, %v34
    %v722 = vsel %vm72, %v720, 0
    %724 = vmatprep.subr.mxu0 0.0
    %725 = vmatpush1.msra.mxu0 %v52
    %726 = vmatprep.subr.mxu0 0.0
    %727 = vmatpush1.msra.mxu0 %v53
    %728 = vmatprep.subr.mxu0 0.0
    %729 = vmatpush1.msra.mxu0 %v54
    %730 = vmatprep.subr.mxu0 0.0
    %731 = vmatpush1.msra.mxu0 %v55
    %732 = vmatprep.subr.mxu0 0.0
    %733 = vmatpush1.msra.mxu0 0.0
    %734 = vmatprep.subr.mxu0 0.0
    %735 = vmatpush1.msra.mxu0 0.0
    %736 = vmatprep.subr.mxu0 0.0
    %737 = vmatpush1.msra.mxu0 0.0
    %738 = vmatprep.subr.mxu0 0.0
    %739 = vmatpush1.msra.mxu0 0.0
    %740 = vmatprep.subr.mxu0 0.0
    %741 = vmatpush1.msra.mxu0 0.0
    %742 = vmatprep.subr.mxu0 0.0
    %743 = vmatpush1.msra.mxu0 0.0
    %744 = vmatprep.subr.mxu0 0.0
    %745 = vmatpush1.msra.mxu0 0.0
    %746 = vmatprep.subr.mxu0 0.0
    %747 = vmatpush1.msra.mxu0 0.0
    %748 = vmatprep.subr.mxu0 0.0
    %749 = vmatpush1.msra.mxu0 0.0
    %750 = vmatprep.subr.mxu0 0.0
    %751 = vmatpush1.msra.mxu0 0.0
    %752 = vmatprep.subr.mxu0 0.0
    %753 = vmatpush1.msra.mxu0 0.0
    %754 = vmatprep.subr.mxu0 0.0
    %755 = vmatpush1.msra.mxu0 0.0
    %756 = vmatprep.subr.mxu0 0.0
    %757 = vmatpush1.msra.mxu0 0.0
    %758 = vmatprep.subr.mxu0 0.0
    %759 = vmatpush1.msra.mxu0 0.0
    %760 = vmatprep.subr.mxu0 0.0
    %761 = vmatpush1.msra.mxu0 0.0
    %762 = vmatprep.subr.mxu0 0.0
    %763 = vmatpush1.msra.mxu0 0.0
    %764 = vmatprep.subr.mxu0 0.0
    %765 = vmatpush1.msra.mxu0 0.0
    %766 = vmatprep.subr.mxu0 0.0
    %767 = vmatpush1.msra.mxu0 0.0
    %768 = vmatprep.subr.mxu0 0.0
    %769 = vmatpush1.msra.mxu0 0.0
    %770 = vmatprep.subr.mxu0 0.0
    %771 = vmatpush1.msra.mxu0 0.0
    %772 = vmatprep.subr.mxu0 0.0
    %773 = vmatpush1.msra.mxu0 0.0
    %774 = vmatprep.subr.mxu0 0.0
    %775 = vmatpush1.msra.mxu0 0.0
    %776 = vmatprep.subr.mxu0 0.0
    %777 = vmatpush1.msra.mxu0 0.0
    %778 = vmatprep.subr.mxu0 0.0
    %779 = vmatpush1.msra.mxu0 0.0
    %780 = vmatprep.subr.mxu0 0.0
    %781 = vmatpush1.msra.mxu0 0.0
    %782 = vmatprep.subr.mxu0 0.0
    %783 = vmatpush1.msra.mxu0 0.0
    %784 = vmatprep.subr.mxu0 0.0
    %785 = vmatpush1.msra.mxu0 0.0
    %786 = vmatprep.subr.mxu0 0.0
    %787 = vmatpush1.msra.mxu0 0.0
    %788 = vmatprep.mubr.f32.mxu0 0.0
    %789 = vmatmul.mubr.f32.gmra.mrb[0].mxu0 %v722
    %v790 = vpop.f32.mrb[0].mxu0
    %v791 = vadd.f32 0.0, %v790
    %v792 = vpop.f32.mrb[0].mxu0
    %793 = vdwg.mxu0
    %v794 = vxor.u32 %v791, 2147483648
    %v795 = vmul.f32 %v794, 1.442695
    %v796 = vpow.pop %v795
    %v797 = vadd.f32 %v796, 1.0
    %v798 = vrcp.pop %v797
    %v799 = vmul.f32 1.0, %v798
    %v800 = vmul.f32 %v791, %v799
    %802 = vrot.lane.b32.xlu0 %v791, 64
    %v803 = vpop.permute.xlu0 %802
    %v805 = vmul.f32 %v800, %v803
    %vm806 = vcmask 523264
    %v808 = vsel %vm806, %v805, 0
    %810 = vmatprep.subr.mxu0 0.0
    %811 = vmatpush1.msra.mxu0 %v56
    %812 = vmatprep.subr.mxu0 0.0
    %813 = vmatpush1.msra.mxu0 %v57
    %814 = vmatprep.subr.mxu0 0.0
    %815 = vmatpush1.msra.mxu0 %v58
    %816 = vmatprep.subr.mxu0 0.0
    %817 = vmatpush1.msra.mxu0 %v59
    %818 = vmatprep.subr.mxu0 0.0
    %819 = vmatpush1.msra.mxu0 %v60
    %820 = vmatprep.subr.mxu0 0.0
    %821 = vmatpush1.msra.mxu0 %v61
    %822 = vmatprep.subr.mxu0 0.0
    %823 = vmatpush1.msra.mxu0 %v62
    %824 = vmatprep.subr.mxu0 0.0
    %825 = vmatpush1.msra.mxu0 %v63
    %826 = vmatprep.subr.mxu0 0.0
    %827 = vmatpush1.msra.mxu0 0.0
    %828 = vmatprep.subr.mxu0 0.0
    %829 = vmatpush1.msra.mxu0 0.0
    %830 = vmatprep.subr.mxu0 0.0
    %831 = vmatpush1.msra.mxu0 0.0
    %832 = vmatprep.subr.mxu0 0.0
    %833 = vmatpush1.msra.mxu0 0.0
    %834 = vmatprep.subr.mxu0 0.0
    %835 = vmatpush1.msra.mxu0 0.0
    %836 = vmatprep.subr.mxu0 0.0
    %837 = vmatpush1.msra.mxu0 0.0
    %838 = vmatprep.subr.mxu0 0.0
    %839 = vmatpush1.msra.mxu0 0.0
    %840 = vmatprep.subr.mxu0 0.0
    %841 = vmatpush1.msra.mxu0 0.0
    %842 = vmatprep.subr.mxu0 0.0
    %843 = vmatpush1.msra.mxu0 0.0
    %844 = vmatprep.subr.mxu0 0.0
    %845 = vmatpush1.msra.mxu0 0.0
    %846 = vmatprep.subr.mxu0 0.0
    %847 = vmatpush1.msra.mxu0 0.0
    %848 = vmatprep.subr.mxu0 0.0
    %849 = vmatpush1.msra.mxu0 0.0
    %850 = vmatprep.subr.mxu0 0.0
    %851 = vmatpush1.msra.mxu0 0.0
    %852 = vmatprep.subr.mxu0 0.0
    %853 = vmatpush1.msra.mxu0 0.0
    %854 = vmatprep.subr.mxu0 0.0
    %855 = vmatpush1.msra.mxu0 0.0
    %856 = vmatprep.subr.mxu0 0.0
    %857 = vmatpush1.msra.mxu0 0.0
    %858 = vmatprep.subr.mxu0 0.0
    %859 = vmatpush1.msra.mxu0 0.0
    %860 = vmatprep.subr.mxu0 0.0
    %861 = vmatpush1.msra.mxu0 0.0
    %862 = vmatprep.subr.mxu0 0.0
    %863 = vmatpush1.msra.mxu0 0.0
    %864 = vmatprep.subr.mxu0 0.0
    %865 = vmatpush1.msra.mxu0 0.0
    %866 = vmatprep.subr.mxu0 0.0
    %867 = vmatpush1.msra.mxu0 0.0
    %868 = vmatprep.subr.mxu0 0.0
    %869 = vmatpush1.msra.mxu0 0.0
    %870 = vmatprep.subr.mxu0 0.0
    %871 = vmatpush1.msra.mxu0 0.0
    %872 = vmatprep.subr.mxu0 0.0
    %873 = vmatpush1.msra.mxu0 0.0
    %874 = vmatprep.mubr.f32.mxu0 0.0
    %875 = vmatmul.mubr.f32.gmra.mrb[0].mxu0 %v808
    %v876 = vpop.f32.mrb[0].mxu0
    %v877 = vadd.f32 0.0, %v876
    %v878 = vpop.f32.mrb[0].mxu0
    %879 = vdwg.mxu0
    %v880 = vadd.f32 %v711, %v877
    %v881 = vmul.f32 %v880, %v880
    %v882 = vsel %vm207, %v881, 0.0
    %883 = vadd.xlane.f32.xlu0 %v882
    %v884 = vpop.xlane.xlu0 %883
    %v885 = vmul.f32 %v884, %v79
    %v886 = vadd.f32 %v885, 1e-06
    %v887 = vrsqrt.pop %v886
    %v888 = vmul.f32 %v880, %v887
    %v889 = vmul.f32 %v888, %v35
    %v891 = vsel %vm72, %v889, 0
    %893 = vmatprep.subr.mxu0 0.0
    %894 = vmatpush1.msra.mxu0 %v64
    %895 = vmatprep.subr.mxu0 0.0
    %896 = vmatpush1.msra.mxu0 %v65
    %897 = vmatprep.subr.mxu0 0.0
    %898 = vmatpush1.msra.mxu0 %v66
    %899 = vmatprep.subr.mxu0 0.0
    %900 = vmatpush1.msra.mxu0 %v67
    %901 = vmatprep.subr.mxu0 0.0
    %902 = vmatpush1.msra.mxu0 0.0
    %903 = vmatprep.subr.mxu0 0.0
    %904 = vmatpush1.msra.mxu0 0.0
    %905 = vmatprep.subr.mxu0 0.0
    %906 = vmatpush1.msra.mxu0 0.0
    %907 = vmatprep.subr.mxu0 0.0
    %908 = vmatpush1.msra.mxu0 0.0
    %909 = vmatprep.subr.mxu0 0.0
    %910 = vmatpush1.msra.mxu0 0.0
    %911 = vmatprep.subr.mxu0 0.0
    %912 = vmatpush1.msra.mxu0 0.0
    %913 = vmatprep.subr.mxu0 0.0
    %914 = vmatpush1.msra.mxu0 0.0
    %915 = vmatprep.subr.mxu0 0.0
    %916 = vmatpush1.msra.mxu0 0.0
    %917 = vmatprep.subr.mxu0 0.0
    %918 = vmatpush1.msra.mxu0 0.0
    %919 = vmatprep.subr.mxu0 0.0
    %920 = vmatpush1.msra.mxu0 0.0
    %921 = vmatprep.subr.mxu0 0.0
    %922 = vmatpush1.msra.mxu0 0.0
    %923 = vmatprep.subr.mxu0 0.0
    %924 = vmatpush1.msra.mxu0 0.0
    %925 = vmatprep.subr.mxu0 0.0
    %926 = vmatpush1.msra.mxu0 0.0
    %927 = vmatprep.subr.mxu0 0.0
    %928 = vmatpush1.msra.mxu0 0.0
    %929 = vmatprep.subr.mxu0 0.0
    %930 = vmatpush1.msra.mxu0 0.0
    %931 = vmatprep.subr.mxu0 0.0
    %932 = vmatpush1.msra.mxu0 0.0
    %933 = vmatprep.subr.mxu0 0.0
    %934 = vmatpush1.msra.mxu0 0.0
    %935 = vmatprep.subr.mxu0 0.0
    %936 = vmatpush1.msra.mxu0 0.0
    %937 = vmatprep.subr.mxu0 0.0
    %938 = vmatpush1.msra.mxu0 0.0
    %939 = vmatprep.subr.mxu0 0.0
    %940 = vmatpush1.msra.mxu0 0.0
    %941 = vmatprep.subr.mxu0 0.0
    %942 = vmatpush1.msra.mxu0 0.0
    %943 = vmatprep.subr.mxu0 0.0
    %944 = vmatpush1.msra.mxu0 0.0
    %945 = vmatprep.subr.mxu0 0.0
    %946 = vmatpush1.msra.mxu0 0.0
    %947 = vmatprep.subr.mxu0 0.0
    %948 = vmatpush1.msra.mxu0 0.0
    %949 = vmatprep.subr.mxu0 0.0
    %950 = vmatpush1.msra.mxu0 0.0
    %951 = vmatprep.subr.mxu0 0.0
    %952 = vmatpush1.msra.mxu0 0.0
    %953 = vmatprep.subr.mxu0 0.0
    %954 = vmatpush1.msra.mxu0 0.0
    %955 = vmatprep.subr.mxu0 0.0
    %956 = vmatpush1.msra.mxu0 0.0
    %957 = vmatprep.mubr.f32.mxu0 0.0
    %958 = vmatmul.mubr.f32.gmra.mrb[0].mxu0 %v891
    %v959 = vpop.f32.mrb[0].mxu0
    %v960 = vadd.f32 0.0, %v959
    %v961 = vpop.f32.mrb[0].mxu0
    %962 = vdwg.mxu0
    %vm963 = vcmp.lt.s32.totalorder %v194, 64
    %v964 = vsel %vm963, %v960, -1e+30
    %vm965 = vcmask 1040384
    %v966 = vsel %vm965, %v964, -inf
    %967 = vmax.xlane.f32.xlu0 %v966
    %v968 = vpop.xlane.xlu0 %967
    %vm969 = vcmp.ge.f32.partialorder %v964, %v968
    %v970 = vcvt.s32.f32 %v194
    %v971 = vsel %vm969, %v970, 128.0
    %v972 = vsel %vm965, %v971, inf
    %973 = vmin.xlane.f32.xlu0 %v972
    %v974 = vpop.xlane.xlu0 %973
    %v975 = vcvt.f32.s32.to.zero.pseudo %v974
    %v976 = vsub.f32 %v964, %v968
    %v977 = vmul.f32 %v976, 1.442695
    %v978 = vpow.pop %v977
    %v979 = vsel %vm965, %v978, 0.0
    %980 = vadd.xlane.f32.xlu0 %v979
    %v981 = vpop.xlane.xlu0 %980
    %v982 = vrcp.pop %v981
    %v983 = vmin.f32 %v982, 1.0
    %v984 = vcvt.s32.f32 %v975
    %vm985 = vcmp.eq.s32.totalorder %v194, %v975
    %v986 = vsel %vm985, 1.0, 0.0
    %v988 = vsel %vm806, %v986, 0
    %990 = vmatprep.subr.mxu0 0.0
    %991 = vmatpush1.msra.mxu0 %v36
    %992 = vmatprep.subr.mxu0 0.0
    %993 = vmatpush1.msra.mxu0 %v37
    %994 = vmatprep.subr.mxu0 0.0
    %995 = vmatpush1.msra.mxu0 %v38
    %996 = vmatprep.subr.mxu0 0.0
    %997 = vmatpush1.msra.mxu0 %v39
    %998 = vmatprep.subr.mxu0 0.0
    %999 = vmatpush1.msra.mxu0 %v40
    %1000 = vmatprep.subr.mxu0 0.0
    %1001 = vmatpush1.msra.mxu0 %v41
    %1002 = vmatprep.subr.mxu0 0.0
    %1003 = vmatpush1.msra.mxu0 %v42
    %1004 = vmatprep.subr.mxu0 0.0
    %1005 = vmatpush1.msra.mxu0 %v43
    %1006 = vmatprep.subr.mxu0 0.0
    %1007 = vmatpush1.msra.mxu0 0.0
    %1008 = vmatprep.subr.mxu0 0.0
    %1009 = vmatpush1.msra.mxu0 0.0
    %1010 = vmatprep.subr.mxu0 0.0
    %1011 = vmatpush1.msra.mxu0 0.0
    %1012 = vmatprep.subr.mxu0 0.0
    %1013 = vmatpush1.msra.mxu0 0.0
    %1014 = vmatprep.subr.mxu0 0.0
    %1015 = vmatpush1.msra.mxu0 0.0
    %1016 = vmatprep.subr.mxu0 0.0
    %1017 = vmatpush1.msra.mxu0 0.0
    %1018 = vmatprep.subr.mxu0 0.0
    %1019 = vmatpush1.msra.mxu0 0.0
    %1020 = vmatprep.subr.mxu0 0.0
    %1021 = vmatpush1.msra.mxu0 0.0
    %1022 = vmatprep.subr.mxu0 0.0
    %1023 = vmatpush1.msra.mxu0 0.0
    %1024 = vmatprep.subr.mxu0 0.0
    %1025 = vmatpush1.msra.mxu0 0.0
    %1026 = vmatprep.subr.mxu0 0.0
    %1027 = vmatpush1.msra.mxu0 0.0
    %1028 = vmatprep.subr.mxu0 0.0
    %1029 = vmatpush1.msra.mxu0 0.0
    %1030 = vmatprep.subr.mxu0 0.0
    %1031 = vmatpush1.msra.mxu0 0.0
    %1032 = vmatprep.subr.mxu0 0.0
    %1033 = vmatpush1.msra.mxu0 0.0
    %1034 = vmatprep.subr.mxu0 0.0
    %1035 = vmatpush1.msra.mxu0 0.0
    %1036 = vmatprep.subr.mxu0 0.0
    %1037 = vmatpush1.msra.mxu0 0.0
    %1038 = vmatprep.subr.mxu0 0.0
    %1039 = vmatpush1.msra.mxu0 0.0
    %1040 = vmatprep.subr.mxu0 0.0
    %1041 = vmatpush1.msra.mxu0 0.0
    %1042 = vmatprep.subr.mxu0 0.0
    %1043 = vmatpush1.msra.mxu0 0.0
    %1044 = vmatprep.subr.mxu0 0.0
    %1045 = vmatpush1.msra.mxu0 0.0
    %1046 = vmatprep.subr.mxu0 0.0
    %1047 = vmatpush1.msra.mxu0 0.0
    %1048 = vmatprep.subr.mxu0 0.0
    %1049 = vmatpush1.msra.mxu0 0.0
    %1050 = vmatprep.subr.mxu0 0.0
    %1051 = vmatpush1.msra.mxu0 0.0
    %1052 = vmatprep.subr.mxu0 0.0
    %1053 = vmatpush1.msra.mxu0 0.0
    %1054 = vmatprep.mubr.f32.mxu0 0.0
    %1055 = vmatmul.mubr.f32.gmra.mrb[0].mxu0 %v988
    %v1056 = vpop.f32.mrb[0].mxu0
    %v1057 = vadd.f32 0.0, %v1056
    %v1058 = vpop.f32.mrb[0].mxu0
    %1059 = vdwg.mxu0
    %v1060 = vmul.f32 %v1057, %v1057
    %v1061 = vsel %vm207, %v1060, 0.0
    %1062 = vadd.xlane.f32.xlu0 %v1061
    %v1063 = vpop.xlane.xlu0 %1062
    %v1064 = vmul.f32 %v1063, %v79
    %v1065 = vadd.f32 %v1064, 1e-06
    %v1066 = vrsqrt.pop %v1065
    %v1067 = vmul.f32 %v1057, %v1066
    %v1068 = vmul.f32 %v1067, %v33
    %v1070 = vsel %vm72, %v1068, 0
    %1072 = vmatprep.subr.mxu0 0.0
    %1073 = vmatpush1.msra.mxu0 %v44
    %1074 = vmatprep.subr.mxu0 0.0
    %1075 = vmatpush1.msra.mxu0 %v45
    %1076 = vmatprep.subr.mxu0 0.0
    %1077 = vmatpush1.msra.mxu0 %v46
    %1078 = vmatprep.subr.mxu0 0.0
    %1079 = vmatpush1.msra.mxu0 %v47
    %1080 = vmatprep.subr.mxu0 0.0
    %1081 = vmatpush1.msra.mxu0 0.0
    %1082 = vmatprep.subr.mxu0 0.0
    %1083 = vmatpush1.msra.mxu0 0.0
    %1084 = vmatprep.subr.mxu0 0.0
    %1085 = vmatpush1.msra.mxu0 0.0
    %1086 = vmatprep.subr.mxu0 0.0
    %1087 = vmatpush1.msra.mxu0 0.0
    %1088 = vmatprep.subr.mxu0 0.0
    %1089 = vmatpush1.msra.mxu0 0.0
    %1090 = vmatprep.subr.mxu0 0.0
    %1091 = vmatpush1.msra.mxu0 0.0
    %1092 = vmatprep.subr.mxu0 0.0
    %1093 = vmatpush1.msra.mxu0 0.0
    %1094 = vmatprep.subr.mxu0 0.0
    %1095 = vmatpush1.msra.mxu0 0.0
    %1096 = vmatprep.subr.mxu0 0.0
    %1097 = vmatpush1.msra.mxu0 0.0
    %1098 = vmatprep.subr.mxu0 0.0
    %1099 = vmatpush1.msra.mxu0 0.0
    %1100 = vmatprep.subr.mxu0 0.0
    %1101 = vmatpush1.msra.mxu0 0.0
    %1102 = vmatprep.subr.mxu0 0.0
    %1103 = vmatpush1.msra.mxu0 0.0
    %1104 = vmatprep.subr.mxu0 0.0
    %1105 = vmatpush1.msra.mxu0 0.0
    %1106 = vmatprep.subr.mxu0 0.0
    %1107 = vmatpush1.msra.mxu0 0.0
    %1108 = vmatprep.subr.mxu0 0.0
    %1109 = vmatpush1.msra.mxu0 0.0
    %1110 = vmatprep.subr.mxu0 0.0
    %1111 = vmatpush1.msra.mxu0 0.0
    %1112 = vmatprep.subr.mxu0 0.0
    %1113 = vmatpush1.msra.mxu0 0.0
    %1114 = vmatprep.subr.mxu0 0.0
    %1115 = vmatpush1.msra.mxu0 0.0
    %1116 = vmatprep.subr.mxu0 0.0
    %1117 = vmatpush1.msra.mxu0 0.0
    %1118 = vmatprep.subr.mxu0 0.0
    %1119 = vmatpush1.msra.mxu0 0.0
    %1120 = vmatprep.subr.mxu0 0.0
    %1121 = vmatpush1.msra.mxu0 0.0
    %1122 = vmatprep.subr.mxu0 0.0
    %1123 = vmatpush1.msra.mxu0 0.0
    %1124 = vmatprep.subr.mxu0 0.0
    %1125 = vmatpush1.msra.mxu0 0.0
    %1126 = vmatprep.subr.mxu0 0.0
    %1127 = vmatpush1.msra.mxu0 0.0
    %1128 = vmatprep.subr.mxu0 0.0
    %1129 = vmatpush1.msra.mxu0 0.0
    %1130 = vmatprep.subr.mxu0 0.0
    %1131 = vmatpush1.msra.mxu0 0.0
    %1132 = vmatprep.subr.mxu0 0.0
    %1133 = vmatpush1.msra.mxu0 0.0
    %1134 = vmatprep.subr.mxu0 0.0
    %1135 = vmatpush1.msra.mxu0 0.0
    %1136 = vmatprep.mubr.f32.mxu0 0.0
    %1137 = vmatmul.mubr.f32.gmra.mrb[0].mxu0 %v1070
    %v1138 = vpop.f32.mrb[0].mxu0
    %v1139 = vadd.f32 0.0, %v1138
    %v1140 = vpop.f32.mrb[0].mxu0
    %1141 = vdwg.mxu0
    %1143 = vrot.lane.b32.xlu0 %v1139, 96
    %v1144 = vpop.permute.xlu0 %1143
    %s1146 = scalar_lea.vmem [#allocation2], %s32
    %1147 = vst.msk [vmem:[%s1146] sm:$0x1] %vm207, %v1144
    %1148 = vrot.lane.b32.xlu0 %v1139, 64
    %v1149 = vpop.permute.xlu0 %1148
    %s1151 = scalar_lea.vmem [#allocation3], %s32
    %1152 = vst.msk [vmem:[%s1151] sm:$0x1] %vm207, %v1149
    %v1153 = vld [vmem:[#allocation2] sm:$0xff]
    %v1154 = vld [vmem:[#allocation2 + $0x8] sm:$0xff]
    %v1155 = vld [vmem:[#allocation3] sm:$0xff]
    %v1156 = vld [vmem:[#allocation3 + $0x8] sm:$0xff]
    %v1157 = vstv %s32
    %vm1158 = vcmp.le.s32.totalorder %v194, %v1157
    %v1159 = vmul.f32 %v1139, %v198
    %v1161 = vsel %vm72, %v1159, 0
    %v1164 = vsel %vm72, %v1153, 0
    %v1167 = vsel %vm72, %v1154, 0
    %1169 = vmatprep.subr.mxu0 0.0
    %1170 = vmatpush1.xpose.msra.mxu0 %v1164
    %1171 = vmatprep.subr.mxu0 0.0
    %1172 = vmatpush1.xpose.msra.mxu0 %v1167
    %1173 = vmatprep.subr.mxu0 0.0
    %1174 = vmatpush1.xpose.msra.mxu0 0.0
    %1175 = vmatprep.subr.mxu0 0.0
    %1176 = vmatpush1.xpose.msra.mxu0 0.0
    %1177 = vmatprep.subr.mxu0 0.0
    %1178 = vmatpush1.xpose.msra.mxu0 0.0
    %1179 = vmatprep.subr.mxu0 0.0
    %1180 = vmatpush1.xpose.msra.mxu0 0.0
    %1181 = vmatprep.subr.mxu0 0.0
    %1182 = vmatpush1.xpose.msra.mxu0 0.0
    %1183 = vmatprep.subr.mxu0 0.0
    %1184 = vmatpush1.xpose.msra.mxu0 0.0
    %1185 = vmatprep.subr.mxu0 0.0
    %1186 = vmatpush1.xpose.msra.mxu0 0.0
    %1187 = vmatprep.subr.mxu0 0.0
    %1188 = vmatpush1.xpose.msra.mxu0 0.0
    %1189 = vmatprep.subr.mxu0 0.0
    %1190 = vmatpush1.xpose.msra.mxu0 0.0
    %1191 = vmatprep.subr.mxu0 0.0
    %1192 = vmatpush1.xpose.msra.mxu0 0.0
    %1193 = vmatprep.subr.mxu0 0.0
    %1194 = vmatpush1.xpose.msra.mxu0 0.0
    %1195 = vmatprep.subr.mxu0 0.0
    %1196 = vmatpush1.xpose.msra.mxu0 0.0
    %1197 = vmatprep.subr.mxu0 0.0
    %1198 = vmatpush1.xpose.msra.mxu0 0.0
    %1199 = vmatprep.subr.mxu0 0.0
    %1200 = vmatpush1.xpose.msra.mxu0 0.0
    %1201 = vmatprep.subr.mxu0 0.0
    %1202 = vmatpush1.xpose.msra.mxu0 0.0
    %1203 = vmatprep.subr.mxu0 0.0
    %1204 = vmatpush1.xpose.msra.mxu0 0.0
    %1205 = vmatprep.subr.mxu0 0.0
    %1206 = vmatpush1.xpose.msra.mxu0 0.0
    %1207 = vmatprep.subr.mxu0 0.0
    %1208 = vmatpush1.xpose.msra.mxu0 0.0
    %1209 = vmatprep.subr.mxu0 0.0
    %1210 = vmatpush1.xpose.msra.mxu0 0.0
    %1211 = vmatprep.subr.mxu0 0.0
    %1212 = vmatpush1.xpose.msra.mxu0 0.0
    %1213 = vmatprep.subr.mxu0 0.0
    %1214 = vmatpush1.xpose.msra.mxu0 0.0
    %1215 = vmatprep.subr.mxu0 0.0
    %1216 = vmatpush1.xpose.msra.mxu0 0.0
    %1217 = vmatprep.subr.mxu0 0.0
    %1218 = vmatpush1.xpose.msra.mxu0 0.0
    %1219 = vmatprep.subr.mxu0 0.0
    %1220 = vmatpush1.xpose.msra.mxu0 0.0
    %1221 = vmatprep.subr.mxu0 0.0
    %1222 = vmatpush1.xpose.msra.mxu0 0.0
    %1223 = vmatprep.subr.mxu0 0.0
    %1224 = vmatpush1.xpose.msra.mxu0 0.0
    %1225 = vmatprep.subr.mxu0 0.0
    %1226 = vmatpush1.xpose.msra.mxu0 0.0
    %1227 = vmatprep.subr.mxu0 0.0
    %1228 = vmatpush1.xpose.msra.mxu0 0.0
    %1229 = vmatprep.subr.mxu0 0.0
    %1230 = vmatpush1.xpose.msra.mxu0 0.0
    %1231 = vmatprep.subr.mxu0 0.0
    %1232 = vmatpush1.xpose.msra.mxu0 0.0
    %1233 = vmatprep.mubr.f32.mxu0 0.0
    %1234 = vmatmul.mubr.f32.gmra.mrb[0].mxu0 %v1161
    %v1235 = vpop.f32.mrb[0].mxu0
    %v1236 = vadd.f32 0.0, %v1235
    %v1237 = vpop.f32.mrb[0].mxu0
    %1238 = vdwg.mxu0
    %v1239 = vmul.f32 %v1236, 0.25
    %v1240 = vsel %vm1158, %v1239, -1e+30
    %v1241 = vsel %vm388, %v1240, -inf
    %1242 = vmax.xlane.f32.xlu0 %v1241
    %v1243 = vpop.xlane.xlu0 %1242
    %v1244 = vsub.f32 %v1240, %v1243
    %v1245 = vmul.f32 %v1244, 1.442695
    %v1246 = vpow.pop %v1245
    %v1247 = vsel %vm388, %v1246, 0.0
    %1248 = vadd.xlane.f32.xlu0 %v1247
    %v1249 = vpop.xlane.xlu0 %1248
    %v1250 = vrcp.pop %v1249
    %v1251 = vmul.f32 %v1246, %v1250
    %v1252 = vmul.f32 %v1155, %v198
    %v1253 = vmul.f32 %v1156, %v198
    %v1254 = vmul.f32 %v1139, %v202
    %v1256 = vsel %vm72, %v1254, 0
    %1258 = vmatprep.subr.mxu0 0.0
    %1259 = vmatpush1.xpose.msra.mxu0 %v1164
    %1260 = vmatprep.subr.mxu0 0.0
    %1261 = vmatpush1.xpose.msra.mxu0 %v1167
    %1262 = vmatprep.subr.mxu0 0.0
    %1263 = vmatpush1.xpose.msra.mxu0 0.0
    %1264 = vmatprep.subr.mxu0 0.0
    %1265 = vmatpush1.xpose.msra.mxu0 0.0
    %1266 = vmatprep.subr.mxu0 0.0
    %1267 = vmatpush1.xpose.msra.mxu0 0.0
    %1268 = vmatprep.subr.mxu0 0.0
    %1269 = vmatpush1.xpose.msra.mxu0 0.0
    %1270 = vmatprep.subr.mxu0 0.0
    %1271 = vmatpush1.xpose.msra.mxu0 0.0
    %1272 = vmatprep.subr.mxu0 0.0
    %1273 = vmatpush1.xpose.msra.mxu0 0.0
    %1274 = vmatprep.subr.mxu0 0.0
    %1275 = vmatpush1.xpose.msra.mxu0 0.0
    %1276 = vmatprep.subr.mxu0 0.0
    %1277 = vmatpush1.xpose.msra.mxu0 0.0
    %1278 = vmatprep.subr.mxu0 0.0
    %1279 = vmatpush1.xpose.msra.mxu0 0.0
    %1280 = vmatprep.subr.mxu0 0.0
    %1281 = vmatpush1.xpose.msra.mxu0 0.0
    %1282 = vmatprep.subr.mxu0 0.0
    %1283 = vmatpush1.xpose.msra.mxu0 0.0
    %1284 = vmatprep.subr.mxu0 0.0
    %1285 = vmatpush1.xpose.msra.mxu0 0.0
    %1286 = vmatprep.subr.mxu0 0.0
    %1287 = vmatpush1.xpose.msra.mxu0 0.0
    %1288 = vmatprep.subr.mxu0 0.0
    %1289 = vmatpush1.xpose.msra.mxu0 0.0
    %1290 = vmatprep.subr.mxu0 0.0
    %1291 = vmatpush1.xpose.msra.mxu0 0.0
    %1292 = vmatprep.subr.mxu0 0.0
    %1293 = vmatpush1.xpose.msra.mxu0 0.0
    %1294 = vmatprep.subr.mxu0 0.0
    %1295 = vmatpush1.xpose.msra.mxu0 0.0
    %1296 = vmatprep.subr.mxu0 0.0
    %1297 = vmatpush1.xpose.msra.mxu0 0.0
    %1298 = vmatprep.subr.mxu0 0.0
    %1299 = vmatpush1.xpose.msra.mxu0 0.0
    %1300 = vmatprep.subr.mxu0 0.0
    %1301 = vmatpush1.xpose.msra.mxu0 0.0
    %1302 = vmatprep.subr.mxu0 0.0
    %1303 = vmatpush1.xpose.msra.mxu0 0.0
    %1304 = vmatprep.subr.mxu0 0.0
    %1305 = vmatpush1.xpose.msra.mxu0 0.0
    %1306 = vmatprep.subr.mxu0 0.0
    %1307 = vmatpush1.xpose.msra.mxu0 0.0
    %1308 = vmatprep.subr.mxu0 0.0
    %1309 = vmatpush1.xpose.msra.mxu0 0.0
    %1310 = vmatprep.subr.mxu0 0.0
    %1311 = vmatpush1.xpose.msra.mxu0 0.0
    %1312 = vmatprep.subr.mxu0 0.0
    %1313 = vmatpush1.xpose.msra.mxu0 0.0
    %1314 = vmatprep.subr.mxu0 0.0
    %1315 = vmatpush1.xpose.msra.mxu0 0.0
    %1316 = vmatprep.subr.mxu0 0.0
    %1317 = vmatpush1.xpose.msra.mxu0 0.0
    %1318 = vmatprep.subr.mxu0 0.0
    %1319 = vmatpush1.xpose.msra.mxu0 0.0
    %1320 = vmatprep.subr.mxu0 0.0
    %1321 = vmatpush1.xpose.msra.mxu0 0.0
    %1322 = vmatprep.mubr.f32.mxu0 0.0
    %1323 = vmatmul.mubr.f32.gmra.mrb[0].mxu0 %v1256
    %v1324 = vpop.f32.mrb[0].mxu0
    %v1325 = vadd.f32 0.0, %v1324
    %v1326 = vpop.f32.mrb[0].mxu0
    %1327 = vdwg.mxu0
    %v1328 = vmul.f32 %v1325, 0.25
    %v1329 = vsel %vm1158, %v1328, -1e+30
    %v1330 = vsel %vm388, %v1329, -inf
    %1331 = vmax.xlane.f32.xlu0 %v1330
    %v1332 = vpop.xlane.xlu0 %1331
    %v1333 = vsub.f32 %v1329, %v1332
    %v1334 = vmul.f32 %v1333, 1.442695
    %v1335 = vpow.pop %v1334
    %v1336 = vsel %vm388, %v1335, 0.0
    %1337 = vadd.xlane.f32.xlu0 %v1336
    %v1338 = vpop.xlane.xlu0 %1337
    %v1339 = vrcp.pop %v1338
    %v1340 = vmul.f32 %v1335, %v1339
    %v1341 = vmul.f32 %v1155, %v202
    %v1342 = vmul.f32 %v1156, %v202
    %v1344 = vsel %vm491, %v1340, 0
    %1346 = vmatprep.subr.mxu0 0.0
    %1347 = vmatpush1.msra.mxu0 %v1341
    %1348 = vmatprep.subr.mxu0 0.0
    %1349 = vmatpush1.msra.mxu0 %v1342
    %1350 = vmatprep.subr.mxu0 0.0
    %1351 = vmatpush1.msra.mxu0 0.0
    %1352 = vmatprep.subr.mxu0 0.0
    %1353 = vmatpush1.msra.mxu0 0.0
    %1354 = vmatprep.subr.mxu0 0.0
    %1355 = vmatpush1.msra.mxu0 0.0
    %1356 = vmatprep.subr.mxu0 0.0
    %1357 = vmatpush1.msra.mxu0 0.0
    %1358 = vmatprep.subr.mxu0 0.0
    %1359 = vmatpush1.msra.mxu0 0.0
    %1360 = vmatprep.subr.mxu0 0.0
    %1361 = vmatpush1.msra.mxu0 0.0
    %1362 = vmatprep.subr.mxu0 0.0
    %1363 = vmatpush1.msra.mxu0 0.0
    %1364 = vmatprep.subr.mxu0 0.0
    %1365 = vmatpush1.msra.mxu0 0.0
    %1366 = vmatprep.subr.mxu0 0.0
    %1367 = vmatpush1.msra.mxu0 0.0
    %1368 = vmatprep.subr.mxu0 0.0
    %1369 = vmatpush1.msra.mxu0 0.0
    %1370 = vmatprep.subr.mxu0 0.0
    %1371 = vmatpush1.msra.mxu0 0.0
    %1372 = vmatprep.subr.mxu0 0.0
    %1373 = vmatpush1.msra.mxu0 0.0
    %1374 = vmatprep.subr.mxu0 0.0
    %1375 = vmatpush1.msra.mxu0 0.0
    %1376 = vmatprep.subr.mxu0 0.0
    %1377 = vmatpush1.msra.mxu0 0.0
    %1378 = vmatprep.subr.mxu0 0.0
    %1379 = vmatpush1.msra.mxu0 0.0
    %1380 = vmatprep.subr.mxu0 0.0
    %1381 = vmatpush1.msra.mxu0 0.0
    %1382 = vmatprep.subr.mxu0 0.0
    %1383 = vmatpush1.msra.mxu0 0.0
    %1384 = vmatprep.subr.mxu0 0.0
    %1385 = vmatpush1.msra.mxu0 0.0
    %1386 = vmatprep.subr.mxu0 0.0
    %1387 = vmatpush1.msra.mxu0 0.0
    %1388 = vmatprep.subr.mxu0 0.0
    %1389 = vmatpush1.msra.mxu0 0.0
    %1390 = vmatprep.subr.mxu0 0.0
    %1391 = vmatpush1.msra.mxu0 0.0
    %1392 = vmatprep.subr.mxu0 0.0
    %1393 = vmatpush1.msra.mxu0 0.0
    %1394 = vmatprep.subr.mxu0 0.0
    %1395 = vmatpush1.msra.mxu0 0.0
    %1396 = vmatprep.subr.mxu0 0.0
    %1397 = vmatpush1.msra.mxu0 0.0
    %1398 = vmatprep.subr.mxu0 0.0
    %1399 = vmatpush1.msra.mxu0 0.0
    %1400 = vmatprep.subr.mxu0 0.0
    %1401 = vmatpush1.msra.mxu0 0.0
    %1402 = vmatprep.subr.mxu0 0.0
    %1403 = vmatpush1.msra.mxu0 0.0
    %1404 = vmatprep.subr.mxu0 0.0
    %1405 = vmatpush1.msra.mxu0 0.0
    %1406 = vmatprep.subr.mxu0 0.0
    %1407 = vmatpush1.msra.mxu0 0.0
    %1408 = vmatprep.subr.mxu0 0.0
    %1409 = vmatpush1.msra.mxu0 0.0
    %1410 = vmatprep.mubr.f32.mxu0 0.0
    %1411 = vmatmul.mubr.f32.gmra.mrb[0].mxu0 %v1344
    %v1412 = vpop.f32.mrb[0].mxu0
    %v1413 = vadd.f32 0.0, %v1412
    %v1414 = vpop.f32.mrb[0].mxu0
    %1415 = vdwg.mxu0
    %v1417 = vsel %vm491, %v1251, 0
    %1419 = vmatprep.subr.mxu0 0.0
    %1420 = vmatpush1.msra.mxu0 %v1252
    %1421 = vmatprep.subr.mxu0 0.0
    %1422 = vmatpush1.msra.mxu0 %v1253
    %1423 = vmatprep.subr.mxu0 0.0
    %1424 = vmatpush1.msra.mxu0 0.0
    %1425 = vmatprep.subr.mxu0 0.0
    %1426 = vmatpush1.msra.mxu0 0.0
    %1427 = vmatprep.subr.mxu0 0.0
    %1428 = vmatpush1.msra.mxu0 0.0
    %1429 = vmatprep.subr.mxu0 0.0
    %1430 = vmatpush1.msra.mxu0 0.0
    %1431 = vmatprep.subr.mxu0 0.0
    %1432 = vmatpush1.msra.mxu0 0.0
    %1433 = vmatprep.subr.mxu0 0.0
    %1434 = vmatpush1.msra.mxu0 0.0
    %1435 = vmatprep.subr.mxu0 0.0
    %1436 = vmatpush1.msra.mxu0 0.0
    %1437 = vmatprep.subr.mxu0 0.0
    %1438 = vmatpush1.msra.mxu0 0.0
    %1439 = vmatprep.subr.mxu0 0.0
    %1440 = vmatpush1.msra.mxu0 0.0
    %1441 = vmatprep.subr.mxu0 0.0
    %1442 = vmatpush1.msra.mxu0 0.0
    %1443 = vmatprep.subr.mxu0 0.0
    %1444 = vmatpush1.msra.mxu0 0.0
    %1445 = vmatprep.subr.mxu0 0.0
    %1446 = vmatpush1.msra.mxu0 0.0
    %1447 = vmatprep.subr.mxu0 0.0
    %1448 = vmatpush1.msra.mxu0 0.0
    %1449 = vmatprep.subr.mxu0 0.0
    %1450 = vmatpush1.msra.mxu0 0.0
    %1451 = vmatprep.subr.mxu0 0.0
    %1452 = vmatpush1.msra.mxu0 0.0
    %1453 = vmatprep.subr.mxu0 0.0
    %1454 = vmatpush1.msra.mxu0 0.0
    %1455 = vmatprep.subr.mxu0 0.0
    %1456 = vmatpush1.msra.mxu0 0.0
    %1457 = vmatprep.subr.mxu0 0.0
    %1458 = vmatpush1.msra.mxu0 0.0
    %1459 = vmatprep.subr.mxu0 0.0
    %1460 = vmatpush1.msra.mxu0 0.0
    %1461 = vmatprep.subr.mxu0 0.0
    %1462 = vmatpush1.msra.mxu0 0.0
    %1463 = vmatprep.subr.mxu0 0.0
    %1464 = vmatpush1.msra.mxu0 0.0
    %1465 = vmatprep.subr.mxu0 0.0
    %1466 = vmatpush1.msra.mxu0 0.0
    %1467 = vmatprep.subr.mxu0 0.0
    %1468 = vmatpush1.msra.mxu0 0.0
    %1469 = vmatprep.subr.mxu0 0.0
    %1470 = vmatpush1.msra.mxu0 0.0
    %1471 = vmatprep.subr.mxu0 0.0
    %1472 = vmatpush1.msra.mxu0 0.0
    %1473 = vmatprep.subr.mxu0 0.0
    %1474 = vmatpush1.msra.mxu0 0.0
    %1475 = vmatprep.subr.mxu0 0.0
    %1476 = vmatpush1.msra.mxu0 0.0
    %1477 = vmatprep.subr.mxu0 0.0
    %1478 = vmatpush1.msra.mxu0 0.0
    %1479 = vmatprep.subr.mxu0 0.0
    %1480 = vmatpush1.msra.mxu0 0.0
    %1481 = vmatprep.subr.mxu0 0.0
    %1482 = vmatpush1.msra.mxu0 0.0
    %1483 = vmatprep.mubr.f32.mxu0 0.0
    %1484 = vmatmul.mubr.f32.gmra.mrb[0].mxu0 %v1417
    %v1485 = vpop.f32.mrb[0].mxu0
    %v1486 = vadd.f32 %v1413, %v1485
    %v1487 = vpop.f32.mrb[0].mxu0
    %1488 = vdwg.mxu0
    %v1490 = vsel %vm72, %v1486, 0
    %1492 = vmatprep.subr.mxu0 0.0
    %1493 = vmatpush1.msra.mxu0 %v48
    %1494 = vmatprep.subr.mxu0 0.0
    %1495 = vmatpush1.msra.mxu0 %v49
    %1496 = vmatprep.subr.mxu0 0.0
    %1497 = vmatpush1.msra.mxu0 %v50
    %1498 = vmatprep.subr.mxu0 0.0
    %1499 = vmatpush1.msra.mxu0 %v51
    %1500 = vmatprep.subr.mxu0 0.0
    %1501 = vmatpush1.msra.mxu0 0.0
    %1502 = vmatprep.subr.mxu0 0.0
    %1503 = vmatpush1.msra.mxu0 0.0
    %1504 = vmatprep.subr.mxu0 0.0
    %1505 = vmatpush1.msra.mxu0 0.0
    %1506 = vmatprep.subr.mxu0 0.0
    %1507 = vmatpush1.msra.mxu0 0.0
    %1508 = vmatprep.subr.mxu0 0.0
    %1509 = vmatpush1.msra.mxu0 0.0
    %1510 = vmatprep.subr.mxu0 0.0
    %1511 = vmatpush1.msra.mxu0 0.0
    %1512 = vmatprep.subr.mxu0 0.0
    %1513 = vmatpush1.msra.mxu0 0.0
    %1514 = vmatprep.subr.mxu0 0.0
    %1515 = vmatpush1.msra.mxu0 0.0
    %1516 = vmatprep.subr.mxu0 0.0
    %1517 = vmatpush1.msra.mxu0 0.0
    %1518 = vmatprep.subr.mxu0 0.0
    %1519 = vmatpush1.msra.mxu0 0.0
    %1520 = vmatprep.subr.mxu0 0.0
    %1521 = vmatpush1.msra.mxu0 0.0
    %1522 = vmatprep.subr.mxu0 0.0
    %1523 = vmatpush1.msra.mxu0 0.0
    %1524 = vmatprep.subr.mxu0 0.0
    %1525 = vmatpush1.msra.mxu0 0.0
    %1526 = vmatprep.subr.mxu0 0.0
    %1527 = vmatpush1.msra.mxu0 0.0
    %1528 = vmatprep.subr.mxu0 0.0
    %1529 = vmatpush1.msra.mxu0 0.0
    %1530 = vmatprep.subr.mxu0 0.0
    %1531 = vmatpush1.msra.mxu0 0.0
    %1532 = vmatprep.subr.mxu0 0.0
    %1533 = vmatpush1.msra.mxu0 0.0
    %1534 = vmatprep.subr.mxu0 0.0
    %1535 = vmatpush1.msra.mxu0 0.0
    %1536 = vmatprep.subr.mxu0 0.0
    %1537 = vmatpush1.msra.mxu0 0.0
    %1538 = vmatprep.subr.mxu0 0.0
    %1539 = vmatpush1.msra.mxu0 0.0
    %1540 = vmatprep.subr.mxu0 0.0
    %1541 = vmatpush1.msra.mxu0 0.0
    %1542 = vmatprep.subr.mxu0 0.0
    %1543 = vmatpush1.msra.mxu0 0.0
    %1544 = vmatprep.subr.mxu0 0.0
    %1545 = vmatpush1.msra.mxu0 0.0
    %1546 = vmatprep.subr.mxu0 0.0
    %1547 = vmatpush1.msra.mxu0 0.0
    %1548 = vmatprep.subr.mxu0 0.0
    %1549 = vmatpush1.msra.mxu0 0.0
    %1550 = vmatprep.subr.mxu0 0.0
    %1551 = vmatpush1.msra.mxu0 0.0
    %1552 = vmatprep.subr.mxu0 0.0
    %1553 = vmatpush1.msra.mxu0 0.0
    %1554 = vmatprep.subr.mxu0 0.0
    %1555 = vmatpush1.msra.mxu0 0.0
    %1556 = vmatprep.mubr.f32.mxu0 0.0
    %1557 = vmatmul.mubr.f32.gmra.mrb[0].mxu0 %v1490
    %v1558 = vpop.f32.mrb[0].mxu0
    %v1559 = vadd.f32 0.0, %v1558
    %v1560 = vpop.f32.mrb[0].mxu0
    %1561 = vdwg.mxu0
    %v1562 = vadd.f32 %v1057, %v1559
    %v1563 = vmul.f32 %v1562, %v1562
    %v1564 = vsel %vm207, %v1563, 0.0
    %1565 = vadd.xlane.f32.xlu0 %v1564
    %v1566 = vpop.xlane.xlu0 %1565
    %v1567 = vmul.f32 %v1566, %v79
    %v1568 = vadd.f32 %v1567, 1e-06
    %v1569 = vrsqrt.pop %v1568
    %v1570 = vmul.f32 %v1562, %v1569
    %v1571 = vmul.f32 %v1570, %v34
    %v1573 = vsel %vm72, %v1571, 0
    %1575 = vmatprep.subr.mxu0 0.0
    %1576 = vmatpush1.msra.mxu0 %v52
    %1577 = vmatprep.subr.mxu0 0.0
    %1578 = vmatpush1.msra.mxu0 %v53
    %1579 = vmatprep.subr.mxu0 0.0
    %1580 = vmatpush1.msra.mxu0 %v54
    %1581 = vmatprep.subr.mxu0 0.0
    %1582 = vmatpush1.msra.mxu0 %v55
    %1583 = vmatprep.subr.mxu0 0.0
    %1584 = vmatpush1.msra.mxu0 0.0
    %1585 = vmatprep.subr.mxu0 0.0
    %1586 = vmatpush1.msra.mxu0 0.0
    %1587 = vmatprep.subr.mxu0 0.0
    %1588 = vmatpush1.msra.mxu0 0.0
    %1589 = vmatprep.subr.mxu0 0.0
    %1590 = vmatpush1.msra.mxu0 0.0
    %1591 = vmatprep.subr.mxu0 0.0
    %1592 = vmatpush1.msra.mxu0 0.0
    %1593 = vmatprep.subr.mxu0 0.0
    %1594 = vmatpush1.msra.mxu0 0.0
    %1595 = vmatprep.subr.mxu0 0.0
    %1596 = vmatpush1.msra.mxu0 0.0
    %1597 = vmatprep.subr.mxu0 0.0
    %1598 = vmatpush1.msra.mxu0 0.0
    %1599 = vmatprep.subr.mxu0 0.0
    %1600 = vmatpush1.msra.mxu0 0.0
    %1601 = vmatprep.subr.mxu0 0.0
    %1602 = vmatpush1.msra.mxu0 0.0
    %1603 = vmatprep.subr.mxu0 0.0
    %1604 = vmatpush1.msra.mxu0 0.0
    %1605 = vmatprep.subr.mxu0 0.0
    %1606 = vmatpush1.msra.mxu0 0.0
    %1607 = vmatprep.subr.mxu0 0.0
    %1608 = vmatpush1.msra.mxu0 0.0
    %1609 = vmatprep.subr.mxu0 0.0
    %1610 = vmatpush1.msra.mxu0 0.0
    %1611 = vmatprep.subr.mxu0 0.0
    %1612 = vmatpush1.msra.mxu0 0.0
    %1613 = vmatprep.subr.mxu0 0.0
    %1614 = vmatpush1.msra.mxu0 0.0
    %1615 = vmatprep.subr.mxu0 0.0
    %1616 = vmatpush1.msra.mxu0 0.0
    %1617 = vmatprep.subr.mxu0 0.0
    %1618 = vmatpush1.msra.mxu0 0.0
    %1619 = vmatprep.subr.mxu0 0.0
    %1620 = vmatpush1.msra.mxu0 0.0
    %1621 = vmatprep.subr.mxu0 0.0
    %1622 = vmatpush1.msra.mxu0 0.0
    %1623 = vmatprep.subr.mxu0 0.0
    %1624 = vmatpush1.msra.mxu0 0.0
    %1625 = vmatprep.subr.mxu0 0.0
    %1626 = vmatpush1.msra.mxu0 0.0
    %1627 = vmatprep.subr.mxu0 0.0
    %1628 = vmatpush1.msra.mxu0 0.0
    %1629 = vmatprep.subr.mxu0 0.0
    %1630 = vmatpush1.msra.mxu0 0.0
    %1631 = vmatprep.subr.mxu0 0.0
    %1632 = vmatpush1.msra.mxu0 0.0
    %1633 = vmatprep.subr.mxu0 0.0
    %1634 = vmatpush1.msra.mxu0 0.0
    %1635 = vmatprep.subr.mxu0 0.0
    %1636 = vmatpush1.msra.mxu0 0.0
    %1637 = vmatprep.subr.mxu0 0.0
    %1638 = vmatpush1.msra.mxu0 0.0
    %1639 = vmatprep.mubr.f32.mxu0 0.0
    %1640 = vmatmul.mubr.f32.gmra.mrb[0].mxu0 %v1573
    %v1641 = vpop.f32.mrb[0].mxu0
    %v1642 = vadd.f32 0.0, %v1641
    %v1643 = vpop.f32.mrb[0].mxu0
    %1644 = vdwg.mxu0
    %v1645 = vxor.u32 %v1642, 2147483648
    %v1646 = vmul.f32 %v1645, 1.442695
    %v1647 = vpow.pop %v1646
    %v1648 = vadd.f32 %v1647, 1.0
    %v1649 = vrcp.pop %v1648
    %v1650 = vmul.f32 1.0, %v1649
    %v1651 = vmul.f32 %v1642, %v1650
    %1653 = vrot.lane.b32.xlu0 %v1642, 64
    %v1654 = vpop.permute.xlu0 %1653
    %v1656 = vmul.f32 %v1651, %v1654
    %v1658 = vsel %vm806, %v1656, 0
    %1660 = vmatprep.subr.mxu0 0.0
    %1661 = vmatpush1.msra.mxu0 %v56
    %1662 = vmatprep.subr.mxu0 0.0
    %1663 = vmatpush1.msra.mxu0 %v57
    %1664 = vmatprep.subr.mxu0 0.0
    %1665 = vmatpush1.msra.mxu0 %v58
    %1666 = vmatprep.subr.mxu0 0.0
    %1667 = vmatpush1.msra.mxu0 %v59
    %1668 = vmatprep.subr.mxu0 0.0
    %1669 = vmatpush1.msra.mxu0 %v60
    %1670 = vmatprep.subr.mxu0 0.0
    %1671 = vmatpush1.msra.mxu0 %v61
    %1672 = vmatprep.subr.mxu0 0.0
    %1673 = vmatpush1.msra.mxu0 %v62
    %1674 = vmatprep.subr.mxu0 0.0
    %1675 = vmatpush1.msra.mxu0 %v63
    %1676 = vmatprep.subr.mxu0 0.0
    %1677 = vmatpush1.msra.mxu0 0.0
    %1678 = vmatprep.subr.mxu0 0.0
    %1679 = vmatpush1.msra.mxu0 0.0
    %1680 = vmatprep.subr.mxu0 0.0
    %1681 = vmatpush1.msra.mxu0 0.0
    %1682 = vmatprep.subr.mxu0 0.0
    %1683 = vmatpush1.msra.mxu0 0.0
    %1684 = vmatprep.subr.mxu0 0.0
    %1685 = vmatpush1.msra.mxu0 0.0
    %1686 = vmatprep.subr.mxu0 0.0
    %1687 = vmatpush1.msra.mxu0 0.0
    %1688 = vmatprep.subr.mxu0 0.0
    %1689 = vmatpush1.msra.mxu0 0.0
    %1690 = vmatprep.subr.mxu0 0.0
    %1691 = vmatpush1.msra.mxu0 0.0
    %1692 = vmatprep.subr.mxu0 0.0
    %1693 = vmatpush1.msra.mxu0 0.0
    %1694 = vmatprep.subr.mxu0 0.0
    %1695 = vmatpush1.msra.mxu0 0.0
    %1696 = vmatprep.subr.mxu0 0.0
    %1697 = vmatpush1.msra.mxu0 0.0
    %1698 = vmatprep.subr.mxu0 0.0
    %1699 = vmatpush1.msra.mxu0 0.0
    %1700 = vmatprep.subr.mxu0 0.0
    %1701 = vmatpush1.msra.mxu0 0.0
    %1702 = vmatprep.subr.mxu0 0.0
    %1703 = vmatpush1.msra.mxu0 0.0
    %1704 = vmatprep.subr.mxu0 0.0
    %1705 = vmatpush1.msra.mxu0 0.0
    %1706 = vmatprep.subr.mxu0 0.0
    %1707 = vmatpush1.msra.mxu0 0.0
    %1708 = vmatprep.subr.mxu0 0.0
    %1709 = vmatpush1.msra.mxu0 0.0
    %1710 = vmatprep.subr.mxu0 0.0
    %1711 = vmatpush1.msra.mxu0 0.0
    %1712 = vmatprep.subr.mxu0 0.0
    %1713 = vmatpush1.msra.mxu0 0.0
    %1714 = vmatprep.subr.mxu0 0.0
    %1715 = vmatpush1.msra.mxu0 0.0
    %1716 = vmatprep.subr.mxu0 0.0
    %1717 = vmatpush1.msra.mxu0 0.0
    %1718 = vmatprep.subr.mxu0 0.0
    %1719 = vmatpush1.msra.mxu0 0.0
    %1720 = vmatprep.subr.mxu0 0.0
    %1721 = vmatpush1.msra.mxu0 0.0
    %1722 = vmatprep.subr.mxu0 0.0
    %1723 = vmatpush1.msra.mxu0 0.0
    %1724 = vmatprep.mubr.f32.mxu0 0.0
    %1725 = vmatmul.mubr.f32.gmra.mrb[0].mxu0 %v1658
    %v1726 = vpop.f32.mrb[0].mxu0
    %v1727 = vadd.f32 0.0, %v1726
    %v1728 = vpop.f32.mrb[0].mxu0
    %1729 = vdwg.mxu0
    %v1730 = vadd.f32 %v1562, %v1727
    %v1731 = vmul.f32 %v1730, %v1730
    %v1732 = vsel %vm207, %v1731, 0.0
    %1733 = vadd.xlane.f32.xlu0 %v1732
    %v1734 = vpop.xlane.xlu0 %1733
    %v1735 = vmul.f32 %v1734, %v79
    %v1736 = vadd.f32 %v1735, 1e-06
    %v1737 = vrsqrt.pop %v1736
    %v1738 = vmul.f32 %v1730, %v1737
    %v1739 = vmul.f32 %v1738, %v35
    %v1741 = vsel %vm72, %v1739, 0
    %1743 = vmatprep.subr.mxu0 0.0
    %1744 = vmatpush1.msra.mxu0 %v64
    %1745 = vmatprep.subr.mxu0 0.0
    %1746 = vmatpush1.msra.mxu0 %v65
    %1747 = vmatprep.subr.mxu0 0.0
    %1748 = vmatpush1.msra.mxu0 %v66
    %1749 = vmatprep.subr.mxu0 0.0
    %1750 = vmatpush1.msra.mxu0 %v67
    %1751 = vmatprep.subr.mxu0 0.0
    %1752 = vmatpush1.msra.mxu0 0.0
    %1753 = vmatprep.subr.mxu0 0.0
    %1754 = vmatpush1.msra.mxu0 0.0
    %1755 = vmatprep.subr.mxu0 0.0
    %1756 = vmatpush1.msra.mxu0 0.0
    %1757 = vmatprep.subr.mxu0 0.0
    %1758 = vmatpush1.msra.mxu0 0.0
    %1759 = vmatprep.subr.mxu0 0.0
    %1760 = vmatpush1.msra.mxu0 0.0
    %1761 = vmatprep.subr.mxu0 0.0
    %1762 = vmatpush1.msra.mxu0 0.0
    %1763 = vmatprep.subr.mxu0 0.0
    %1764 = vmatpush1.msra.mxu0 0.0
    %1765 = vmatprep.subr.mxu0 0.0
    %1766 = vmatpush1.msra.mxu0 0.0
    %1767 = vmatprep.subr.mxu0 0.0
    %1768 = vmatpush1.msra.mxu0 0.0
    %1769 = vmatprep.subr.mxu0 0.0
    %1770 = vmatpush1.msra.mxu0 0.0
    %1771 = vmatprep.subr.mxu0 0.0
    %1772 = vmatpush1.msra.mxu0 0.0
    %1773 = vmatprep.subr.mxu0 0.0
    %1774 = vmatpush1.msra.mxu0 0.0
    %1775 = vmatprep.subr.mxu0 0.0
    %1776 = vmatpush1.msra.mxu0 0.0
    %1777 = vmatprep.subr.mxu0 0.0
    %1778 = vmatpush1.msra.mxu0 0.0
    %1779 = vmatprep.subr.mxu0 0.0
    %1780 = vmatpush1.msra.mxu0 0.0
    %1781 = vmatprep.subr.mxu0 0.0
    %1782 = vmatpush1.msra.mxu0 0.0
    %1783 = vmatprep.subr.mxu0 0.0
    %1784 = vmatpush1.msra.mxu0 0.0
    %1785 = vmatprep.subr.mxu0 0.0
    %1786 = vmatpush1.msra.mxu0 0.0
    %1787 = vmatprep.subr.mxu0 0.0
    %1788 = vmatpush1.msra.mxu0 0.0
    %1789 = vmatprep.subr.mxu0 0.0
    %1790 = vmatpush1.msra.mxu0 0.0
    %1791 = vmatprep.subr.mxu0 0.0
    %1792 = vmatpush1.msra.mxu0 0.0
    %1793 = vmatprep.subr.mxu0 0.0
    %1794 = vmatpush1.msra.mxu0 0.0
    %1795 = vmatprep.subr.mxu0 0.0
    %1796 = vmatpush1.msra.mxu0 0.0
    %1797 = vmatprep.subr.mxu0 0.0
    %1798 = vmatpush1.msra.mxu0 0.0
    %1799 = vmatprep.subr.mxu0 0.0
    %1800 = vmatpush1.msra.mxu0 0.0
    %1801 = vmatprep.subr.mxu0 0.0
    %1802 = vmatpush1.msra.mxu0 0.0
    %1803 = vmatprep.subr.mxu0 0.0
    %1804 = vmatpush1.msra.mxu0 0.0
    %1805 = vmatprep.subr.mxu0 0.0
    %1806 = vmatpush1.msra.mxu0 0.0
    %1807 = vmatprep.mubr.f32.mxu0 0.0
    %1808 = vmatmul.mubr.f32.gmra.mrb[0].mxu0 %v1741
    %v1809 = vpop.f32.mrb[0].mxu0
    %v1810 = vadd.f32 0.0, %v1809
    %v1811 = vpop.f32.mrb[0].mxu0
    %1812 = vdwg.mxu0
    %v1813 = vsel %vm963, %v1810, -1e+30
    %v1814 = vsel %vm965, %v1813, -inf
    %1815 = vmax.xlane.f32.xlu0 %v1814
    %v1816 = vpop.xlane.xlu0 %1815
    %vm1817 = vcmp.ge.f32.partialorder %v1813, %v1816
    %v1818 = vsel %vm1817, %v970, 128.0
    %v1819 = vsel %vm965, %v1818, inf
    %1820 = vmin.xlane.f32.xlu0 %v1819
    %v1821 = vpop.xlane.xlu0 %1820
    %v1822 = vcvt.f32.s32.to.zero.pseudo %v1821
    %v1823 = vsub.f32 %v1813, %v1816
    %v1824 = vmul.f32 %v1823, 1.442695
    %v1825 = vpow.pop %v1824
    %v1826 = vsel %vm965, %v1825, 0.0
    %1827 = vadd.xlane.f32.xlu0 %v1826
    %v1828 = vpop.xlane.xlu0 %1827
    %v1829 = vrcp.pop %v1828
    %v1830 = vmin.f32 %v1829, 1.0
    %v1831 = vcvt.s32.f32 %v1822
    %vm1832 = vcmp.eq.s32.totalorder %v194, %v1822
    %v1833 = vsel %vm1832, 1.0, 0.0
    %v1835 = vsel %vm806, %v1833, 0
    %1837 = vmatprep.subr.mxu0 0.0
    %1838 = vmatpush1.msra.mxu0 %v36
    %1839 = vmatprep.subr.mxu0 0.0
    %1840 = vmatpush1.msra.mxu0 %v37
    %1841 = vmatprep.subr.mxu0 0.0
    %1842 = vmatpush1.msra.mxu0 %v38
    %1843 = vmatprep.subr.mxu0 0.0
    %1844 = vmatpush1.msra.mxu0 %v39
    %1845 = vmatprep.subr.mxu0 0.0
    %1846 = vmatpush1.msra.mxu0 %v40
    %1847 = vmatprep.subr.mxu0 0.0
    %1848 = vmatpush1.msra.mxu0 %v41
    %1849 = vmatprep.subr.mxu0 0.0
    %1850 = vmatpush1.msra.mxu0 %v42
    %1851 = vmatprep.subr.mxu0 0.0
    %1852 = vmatpush1.msra.mxu0 %v43
    %1853 = vmatprep.subr.mxu0 0.0
    %1854 = vmatpush1.msra.mxu0 0.0
    %1855 = vmatprep.subr.mxu0 0.0
    %1856 = vmatpush1.msra.mxu0 0.0
    %1857 = vmatprep.subr.mxu0 0.0
    %1858 = vmatpush1.msra.mxu0 0.0
    %1859 = vmatprep.subr.mxu0 0.0
    %1860 = vmatpush1.msra.mxu0 0.0
    %1861 = vmatprep.subr.mxu0 0.0
    %1862 = vmatpush1.msra.mxu0 0.0
    %1863 = vmatprep.subr.mxu0 0.0
    %1864 = vmatpush1.msra.mxu0 0.0
    %1865 = vmatprep.subr.mxu0 0.0
    %1866 = vmatpush1.msra.mxu0 0.0
    %1867 = vmatprep.subr.mxu0 0.0
    %1868 = vmatpush1.msra.mxu0 0.0
    %1869 = vmatprep.subr.mxu0 0.0
    %1870 = vmatpush1.msra.mxu0 0.0
    %1871 = vmatprep.subr.mxu0 0.0
    %1872 = vmatpush1.msra.mxu0 0.0
    %1873 = vmatprep.subr.mxu0 0.0
    %1874 = vmatpush1.msra.mxu0 0.0
    %1875 = vmatprep.subr.mxu0 0.0
    %1876 = vmatpush1.msra.mxu0 0.0
    %1877 = vmatprep.subr.mxu0 0.0
    %1878 = vmatpush1.msra.mxu0 0.0
    %1879 = vmatprep.subr.mxu0 0.0
    %1880 = vmatpush1.msra.mxu0 0.0
    %1881 = vmatprep.subr.mxu0 0.0
    %1882 = vmatpush1.msra.mxu0 0.0
    %1883 = vmatprep.subr.mxu0 0.0
    %1884 = vmatpush1.msra.mxu0 0.0
    %1885 = vmatprep.subr.mxu0 0.0
    %1886 = vmatpush1.msra.mxu0 0.0
    %1887 = vmatprep.subr.mxu0 0.0
    %1888 = vmatpush1.msra.mxu0 0.0
    %1889 = vmatprep.subr.mxu0 0.0
    %1890 = vmatpush1.msra.mxu0 0.0
    %1891 = vmatprep.subr.mxu0 0.0
    %1892 = vmatpush1.msra.mxu0 0.0
    %1893 = vmatprep.subr.mxu0 0.0
    %1894 = vmatpush1.msra.mxu0 0.0
    %1895 = vmatprep.subr.mxu0 0.0
    %1896 = vmatpush1.msra.mxu0 0.0
    %1897 = vmatprep.subr.mxu0 0.0
    %1898 = vmatpush1.msra.mxu0 0.0
    %1899 = vmatprep.subr.mxu0 0.0
    %1900 = vmatpush1.msra.mxu0 0.0
    %1901 = vmatprep.mubr.f32.mxu0 0.0
    %1902 = vmatmul.mubr.f32.gmra.mrb[0].mxu0 %v1835
    %v1903 = vpop.f32.mrb[0].mxu0
    %v1904 = vadd.f32 0.0, %v1903
    %v1905 = vpop.f32.mrb[0].mxu0
    %1906 = vdwg.mxu0
    %s1907 = sadd.s32 %s32, 1
    %v1908 = vmul.f32 %v1904, %v1904
    %v1909 = vsel %vm207, %v1908, 0.0
    %1910 = vadd.xlane.f32.xlu0 %v1909
    %v1911 = vpop.xlane.xlu0 %1910
    %v1912 = vmul.f32 %v1911, %v79
    %v1913 = vadd.f32 %v1912, 1e-06
    %v1914 = vrsqrt.pop %v1913
    %v1915 = vmul.f32 %v1904, %v1914
    %v1916 = vmul.f32 %v1915, %v33
    %v1918 = vsel %vm72, %v1916, 0
    %1920 = vmatprep.subr.mxu0 0.0
    %1921 = vmatpush1.msra.mxu0 %v44
    %1922 = vmatprep.subr.mxu0 0.0
    %1923 = vmatpush1.msra.mxu0 %v45
    %1924 = vmatprep.subr.mxu0 0.0
    %1925 = vmatpush1.msra.mxu0 %v46
    %1926 = vmatprep.subr.mxu0 0.0
    %1927 = vmatpush1.msra.mxu0 %v47
    %1928 = vmatprep.subr.mxu0 0.0
    %1929 = vmatpush1.msra.mxu0 0.0
    %1930 = vmatprep.subr.mxu0 0.0
    %1931 = vmatpush1.msra.mxu0 0.0
    %1932 = vmatprep.subr.mxu0 0.0
    %1933 = vmatpush1.msra.mxu0 0.0
    %1934 = vmatprep.subr.mxu0 0.0
    %1935 = vmatpush1.msra.mxu0 0.0
    %1936 = vmatprep.subr.mxu0 0.0
    %1937 = vmatpush1.msra.mxu0 0.0
    %1938 = vmatprep.subr.mxu0 0.0
    %1939 = vmatpush1.msra.mxu0 0.0
    %1940 = vmatprep.subr.mxu0 0.0
    %1941 = vmatpush1.msra.mxu0 0.0
    %1942 = vmatprep.subr.mxu0 0.0
    %1943 = vmatpush1.msra.mxu0 0.0
    %1944 = vmatprep.subr.mxu0 0.0
    %1945 = vmatpush1.msra.mxu0 0.0
    %1946 = vmatprep.subr.mxu0 0.0
    %1947 = vmatpush1.msra.mxu0 0.0
    %1948 = vmatprep.subr.mxu0 0.0
    %1949 = vmatpush1.msra.mxu0 0.0
    %1950 = vmatprep.subr.mxu0 0.0
    %1951 = vmatpush1.msra.mxu0 0.0
    %1952 = vmatprep.subr.mxu0 0.0
    %1953 = vmatpush1.msra.mxu0 0.0
    %1954 = vmatprep.subr.mxu0 0.0
    %1955 = vmatpush1.msra.mxu0 0.0
    %1956 = vmatprep.subr.mxu0 0.0
    %1957 = vmatpush1.msra.mxu0 0.0
    %1958 = vmatprep.subr.mxu0 0.0
    %1959 = vmatpush1.msra.mxu0 0.0
    %1960 = vmatprep.subr.mxu0 0.0
    %1961 = vmatpush1.msra.mxu0 0.0
    %1962 = vmatprep.subr.mxu0 0.0
    %1963 = vmatpush1.msra.mxu0 0.0
    %1964 = vmatprep.subr.mxu0 0.0
    %1965 = vmatpush1.msra.mxu0 0.0
    %1966 = vmatprep.subr.mxu0 0.0
    %1967 = vmatpush1.msra.mxu0 0.0
    %1968 = vmatprep.subr.mxu0 0.0
    %1969 = vmatpush1.msra.mxu0 0.0
    %1970 = vmatprep.subr.mxu0 0.0
    %1971 = vmatpush1.msra.mxu0 0.0
    %1972 = vmatprep.subr.mxu0 0.0
    %1973 = vmatpush1.msra.mxu0 0.0
    %1974 = vmatprep.subr.mxu0 0.0
    %1975 = vmatpush1.msra.mxu0 0.0
    %1976 = vmatprep.subr.mxu0 0.0
    %1977 = vmatpush1.msra.mxu0 0.0
    %1978 = vmatprep.subr.mxu0 0.0
    %1979 = vmatpush1.msra.mxu0 0.0
    %1980 = vmatprep.subr.mxu0 0.0
    %1981 = vmatpush1.msra.mxu0 0.0
    %1982 = vmatprep.subr.mxu0 0.0
    %1983 = vmatpush1.msra.mxu0 0.0
    %1984 = vmatprep.mubr.f32.mxu0 0.0
    %1985 = vmatmul.mubr.f32.gmra.mrb[0].mxu0 %v1918
    %v1986 = vpop.f32.mrb[0].mxu0
    %v1987 = vadd.f32 0.0, %v1986
    %v1988 = vpop.f32.mrb[0].mxu0
    %1989 = vdwg.mxu0
    %1991 = vrot.lane.b32.xlu0 %v1987, 96
    %v1992 = vpop.permute.xlu0 %1991
    %s1994 = scalar_lea.vmem [#allocation2], %s1907
    %1995 = vst.msk [vmem:[%s1994] sm:$0x1] %vm207, %v1992
    %1996 = vrot.lane.b32.xlu0 %v1987, 64
    %v1997 = vpop.permute.xlu0 %1996
    %s1999 = scalar_lea.vmem [#allocation3], %s1907
    %2000 = vst.msk [vmem:[%s1999] sm:$0x1] %vm207, %v1997
    %v2001 = vld [vmem:[#allocation2] sm:$0xff]
    %v2002 = vld [vmem:[#allocation2 + $0x8] sm:$0xff]
    %v2003 = vld [vmem:[#allocation3] sm:$0xff]
    %v2004 = vld [vmem:[#allocation3 + $0x8] sm:$0xff]
    %v2005 = vstv %s1907
    %vm2006 = vcmp.le.s32.totalorder %v194, %v2005
    %v2007 = vmul.f32 %v1987, %v198
    %v2009 = vsel %vm72, %v2007, 0
    %v2012 = vsel %vm72, %v2001, 0
    %v2015 = vsel %vm72, %v2002, 0
    %2017 = vmatprep.subr.mxu0 0.0
    %2018 = vmatpush1.xpose.msra.mxu0 %v2012
    %2019 = vmatprep.subr.mxu0 0.0
    %2020 = vmatpush1.xpose.msra.mxu0 %v2015
    %2021 = vmatprep.subr.mxu0 0.0
    %2022 = vmatpush1.xpose.msra.mxu0 0.0
    %2023 = vmatprep.subr.mxu0 0.0
    %2024 = vmatpush1.xpose.msra.mxu0 0.0
    %2025 = vmatprep.subr.mxu0 0.0
    %2026 = vmatpush1.xpose.msra.mxu0 0.0
    %2027 = vmatprep.subr.mxu0 0.0
    %2028 = vmatpush1.xpose.msra.mxu0 0.0
    %2029 = vmatprep.subr.mxu0 0.0
    %2030 = vmatpush1.xpose.msra.mxu0 0.0
    %2031 = vmatprep.subr.mxu0 0.0
    %2032 = vmatpush1.xpose.msra.mxu0 0.0
    %2033 = vmatprep.subr.mxu0 0.0
    %2034 = vmatpush1.xpose.msra.mxu0 0.0
    %2035 = vmatprep.subr.mxu0 0.0
    %2036 = vmatpush1.xpose.msra.mxu0 0.0
    %2037 = vmatprep.subr.mxu0 0.0
    %2038 = vmatpush1.xpose.msra.mxu0 0.0
    %2039 = vmatprep.subr.mxu0 0.0
    %2040 = vmatpush1.xpose.msra.mxu0 0.0
    %2041 = vmatprep.subr.mxu0 0.0
    %2042 = vmatpush1.xpose.msra.mxu0 0.0
    %2043 = vmatprep.subr.mxu0 0.0
    %2044 = vmatpush1.xpose.msra.mxu0 0.0
    %2045 = vmatprep.subr.mxu0 0.0
    %2046 = vmatpush1.xpose.msra.mxu0 0.0
    %2047 = vmatprep.subr.mxu0 0.0
    %2048 = vmatpush1.xpose.msra.mxu0 0.0
    %2049 = vmatprep.subr.mxu0 0.0
    %2050 = vmatpush1.xpose.msra.mxu0 0.0
    %2051 = vmatprep.subr.mxu0 0.0
    %2052 = vmatpush1.xpose.msra.mxu0 0.0
    %2053 = vmatprep.subr.mxu0 0.0
    %2054 = vmatpush1.xpose.msra.mxu0 0.0
    %2055 = vmatprep.subr.mxu0 0.0
    %2056 = vmatpush1.xpose.msra.mxu0 0.0
    %2057 = vmatprep.subr.mxu0 0.0
    %2058 = vmatpush1.xpose.msra.mxu0 0.0
    %2059 = vmatprep.subr.mxu0 0.0
    %2060 = vmatpush1.xpose.msra.mxu0 0.0
    %2061 = vmatprep.subr.mxu0 0.0
    %2062 = vmatpush1.xpose.msra.mxu0 0.0
    %2063 = vmatprep.subr.mxu0 0.0
    %2064 = vmatpush1.xpose.msra.mxu0 0.0
    %2065 = vmatprep.subr.mxu0 0.0
    %2066 = vmatpush1.xpose.msra.mxu0 0.0
    %2067 = vmatprep.subr.mxu0 0.0
    %2068 = vmatpush1.xpose.msra.mxu0 0.0
    %2069 = vmatprep.subr.mxu0 0.0
    %2070 = vmatpush1.xpose.msra.mxu0 0.0
    %2071 = vmatprep.subr.mxu0 0.0
    %2072 = vmatpush1.xpose.msra.mxu0 0.0
    %2073 = vmatprep.subr.mxu0 0.0
    %2074 = vmatpush1.xpose.msra.mxu0 0.0
    %2075 = vmatprep.subr.mxu0 0.0
    %2076 = vmatpush1.xpose.msra.mxu0 0.0
    %2077 = vmatprep.subr.mxu0 0.0
    %2078 = vmatpush1.xpose.msra.mxu0 0.0
    %2079 = vmatprep.subr.mxu0 0.0
    %2080 = vmatpush1.xpose.msra.mxu0 0.0
    %2081 = vmatprep.mubr.f32.mxu0 0.0
    %2082 = vmatmul.mubr.f32.gmra.mrb[0].mxu0 %v2009
    %v2083 = vpop.f32.mrb[0].mxu0
    %v2084 = vadd.f32 0.0, %v2083
    %v2085 = vpop.f32.mrb[0].mxu0
    %2086 = vdwg.mxu0
    %v2087 = vmul.f32 %v2084, 0.25
    %v2088 = vsel %vm2006, %v2087, -1e+30
    %v2089 = vsel %vm388, %v2088, -inf
    %2090 = vmax.xlane.f32.xlu0 %v2089
    %v2091 = vpop.xlane.xlu0 %2090
    %v2092 = vsub.f32 %v2088, %v2091
    %v2093 = vmul.f32 %v2092, 1.442695
    %v2094 = vpow.pop %v2093
    %v2095 = vsel %vm388, %v2094, 0.0
    %2096 = vadd.xlane.f32.xlu0 %v2095
    %v2097 = vpop.xlane.xlu0 %2096
    %v2098 = vrcp.pop %v2097
    %v2099 = vmul.f32 %v2094, %v2098
    %v2100 = vmul.f32 %v2003, %v198
    %v2101 = vmul.f32 %v2004, %v198
    %v2102 = vmul.f32 %v1987, %v202
    %v2104 = vsel %vm72, %v2102, 0
    %2106 = vmatprep.subr.mxu0 0.0
    %2107 = vmatpush1.xpose.msra.mxu0 %v2012
    %2108 = vmatprep.subr.mxu0 0.0
    %2109 = vmatpush1.xpose.msra.mxu0 %v2015
    %2110 = vmatprep.subr.mxu0 0.0
    %2111 = vmatpush1.xpose.msra.mxu0 0.0
    %2112 = vmatprep.subr.mxu0 0.0
    %2113 = vmatpush1.xpose.msra.mxu0 0.0
    %2114 = vmatprep.subr.mxu0 0.0
    %2115 = vmatpush1.xpose.msra.mxu0 0.0
    %2116 = vmatprep.subr.mxu0 0.0
    %2117 = vmatpush1.xpose.msra.mxu0 0.0
    %2118 = vmatprep.subr.mxu0 0.0
    %2119 = vmatpush1.xpose.msra.mxu0 0.0
    %2120 = vmatprep.subr.mxu0 0.0
    %2121 = vmatpush1.xpose.msra.mxu0 0.0
    %2122 = vmatprep.subr.mxu0 0.0
    %2123 = vmatpush1.xpose.msra.mxu0 0.0
    %2124 = vmatprep.subr.mxu0 0.0
    %2125 = vmatpush1.xpose.msra.mxu0 0.0
    %2126 = vmatprep.subr.mxu0 0.0
    %2127 = vmatpush1.xpose.msra.mxu0 0.0
    %2128 = vmatprep.subr.mxu0 0.0
    %2129 = vmatpush1.xpose.msra.mxu0 0.0
    %2130 = vmatprep.subr.mxu0 0.0
    %2131 = vmatpush1.xpose.msra.mxu0 0.0
    %2132 = vmatprep.subr.mxu0 0.0
    %2133 = vmatpush1.xpose.msra.mxu0 0.0
    %2134 = vmatprep.subr.mxu0 0.0
    %2135 = vmatpush1.xpose.msra.mxu0 0.0
    %2136 = vmatprep.subr.mxu0 0.0
    %2137 = vmatpush1.xpose.msra.mxu0 0.0
    %2138 = vmatprep.subr.mxu0 0.0
    %2139 = vmatpush1.xpose.msra.mxu0 0.0
    %2140 = vmatprep.subr.mxu0 0.0
    %2141 = vmatpush1.xpose.msra.mxu0 0.0
    %2142 = vmatprep.subr.mxu0 0.0
    %2143 = vmatpush1.xpose.msra.mxu0 0.0
    %2144 = vmatprep.subr.mxu0 0.0
    %2145 = vmatpush1.xpose.msra.mxu0 0.0
    %2146 = vmatprep.subr.mxu0 0.0
    %2147 = vmatpush1.xpose.msra.mxu0 0.0
    %2148 = vmatprep.subr.mxu0 0.0
    %2149 = vmatpush1.xpose.msra.mxu0 0.0
    %2150 = vmatprep.subr.mxu0 0.0
    %2151 = vmatpush1.xpose.msra.mxu0 0.0
    %2152 = vmatprep.subr.mxu0 0.0
    %2153 = vmatpush1.xpose.msra.mxu0 0.0
    %2154 = vmatprep.subr.mxu0 0.0
    %2155 = vmatpush1.xpose.msra.mxu0 0.0
    %2156 = vmatprep.subr.mxu0 0.0
    %2157 = vmatpush1.xpose.msra.mxu0 0.0
    %2158 = vmatprep.subr.mxu0 0.0
    %2159 = vmatpush1.xpose.msra.mxu0 0.0
    %2160 = vmatprep.subr.mxu0 0.0
    %2161 = vmatpush1.xpose.msra.mxu0 0.0
    %2162 = vmatprep.subr.mxu0 0.0
    %2163 = vmatpush1.xpose.msra.mxu0 0.0
    %2164 = vmatprep.subr.mxu0 0.0
    %2165 = vmatpush1.xpose.msra.mxu0 0.0
    %2166 = vmatprep.subr.mxu0 0.0
    %2167 = vmatpush1.xpose.msra.mxu0 0.0
    %2168 = vmatprep.subr.mxu0 0.0
    %2169 = vmatpush1.xpose.msra.mxu0 0.0
    %2170 = vmatprep.mubr.f32.mxu0 0.0
    %2171 = vmatmul.mubr.f32.gmra.mrb[0].mxu0 %v2104
    %v2172 = vpop.f32.mrb[0].mxu0
    %v2173 = vadd.f32 0.0, %v2172
    %v2174 = vpop.f32.mrb[0].mxu0
    %2175 = vdwg.mxu0
    %v2176 = vmul.f32 %v2173, 0.25
    %v2177 = vsel %vm2006, %v2176, -1e+30
    %v2178 = vsel %vm388, %v2177, -inf
    %2179 = vmax.xlane.f32.xlu0 %v2178
    %v2180 = vpop.xlane.xlu0 %2179
    %v2181 = vsub.f32 %v2177, %v2180
    %v2182 = vmul.f32 %v2181, 1.442695
    %v2183 = vpow.pop %v2182
    %v2184 = vsel %vm388, %v2183, 0.0
    %2185 = vadd.xlane.f32.xlu0 %v2184
    %v2186 = vpop.xlane.xlu0 %2185
    %v2187 = vrcp.pop %v2186
    %v2188 = vmul.f32 %v2183, %v2187
    %v2189 = vmul.f32 %v2003, %v202
    %v2190 = vmul.f32 %v2004, %v202
    %v2192 = vsel %vm491, %v2188, 0
    %2194 = vmatprep.subr.mxu0 0.0
    %2195 = vmatpush1.msra.mxu0 %v2189
    %2196 = vmatprep.subr.mxu0 0.0
    %2197 = vmatpush1.msra.mxu0 %v2190
    %2198 = vmatprep.subr.mxu0 0.0
    %2199 = vmatpush1.msra.mxu0 0.0
    %2200 = vmatprep.subr.mxu0 0.0
    %2201 = vmatpush1.msra.mxu0 0.0
    %2202 = vmatprep.subr.mxu0 0.0
    %2203 = vmatpush1.msra.mxu0 0.0
    %2204 = vmatprep.subr.mxu0 0.0
    %2205 = vmatpush1.msra.mxu0 0.0
    %2206 = vmatprep.subr.mxu0 0.0
    %2207 = vmatpush1.msra.mxu0 0.0
    %2208 = vmatprep.subr.mxu0 0.0
    %2209 = vmatpush1.msra.mxu0 0.0
    %2210 = vmatprep.subr.mxu0 0.0
    %2211 = vmatpush1.msra.mxu0 0.0
    %2212 = vmatprep.subr.mxu0 0.0
    %2213 = vmatpush1.msra.mxu0 0.0
    %2214 = vmatprep.subr.mxu0 0.0
    %2215 = vmatpush1.msra.mxu0 0.0
    %2216 = vmatprep.subr.mxu0 0.0
    %2217 = vmatpush1.msra.mxu0 0.0
    %2218 = vmatprep.subr.mxu0 0.0
    %2219 = vmatpush1.msra.mxu0 0.0
    %2220 = vmatprep.subr.mxu0 0.0
    %2221 = vmatpush1.msra.mxu0 0.0
    %2222 = vmatprep.subr.mxu0 0.0
    %2223 = vmatpush1.msra.mxu0 0.0
    %2224 = vmatprep.subr.mxu0 0.0
    %2225 = vmatpush1.msra.mxu0 0.0
    %2226 = vmatprep.subr.mxu0 0.0
    %2227 = vmatpush1.msra.mxu0 0.0
    %2228 = vmatprep.subr.mxu0 0.0
    %2229 = vmatpush1.msra.mxu0 0.0
    %2230 = vmatprep.subr.mxu0 0.0
    %2231 = vmatpush1.msra.mxu0 0.0
    %2232 = vmatprep.subr.mxu0 0.0
    %2233 = vmatpush1.msra.mxu0 0.0
    %2234 = vmatprep.subr.mxu0 0.0
    %2235 = vmatpush1.msra.mxu0 0.0
    %2236 = vmatprep.subr.mxu0 0.0
    %2237 = vmatpush1.msra.mxu0 0.0
    %2238 = vmatprep.subr.mxu0 0.0
    %2239 = vmatpush1.msra.mxu0 0.0
    %2240 = vmatprep.subr.mxu0 0.0
    %2241 = vmatpush1.msra.mxu0 0.0
    %2242 = vmatprep.subr.mxu0 0.0
    %2243 = vmatpush1.msra.mxu0 0.0
    %2244 = vmatprep.subr.mxu0 0.0
    %2245 = vmatpush1.msra.mxu0 0.0
    %2246 = vmatprep.subr.mxu0 0.0
    %2247 = vmatpush1.msra.mxu0 0.0
    %2248 = vmatprep.subr.mxu0 0.0
    %2249 = vmatpush1.msra.mxu0 0.0
    %2250 = vmatprep.subr.mxu0 0.0
    %2251 = vmatpush1.msra.mxu0 0.0
    %2252 = vmatprep.subr.mxu0 0.0
    %2253 = vmatpush1.msra.mxu0 0.0
    %2254 = vmatprep.subr.mxu0 0.0
    %2255 = vmatpush1.msra.mxu0 0.0
    %2256 = vmatprep.subr.mxu0 0.0
    %2257 = vmatpush1.msra.mxu0 0.0
    %2258 = vmatprep.mubr.f32.mxu0 0.0
    %2259 = vmatmul.mubr.f32.gmra.mrb[0].mxu0 %v2192
    %v2260 = vpop.f32.mrb[0].mxu0
    %v2261 = vadd.f32 0.0, %v2260
    %v2262 = vpop.f32.mrb[0].mxu0
    %2263 = vdwg.mxu0
    %v2265 = vsel %vm491, %v2099, 0
    %2267 = vmatprep.subr.mxu0 0.0
    %2268 = vmatpush1.msra.mxu0 %v2100
    %2269 = vmatprep.subr.mxu0 0.0
    %2270 = vmatpush1.msra.mxu0 %v2101
    %2271 = vmatprep.subr.mxu0 0.0
    %2272 = vmatpush1.msra.mxu0 0.0
    %2273 = vmatprep.subr.mxu0 0.0
    %2274 = vmatpush1.msra.mxu0 0.0
    %2275 = vmatprep.subr.mxu0 0.0
    %2276 = vmatpush1.msra.mxu0 0.0
    %2277 = vmatprep.subr.mxu0 0.0
    %2278 = vmatpush1.msra.mxu0 0.0
    %2279 = vmatprep.subr.mxu0 0.0
    %2280 = vmatpush1.msra.mxu0 0.0
    %2281 = vmatprep.subr.mxu0 0.0
    %2282 = vmatpush1.msra.mxu0 0.0
    %2283 = vmatprep.subr.mxu0 0.0
    %2284 = vmatpush1.msra.mxu0 0.0
    %2285 = vmatprep.subr.mxu0 0.0
    %2286 = vmatpush1.msra.mxu0 0.0
    %2287 = vmatprep.subr.mxu0 0.0
    %2288 = vmatpush1.msra.mxu0 0.0
    %2289 = vmatprep.subr.mxu0 0.0
    %2290 = vmatpush1.msra.mxu0 0.0
    %2291 = vmatprep.subr.mxu0 0.0
    %2292 = vmatpush1.msra.mxu0 0.0
    %2293 = vmatprep.subr.mxu0 0.0
    %2294 = vmatpush1.msra.mxu0 0.0
    %2295 = vmatprep.subr.mxu0 0.0
    %2296 = vmatpush1.msra.mxu0 0.0
    %2297 = vmatprep.subr.mxu0 0.0
    %2298 = vmatpush1.msra.mxu0 0.0
    %2299 = vmatprep.subr.mxu0 0.0
    %2300 = vmatpush1.msra.mxu0 0.0
    %2301 = vmatprep.subr.mxu0 0.0
    %2302 = vmatpush1.msra.mxu0 0.0
    %2303 = vmatprep.subr.mxu0 0.0
    %2304 = vmatpush1.msra.mxu0 0.0
    %2305 = vmatprep.subr.mxu0 0.0
    %2306 = vmatpush1.msra.mxu0 0.0
    %2307 = vmatprep.subr.mxu0 0.0
    %2308 = vmatpush1.msra.mxu0 0.0
    %2309 = vmatprep.subr.mxu0 0.0
    %2310 = vmatpush1.msra.mxu0 0.0
    %2311 = vmatprep.subr.mxu0 0.0
    %2312 = vmatpush1.msra.mxu0 0.0
    %2313 = vmatprep.subr.mxu0 0.0
    %2314 = vmatpush1.msra.mxu0 0.0
    %2315 = vmatprep.subr.mxu0 0.0
    %2316 = vmatpush1.msra.mxu0 0.0
    %2317 = vmatprep.subr.mxu0 0.0
    %2318 = vmatpush1.msra.mxu0 0.0
    %2319 = vmatprep.subr.mxu0 0.0
    %2320 = vmatpush1.msra.mxu0 0.0
    %2321 = vmatprep.subr.mxu0 0.0
    %2322 = vmatpush1.msra.mxu0 0.0
    %2323 = vmatprep.subr.mxu0 0.0
    %2324 = vmatpush1.msra.mxu0 0.0
    %2325 = vmatprep.subr.mxu0 0.0
    %2326 = vmatpush1.msra.mxu0 0.0
    %2327 = vmatprep.subr.mxu0 0.0
    %2328 = vmatpush1.msra.mxu0 0.0
    %2329 = vmatprep.subr.mxu0 0.0
    %2330 = vmatpush1.msra.mxu0 0.0
    %2331 = vmatprep.mubr.f32.mxu0 0.0
    %2332 = vmatmul.mubr.f32.gmra.mrb[0].mxu0 %v2265
    %v2333 = vpop.f32.mrb[0].mxu0
    %v2334 = vadd.f32 %v2261, %v2333
    %v2335 = vpop.f32.mrb[0].mxu0
    %2336 = vdwg.mxu0
    %v2338 = vsel %vm72, %v2334, 0
    %2340 = vmatprep.subr.mxu0 0.0
    %2341 = vmatpush1.msra.mxu0 %v48
    %2342 = vmatprep.subr.mxu0 0.0
    %2343 = vmatpush1.msra.mxu0 %v49
    %2344 = vmatprep.subr.mxu0 0.0
    %2345 = vmatpush1.msra.mxu0 %v50
    %2346 = vmatprep.subr.mxu0 0.0
    %2347 = vmatpush1.msra.mxu0 %v51
    %2348 = vmatprep.subr.mxu0 0.0
    %2349 = vmatpush1.msra.mxu0 0.0
    %2350 = vmatprep.subr.mxu0 0.0
    %2351 = vmatpush1.msra.mxu0 0.0
    %2352 = vmatprep.subr.mxu0 0.0
    %2353 = vmatpush1.msra.mxu0 0.0
    %2354 = vmatprep.subr.mxu0 0.0
    %2355 = vmatpush1.msra.mxu0 0.0
    %2356 = vmatprep.subr.mxu0 0.0
    %2357 = vmatpush1.msra.mxu0 0.0
    %2358 = vmatprep.subr.mxu0 0.0
    %2359 = vmatpush1.msra.mxu0 0.0
    %2360 = vmatprep.subr.mxu0 0.0
    %2361 = vmatpush1.msra.mxu0 0.0
    %2362 = vmatprep.subr.mxu0 0.0
    %2363 = vmatpush1.msra.mxu0 0.0
    %2364 = vmatprep.subr.mxu0 0.0
    %2365 = vmatpush1.msra.mxu0 0.0
    %2366 = vmatprep.subr.mxu0 0.0
    %2367 = vmatpush1.msra.mxu0 0.0
    %2368 = vmatprep.subr.mxu0 0.0
    %2369 = vmatpush1.msra.mxu0 0.0
    %2370 = vmatprep.subr.mxu0 0.0
    %2371 = vmatpush1.msra.mxu0 0.0
    %2372 = vmatprep.subr.mxu0 0.0
    %2373 = vmatpush1.msra.mxu0 0.0
    %2374 = vmatprep.subr.mxu0 0.0
    %2375 = vmatpush1.msra.mxu0 0.0
    %2376 = vmatprep.subr.mxu0 0.0
    %2377 = vmatpush1.msra.mxu0 0.0
    %2378 = vmatprep.subr.mxu0 0.0
    %2379 = vmatpush1.msra.mxu0 0.0
    %2380 = vmatprep.subr.mxu0 0.0
    %2381 = vmatpush1.msra.mxu0 0.0
    %2382 = vmatprep.subr.mxu0 0.0
    %2383 = vmatpush1.msra.mxu0 0.0
    %2384 = vmatprep.subr.mxu0 0.0
    %2385 = vmatpush1.msra.mxu0 0.0
    %2386 = vmatprep.subr.mxu0 0.0
    %2387 = vmatpush1.msra.mxu0 0.0
    %2388 = vmatprep.subr.mxu0 0.0
    %2389 = vmatpush1.msra.mxu0 0.0
    %2390 = vmatprep.subr.mxu0 0.0
    %2391 = vmatpush1.msra.mxu0 0.0
    %2392 = vmatprep.subr.mxu0 0.0
    %2393 = vmatpush1.msra.mxu0 0.0
    %2394 = vmatprep.subr.mxu0 0.0
    %2395 = vmatpush1.msra.mxu0 0.0
    %2396 = vmatprep.subr.mxu0 0.0
    %2397 = vmatpush1.msra.mxu0 0.0
    %2398 = vmatprep.subr.mxu0 0.0
    %2399 = vmatpush1.msra.mxu0 0.0
    %2400 = vmatprep.subr.mxu0 0.0
    %2401 = vmatpush1.msra.mxu0 0.0
    %2402 = vmatprep.subr.mxu0 0.0
    %2403 = vmatpush1.msra.mxu0 0.0
    %2404 = vmatprep.mubr.f32.mxu0 0.0
    %2405 = vmatmul.mubr.f32.gmra.mrb[0].mxu0 %v2338
    %v2406 = vpop.f32.mrb[0].mxu0
    %v2407 = vadd.f32 0.0, %v2406
    %v2408 = vpop.f32.mrb[0].mxu0
    %2409 = vdwg.mxu0
    %v2410 = vadd.f32 %v1904, %v2407
    %v2411 = vmul.f32 %v2410, %v2410
    %v2412 = vsel %vm207, %v2411, 0.0
    %2413 = vadd.xlane.f32.xlu0 %v2412
    %v2414 = vpop.xlane.xlu0 %2413
    %v2415 = vmul.f32 %v2414, %v79
    %v2416 = vadd.f32 %v2415, 1e-06
    %v2417 = vrsqrt.pop %v2416
    %v2418 = vmul.f32 %v2410, %v2417
    %v2419 = vmul.f32 %v2418, %v34
    %v2421 = vsel %vm72, %v2419, 0
    %2423 = vmatprep.subr.mxu0 0.0
    %2424 = vmatpush1.msra.mxu0 %v52
    %2425 = vmatprep.subr.mxu0 0.0
    %2426 = vmatpush1.msra.mxu0 %v53
    %2427 = vmatprep.subr.mxu0 0.0
    %2428 = vmatpush1.msra.mxu0 %v54
    %2429 = vmatprep.subr.mxu0 0.0
    %2430 = vmatpush1.msra.mxu0 %v55
    %2431 = vmatprep.subr.mxu0 0.0
    %2432 = vmatpush1.msra.mxu0 0.0
    %2433 = vmatprep.subr.mxu0 0.0
    %2434 = vmatpush1.msra.mxu0 0.0
    %2435 = vmatprep.subr.mxu0 0.0
    %2436 = vmatpush1.msra.mxu0 0.0
    %2437 = vmatprep.subr.mxu0 0.0
    %2438 = vmatpush1.msra.mxu0 0.0
    %2439 = vmatprep.subr.mxu0 0.0
    %2440 = vmatpush1.msra.mxu0 0.0
    %2441 = vmatprep.subr.mxu0 0.0
    %2442 = vmatpush1.msra.mxu0 0.0
    %2443 = vmatprep.subr.mxu0 0.0
    %2444 = vmatpush1.msra.mxu0 0.0
    %2445 = vmatprep.subr.mxu0 0.0
    %2446 = vmatpush1.msra.mxu0 0.0
    %2447 = vmatprep.subr.mxu0 0.0
    %2448 = vmatpush1.msra.mxu0 0.0
    %2449 = vmatprep.subr.mxu0 0.0
    %2450 = vmatpush1.msra.mxu0 0.0
    %2451 = vmatprep.subr.mxu0 0.0
    %2452 = vmatpush1.msra.mxu0 0.0
    %2453 = vmatprep.subr.mxu0 0.0
    %2454 = vmatpush1.msra.mxu0 0.0
    %2455 = vmatprep.subr.mxu0 0.0
    %2456 = vmatpush1.msra.mxu0 0.0
    %2457 = vmatprep.subr.mxu0 0.0
    %2458 = vmatpush1.msra.mxu0 0.0
    %2459 = vmatprep.subr.mxu0 0.0
    %2460 = vmatpush1.msra.mxu0 0.0
    %2461 = vmatprep.subr.mxu0 0.0
    %2462 = vmatpush1.msra.mxu0 0.0
    %2463 = vmatprep.subr.mxu0 0.0
    %2464 = vmatpush1.msra.mxu0 0.0
    %2465 = vmatprep.subr.mxu0 0.0
    %2466 = vmatpush1.msra.mxu0 0.0
    %2467 = vmatprep.subr.mxu0 0.0
    %2468 = vmatpush1.msra.mxu0 0.0
    %2469 = vmatprep.subr.mxu0 0.0
    %2470 = vmatpush1.msra.mxu0 0.0
    %2471 = vmatprep.subr.mxu0 0.0
    %2472 = vmatpush1.msra.mxu0 0.0
    %2473 = vmatprep.subr.mxu0 0.0
    %2474 = vmatpush1.msra.mxu0 0.0
    %2475 = vmatprep.subr.mxu0 0.0
    %2476 = vmatpush1.msra.mxu0 0.0
    %2477 = vmatprep.subr.mxu0 0.0
    %2478 = vmatpush1.msra.mxu0 0.0
    %2479 = vmatprep.subr.mxu0 0.0
    %2480 = vmatpush1.msra.mxu0 0.0
    %2481 = vmatprep.subr.mxu0 0.0
    %2482 = vmatpush1.msra.mxu0 0.0
    %2483 = vmatprep.subr.mxu0 0.0
    %2484 = vmatpush1.msra.mxu0 0.0
    %2485 = vmatprep.subr.mxu0 0.0
    %2486 = vmatpush1.msra.mxu0 0.0
    %2487 = vmatprep.mubr.f32.mxu0 0.0
    %2488 = vmatmul.mubr.f32.gmra.mrb[0].mxu0 %v2421
    %v2489 = vpop.f32.mrb[0].mxu0
    %v2490 = vadd.f32 0.0, %v2489
    %v2491 = vpop.f32.mrb[0].mxu0
    %2492 = vdwg.mxu0
    %v2493 = vxor.u32 %v2490, 2147483648
    %v2494 = vmul.f32 %v2493, 1.442695
    %v2495 = vpow.pop %v2494
    %v2496 = vadd.f32 %v2495, 1.0
    %v2497 = vrcp.pop %v2496
    %v2498 = vmul.f32 1.0, %v2497
    %v2499 = vmul.f32 %v2490, %v2498
    %2501 = vrot.lane.b32.xlu0 %v2490, 64
    %v2502 = vpop.permute.xlu0 %2501
    %v2504 = vmul.f32 %v2499, %v2502
    %v2506 = vsel %vm806, %v2504, 0
    %2508 = vmatprep.subr.mxu0 0.0
    %2509 = vmatpush1.msra.mxu0 %v56
    %2510 = vmatprep.subr.mxu0 0.0
    %2511 = vmatpush1.msra.mxu0 %v57
    %2512 = vmatprep.subr.mxu0 0.0
    %2513 = vmatpush1.msra.mxu0 %v58
    %2514 = vmatprep.subr.mxu0 0.0
    %2515 = vmatpush1.msra.mxu0 %v59
    %2516 = vmatprep.subr.mxu0 0.0
    %2517 = vmatpush1.msra.mxu0 %v60
    %2518 = vmatprep.subr.mxu0 0.0
    %2519 = vmatpush1.msra.mxu0 %v61
    %2520 = vmatprep.subr.mxu0 0.0
    %2521 = vmatpush1.msra.mxu0 %v62
    %2522 = vmatprep.subr.mxu0 0.0
    %2523 = vmatpush1.msra.mxu0 %v63
    %2524 = vmatprep.subr.mxu0 0.0
    %2525 = vmatpush1.msra.mxu0 0.0
    %2526 = vmatprep.subr.mxu0 0.0
    %2527 = vmatpush1.msra.mxu0 0.0
    %2528 = vmatprep.subr.mxu0 0.0
    %2529 = vmatpush1.msra.mxu0 0.0
    %2530 = vmatprep.subr.mxu0 0.0
    %2531 = vmatpush1.msra.mxu0 0.0
    %2532 = vmatprep.subr.mxu0 0.0
    %2533 = vmatpush1.msra.mxu0 0.0
    %2534 = vmatprep.subr.mxu0 0.0
    %2535 = vmatpush1.msra.mxu0 0.0
    %2536 = vmatprep.subr.mxu0 0.0
    %2537 = vmatpush1.msra.mxu0 0.0
    %2538 = vmatprep.subr.mxu0 0.0
    %2539 = vmatpush1.msra.mxu0 0.0
    %2540 = vmatprep.subr.mxu0 0.0
    %2541 = vmatpush1.msra.mxu0 0.0
    %2542 = vmatprep.subr.mxu0 0.0
    %2543 = vmatpush1.msra.mxu0 0.0
    %2544 = vmatprep.subr.mxu0 0.0
    %2545 = vmatpush1.msra.mxu0 0.0
    %2546 = vmatprep.subr.mxu0 0.0
    %2547 = vmatpush1.msra.mxu0 0.0
    %2548 = vmatprep.subr.mxu0 0.0
    %2549 = vmatpush1.msra.mxu0 0.0
    %2550 = vmatprep.subr.mxu0 0.0
    %2551 = vmatpush1.msra.mxu0 0.0
    %2552 = vmatprep.subr.mxu0 0.0
    %2553 = vmatpush1.msra.mxu0 0.0
    %2554 = vmatprep.subr.mxu0 0.0
    %2555 = vmatpush1.msra.mxu0 0.0
    %2556 = vmatprep.subr.mxu0 0.0
    %2557 = vmatpush1.msra.mxu0 0.0
    %2558 = vmatprep.subr.mxu0 0.0
    %2559 = vmatpush1.msra.mxu0 0.0
    %2560 = vmatprep.subr.mxu0 0.0
    %2561 = vmatpush1.msra.mxu0 0.0
    %2562 = vmatprep.subr.mxu0 0.0
    %2563 = vmatpush1.msra.mxu0 0.0
    %2564 = vmatprep.subr.mxu0 0.0
    %2565 = vmatpush1.msra.mxu0 0.0
    %2566 = vmatprep.subr.mxu0 0.0
    %2567 = vmatpush1.msra.mxu0 0.0
    %2568 = vmatprep.subr.mxu0 0.0
    %2569 = vmatpush1.msra.mxu0 0.0
    %2570 = vmatprep.subr.mxu0 0.0
    %2571 = vmatpush1.msra.mxu0 0.0
    %2572 = vmatprep.mubr.f32.mxu0 0.0
    %2573 = vmatmul.mubr.f32.gmra.mrb[0].mxu0 %v2506
    %v2574 = vpop.f32.mrb[0].mxu0
    %v2575 = vadd.f32 0.0, %v2574
    %v2576 = vpop.f32.mrb[0].mxu0
    %2577 = vdwg.mxu0
    %v2578 = vadd.f32 %v2410, %v2575
    %v2579 = vmul.f32 %v2578, %v2578
    %v2580 = vsel %vm207, %v2579, 0.0
    %2581 = vadd.xlane.f32.xlu0 %v2580
    %v2582 = vpop.xlane.xlu0 %2581
    %v2583 = vmul.f32 %v2582, %v79
    %v2584 = vadd.f32 %v2583, 1e-06
    %v2585 = vrsqrt.pop %v2584
    %v2586 = vmul.f32 %v2578, %v2585
    %v2587 = vmul.f32 %v2586, %v35
    %v2589 = vsel %vm72, %v2587, 0
    %2591 = vmatprep.subr.mxu0 0.0
    %2592 = vmatpush1.msra.mxu0 %v64
    %2593 = vmatprep.subr.mxu0 0.0
    %2594 = vmatpush1.msra.mxu0 %v65
    %2595 = vmatprep.subr.mxu0 0.0
    %2596 = vmatpush1.msra.mxu0 %v66
    %2597 = vmatprep.subr.mxu0 0.0
    %2598 = vmatpush1.msra.mxu0 %v67
    %2599 = vmatprep.subr.mxu0 0.0
    %2600 = vmatpush1.msra.mxu0 0.0
    %2601 = vmatprep.subr.mxu0 0.0
    %2602 = vmatpush1.msra.mxu0 0.0
    %2603 = vmatprep.subr.mxu0 0.0
    %2604 = vmatpush1.msra.mxu0 0.0
    %2605 = vmatprep.subr.mxu0 0.0
    %2606 = vmatpush1.msra.mxu0 0.0
    %2607 = vmatprep.subr.mxu0 0.0
    %2608 = vmatpush1.msra.mxu0 0.0
    %2609 = vmatprep.subr.mxu0 0.0
    %2610 = vmatpush1.msra.mxu0 0.0
    %2611 = vmatprep.subr.mxu0 0.0
    %2612 = vmatpush1.msra.mxu0 0.0
    %2613 = vmatprep.subr.mxu0 0.0
    %2614 = vmatpush1.msra.mxu0 0.0
    %2615 = vmatprep.subr.mxu0 0.0
    %2616 = vmatpush1.msra.mxu0 0.0
    %2617 = vmatprep.subr.mxu0 0.0
    %2618 = vmatpush1.msra.mxu0 0.0
    %2619 = vmatprep.subr.mxu0 0.0
    %2620 = vmatpush1.msra.mxu0 0.0
    %2621 = vmatprep.subr.mxu0 0.0
    %2622 = vmatpush1.msra.mxu0 0.0
    %2623 = vmatprep.subr.mxu0 0.0
    %2624 = vmatpush1.msra.mxu0 0.0
    %2625 = vmatprep.subr.mxu0 0.0
    %2626 = vmatpush1.msra.mxu0 0.0
    %2627 = vmatprep.subr.mxu0 0.0
    %2628 = vmatpush1.msra.mxu0 0.0
    %2629 = vmatprep.subr.mxu0 0.0
    %2630 = vmatpush1.msra.mxu0 0.0
    %2631 = vmatprep.subr.mxu0 0.0
    %2632 = vmatpush1.msra.mxu0 0.0
    %2633 = vmatprep.subr.mxu0 0.0
    %2634 = vmatpush1.msra.mxu0 0.0
    %2635 = vmatprep.subr.mxu0 0.0
    %2636 = vmatpush1.msra.mxu0 0.0
    %2637 = vmatprep.subr.mxu0 0.0
    %2638 = vmatpush1.msra.mxu0 0.0
    %2639 = vmatprep.subr.mxu0 0.0
    %2640 = vmatpush1.msra.mxu0 0.0
    %2641 = vmatprep.subr.mxu0 0.0
    %2642 = vmatpush1.msra.mxu0 0.0
    %2643 = vmatprep.subr.mxu0 0.0
    %2644 = vmatpush1.msra.mxu0 0.0
    %2645 = vmatprep.subr.mxu0 0.0
    %2646 = vmatpush1.msra.mxu0 0.0
    %2647 = vmatprep.subr.mxu0 0.0
    %2648 = vmatpush1.msra.mxu0 0.0
    %2649 = vmatprep.subr.mxu0 0.0
    %2650 = vmatpush1.msra.mxu0 0.0
    %2651 = vmatprep.subr.mxu0 0.0
    %2652 = vmatpush1.msra.mxu0 0.0
    %2653 = vmatprep.subr.mxu0 0.0
    %2654 = vmatpush1.msra.mxu0 0.0
    %2655 = vmatprep.mubr.f32.mxu0 0.0
    %2656 = vmatmul.mubr.f32.gmra.mrb[0].mxu0 %v2589
    %v2657 = vpop.f32.mrb[0].mxu0
    %v2658 = vadd.f32 0.0, %v2657
    %v2659 = vpop.f32.mrb[0].mxu0
    %2660 = vdwg.mxu0
    %v2661 = vsel %vm963, %v2658, -1e+30
    %v2662 = vsel %vm965, %v2661, -inf
    %2663 = vmax.xlane.f32.xlu0 %v2662
    %v2664 = vpop.xlane.xlu0 %2663
    %vm2665 = vcmp.ge.f32.partialorder %v2661, %v2664
    %v2666 = vsel %vm2665, %v970, 128.0
    %v2667 = vsel %vm965, %v2666, inf
    %2668 = vmin.xlane.f32.xlu0 %v2667
    %v2669 = vpop.xlane.xlu0 %2668
    %v2670 = vcvt.f32.s32.to.zero.pseudo %v2669
    %v2671 = vsub.f32 %v2661, %v2664
    %v2672 = vmul.f32 %v2671, 1.442695
    %v2673 = vpow.pop %v2672
    %v2674 = vsel %vm965, %v2673, 0.0
    %2675 = vadd.xlane.f32.xlu0 %v2674
    %v2676 = vpop.xlane.xlu0 %2675
    %v2677 = vrcp.pop %v2676
    %v2678 = vmin.f32 %v2677, 1.0
    %v2679 = vcvt.s32.f32 %v2670
    %vm2680 = vcmp.eq.s32.totalorder %v194, %v2670
    %v2681 = vsel %vm2680, 1.0, 0.0
    %v2683 = vsel %vm806, %v2681, 0
    %2685 = vmatprep.subr.mxu0 0.0
    %2686 = vmatpush1.msra.mxu0 %v36
    %2687 = vmatprep.subr.mxu0 0.0
    %2688 = vmatpush1.msra.mxu0 %v37
    %2689 = vmatprep.subr.mxu0 0.0
    %2690 = vmatpush1.msra.mxu0 %v38
    %2691 = vmatprep.subr.mxu0 0.0
    %2692 = vmatpush1.msra.mxu0 %v39
    %2693 = vmatprep.subr.mxu0 0.0
    %2694 = vmatpush1.msra.mxu0 %v40
    %2695 = vmatprep.subr.mxu0 0.0
    %2696 = vmatpush1.msra.mxu0 %v41
    %2697 = vmatprep.subr.mxu0 0.0
    %2698 = vmatpush1.msra.mxu0 %v42
    %2699 = vmatprep.subr.mxu0 0.0
    %2700 = vmatpush1.msra.mxu0 %v43
    %2701 = vmatprep.subr.mxu0 0.0
    %2702 = vmatpush1.msra.mxu0 0.0
    %2703 = vmatprep.subr.mxu0 0.0
    %2704 = vmatpush1.msra.mxu0 0.0
    %2705 = vmatprep.subr.mxu0 0.0
    %2706 = vmatpush1.msra.mxu0 0.0
    %2707 = vmatprep.subr.mxu0 0.0
    %2708 = vmatpush1.msra.mxu0 0.0
    %2709 = vmatprep.subr.mxu0 0.0
    %2710 = vmatpush1.msra.mxu0 0.0
    %2711 = vmatprep.subr.mxu0 0.0
    %2712 = vmatpush1.msra.mxu0 0.0
    %2713 = vmatprep.subr.mxu0 0.0
    %2714 = vmatpush1.msra.mxu0 0.0
    %2715 = vmatprep.subr.mxu0 0.0
    %2716 = vmatpush1.msra.mxu0 0.0
    %2717 = vmatprep.subr.mxu0 0.0
    %2718 = vmatpush1.msra.mxu0 0.0
    %2719 = vmatprep.subr.mxu0 0.0
    %2720 = vmatpush1.msra.mxu0 0.0
    %2721 = vmatprep.subr.mxu0 0.0
    %2722 = vmatpush1.msra.mxu0 0.0
    %2723 = vmatprep.subr.mxu0 0.0
    %2724 = vmatpush1.msra.mxu0 0.0
    %2725 = vmatprep.subr.mxu0 0.0
    %2726 = vmatpush1.msra.mxu0 0.0
    %2727 = vmatprep.subr.mxu0 0.0
    %2728 = vmatpush1.msra.mxu0 0.0
    %2729 = vmatprep.subr.mxu0 0.0
    %2730 = vmatpush1.msra.mxu0 0.0
    %2731 = vmatprep.subr.mxu0 0.0
    %2732 = vmatpush1.msra.mxu0 0.0
    %2733 = vmatprep.subr.mxu0 0.0
    %2734 = vmatpush1.msra.mxu0 0.0
    %2735 = vmatprep.subr.mxu0 0.0
    %2736 = vmatpush1.msra.mxu0 0.0
    %2737 = vmatprep.subr.mxu0 0.0
    %2738 = vmatpush1.msra.mxu0 0.0
    %2739 = vmatprep.subr.mxu0 0.0
    %2740 = vmatpush1.msra.mxu0 0.0
    %2741 = vmatprep.subr.mxu0 0.0
    %2742 = vmatpush1.msra.mxu0 0.0
    %2743 = vmatprep.subr.mxu0 0.0
    %2744 = vmatpush1.msra.mxu0 0.0
    %2745 = vmatprep.subr.mxu0 0.0
    %2746 = vmatpush1.msra.mxu0 0.0
    %2747 = vmatprep.subr.mxu0 0.0
    %2748 = vmatpush1.msra.mxu0 0.0
    %2749 = vmatprep.mubr.f32.mxu0 0.0
    %2750 = vmatmul.mubr.f32.gmra.mrb[0].mxu0 %v2683
    %v2751 = vpop.f32.mrb[0].mxu0
    %v2752 = vadd.f32 0.0, %v2751
    %v2753 = vpop.f32.mrb[0].mxu0
    %2754 = vdwg.mxu0
    %s2755 = sadd.s32 %s32, 2
    %v2756 = vmul.f32 %v2752, %v2752
    %v2757 = vsel %vm207, %v2756, 0.0
    %2758 = vadd.xlane.f32.xlu0 %v2757
    %v2759 = vpop.xlane.xlu0 %2758
    %v2760 = vmul.f32 %v2759, %v79
    %v2761 = vadd.f32 %v2760, 1e-06
    %v2762 = vrsqrt.pop %v2761
    %v2763 = vmul.f32 %v2752, %v2762
    %v2764 = vmul.f32 %v2763, %v33
    %v2766 = vsel %vm72, %v2764, 0
    %2768 = vmatprep.subr.mxu0 0.0
    %2769 = vmatpush1.msra.mxu0 %v44
    %2770 = vmatprep.subr.mxu0 0.0
    %2771 = vmatpush1.msra.mxu0 %v45
    %2772 = vmatprep.subr.mxu0 0.0
    %2773 = vmatpush1.msra.mxu0 %v46
    %2774 = vmatprep.subr.mxu0 0.0
    %2775 = vmatpush1.msra.mxu0 %v47
    %2776 = vmatprep.subr.mxu0 0.0
    %2777 = vmatpush1.msra.mxu0 0.0
    %2778 = vmatprep.subr.mxu0 0.0
    %2779 = vmatpush1.msra.mxu0 0.0
    %2780 = vmatprep.subr.mxu0 0.0
    %2781 = vmatpush1.msra.mxu0 0.0
    %2782 = vmatprep.subr.mxu0 0.0
    %2783 = vmatpush1.msra.mxu0 0.0
    %2784 = vmatprep.subr.mxu0 0.0
    %2785 = vmatpush1.msra.mxu0 0.0
    %2786 = vmatprep.subr.mxu0 0.0
    %2787 = vmatpush1.msra.mxu0 0.0
    %2788 = vmatprep.subr.mxu0 0.0
    %2789 = vmatpush1.msra.mxu0 0.0
    %2790 = vmatprep.subr.mxu0 0.0
    %2791 = vmatpush1.msra.mxu0 0.0
    %2792 = vmatprep.subr.mxu0 0.0
    %2793 = vmatpush1.msra.mxu0 0.0
    %2794 = vmatprep.subr.mxu0 0.0
    %2795 = vmatpush1.msra.mxu0 0.0
    %2796 = vmatprep.subr.mxu0 0.0
    %2797 = vmatpush1.msra.mxu0 0.0
    %2798 = vmatprep.subr.mxu0 0.0
    %2799 = vmatpush1.msra.mxu0 0.0
    %2800 = vmatprep.subr.mxu0 0.0
    %2801 = vmatpush1.msra.mxu0 0.0
    %2802 = vmatprep.subr.mxu0 0.0
    %2803 = vmatpush1.msra.mxu0 0.0
    %2804 = vmatprep.subr.mxu0 0.0
    %2805 = vmatpush1.msra.mxu0 0.0
    %2806 = vmatprep.subr.mxu0 0.0
    %2807 = vmatpush1.msra.mxu0 0.0
    %2808 = vmatprep.subr.mxu0 0.0
    %2809 = vmatpush1.msra.mxu0 0.0
    %2810 = vmatprep.subr.mxu0 0.0
    %2811 = vmatpush1.msra.mxu0 0.0
    %2812 = vmatprep.subr.mxu0 0.0
    %2813 = vmatpush1.msra.mxu0 0.0
    %2814 = vmatprep.subr.mxu0 0.0
    %2815 = vmatpush1.msra.mxu0 0.0
    %2816 = vmatprep.subr.mxu0 0.0
    %2817 = vmatpush1.msra.mxu0 0.0
    %2818 = vmatprep.subr.mxu0 0.0
    %2819 = vmatpush1.msra.mxu0 0.0
    %2820 = vmatprep.subr.mxu0 0.0
    %2821 = vmatpush1.msra.mxu0 0.0
    %2822 = vmatprep.subr.mxu0 0.0
    %2823 = vmatpush1.msra.mxu0 0.0
    %2824 = vmatprep.subr.mxu0 0.0
    %2825 = vmatpush1.msra.mxu0 0.0
    %2826 = vmatprep.subr.mxu0 0.0
    %2827 = vmatpush1.msra.mxu0 0.0
    %2828 = vmatprep.subr.mxu0 0.0
    %2829 = vmatpush1.msra.mxu0 0.0
    %2830 = vmatprep.subr.mxu0 0.0
    %2831 = vmatpush1.msra.mxu0 0.0
    %2832 = vmatprep.mubr.f32.mxu0 0.0
    %2833 = vmatmul.mubr.f32.gmra.mrb[0].mxu0 %v2766
    %v2834 = vpop.f32.mrb[0].mxu0
    %v2835 = vadd.f32 0.0, %v2834
    %v2836 = vpop.f32.mrb[0].mxu0
    %2837 = vdwg.mxu0
    %2839 = vrot.lane.b32.xlu0 %v2835, 96
    %v2840 = vpop.permute.xlu0 %2839
    %s2842 = scalar_lea.vmem [#allocation2], %s2755
    %2843 = vst.msk [vmem:[%s2842] sm:$0x1] %vm207, %v2840
    %2844 = vrot.lane.b32.xlu0 %v2835, 64
    %v2845 = vpop.permute.xlu0 %2844
    %s2847 = scalar_lea.vmem [#allocation3], %s2755
    %2848 = vst.msk [vmem:[%s2847] sm:$0x1] %vm207, %v2845
    %v2849 = vld [vmem:[#allocation2] sm:$0xff]
    %v2850 = vld [vmem:[#allocation2 + $0x8] sm:$0xff]
    %v2851 = vld [vmem:[#allocation3] sm:$0xff]
    %v2852 = vld [vmem:[#allocation3 + $0x8] sm:$0xff]
    %v2853 = vstv %s2755
    %vm2854 = vcmp.le.s32.totalorder %v194, %v2853
    %v2855 = vmul.f32 %v2835, %v198
    %v2857 = vsel %vm72, %v2855, 0
    %v2860 = vsel %vm72, %v2849, 0
    %v2863 = vsel %vm72, %v2850, 0
    %2865 = vmatprep.subr.mxu0 0.0
    %2866 = vmatpush1.xpose.msra.mxu0 %v2860
    %2867 = vmatprep.subr.mxu0 0.0
    %2868 = vmatpush1.xpose.msra.mxu0 %v2863
    %2869 = vmatprep.subr.mxu0 0.0
    %2870 = vmatpush1.xpose.msra.mxu0 0.0
    %2871 = vmatprep.subr.mxu0 0.0
    %2872 = vmatpush1.xpose.msra.mxu0 0.0
    %2873 = vmatprep.subr.mxu0 0.0
    %2874 = vmatpush1.xpose.msra.mxu0 0.0
    %2875 = vmatprep.subr.mxu0 0.0
    %2876 = vmatpush1.xpose.msra.mxu0 0.0
    %2877 = vmatprep.subr.mxu0 0.0
    %2878 = vmatpush1.xpose.msra.mxu0 0.0
    %2879 = vmatprep.subr.mxu0 0.0
    %2880 = vmatpush1.xpose.msra.mxu0 0.0
    %2881 = vmatprep.subr.mxu0 0.0
    %2882 = vmatpush1.xpose.msra.mxu0 0.0
    %2883 = vmatprep.subr.mxu0 0.0
    %2884 = vmatpush1.xpose.msra.mxu0 0.0
    %2885 = vmatprep.subr.mxu0 0.0
    %2886 = vmatpush1.xpose.msra.mxu0 0.0
    %2887 = vmatprep.subr.mxu0 0.0
    %2888 = vmatpush1.xpose.msra.mxu0 0.0
    %2889 = vmatprep.subr.mxu0 0.0
    %2890 = vmatpush1.xpose.msra.mxu0 0.0
    %2891 = vmatprep.subr.mxu0 0.0
    %2892 = vmatpush1.xpose.msra.mxu0 0.0
    %2893 = vmatprep.subr.mxu0 0.0
    %2894 = vmatpush1.xpose.msra.mxu0 0.0
    %2895 = vmatprep.subr.mxu0 0.0
    %2896 = vmatpush1.xpose.msra.mxu0 0.0
    %2897 = vmatprep.subr.mxu0 0.0
    %2898 = vmatpush1.xpose.msra.mxu0 0.0
    %2899 = vmatprep.subr.mxu0 0.0
    %2900 = vmatpush1.xpose.msra.mxu0 0.0
    %2901 = vmatprep.subr.mxu0 0.0
    %2902 = vmatpush1.xpose.msra.mxu0 0.0
    %2903 = vmatprep.subr.mxu0 0.0
    %2904 = vmatpush1.xpose.msra.mxu0 0.0
    %2905 = vmatprep.subr.mxu0 0.0
    %2906 = vmatpush1.xpose.msra.mxu0 0.0
    %2907 = vmatprep.subr.mxu0 0.0
    %2908 = vmatpush1.xpose.msra.mxu0 0.0
    %2909 = vmatprep.subr.mxu0 0.0
    %2910 = vmatpush1.xpose.msra.mxu0 0.0
    %2911 = vmatprep.subr.mxu0 0.0
    %2912 = vmatpush1.xpose.msra.mxu0 0.0
    %2913 = vmatprep.subr.mxu0 0.0
    %2914 = vmatpush1.xpose.msra.mxu0 0.0
    %2915 = vmatprep.subr.mxu0 0.0
    %2916 = vmatpush1.xpose.msra.mxu0 0.0
    %2917 = vmatprep.subr.mxu0 0.0
    %2918 = vmatpush1.xpose.msra.mxu0 0.0
    %2919 = vmatprep.subr.mxu0 0.0
    %2920 = vmatpush1.xpose.msra.mxu0 0.0
    %2921 = vmatprep.subr.mxu0 0.0
    %2922 = vmatpush1.xpose.msra.mxu0 0.0
    %2923 = vmatprep.subr.mxu0 0.0
    %2924 = vmatpush1.xpose.msra.mxu0 0.0
    %2925 = vmatprep.subr.mxu0 0.0
    %2926 = vmatpush1.xpose.msra.mxu0 0.0
    %2927 = vmatprep.subr.mxu0 0.0
    %2928 = vmatpush1.xpose.msra.mxu0 0.0
    %2929 = vmatprep.mubr.f32.mxu0 0.0
    %2930 = vmatmul.mubr.f32.gmra.mrb[0].mxu0 %v2857
    %v2931 = vpop.f32.mrb[0].mxu0
    %v2932 = vadd.f32 0.0, %v2931
    %v2933 = vpop.f32.mrb[0].mxu0
    %2934 = vdwg.mxu0
    %v2935 = vmul.f32 %v2932, 0.25
    %v2936 = vsel %vm2854, %v2935, -1e+30
    %v2937 = vsel %vm388, %v2936, -inf
    %2938 = vmax.xlane.f32.xlu0 %v2937
    %v2939 = vpop.xlane.xlu0 %2938
    %v2940 = vsub.f32 %v2936, %v2939
    %v2941 = vmul.f32 %v2940, 1.442695
    %v2942 = vpow.pop %v2941
    %v2943 = vsel %vm388, %v2942, 0.0
    %2944 = vadd.xlane.f32.xlu0 %v2943
    %v2945 = vpop.xlane.xlu0 %2944
    %v2946 = vrcp.pop %v2945
    %v2947 = vmul.f32 %v2942, %v2946
    %v2948 = vmul.f32 %v2851, %v198
    %v2949 = vmul.f32 %v2852, %v198
    %v2950 = vmul.f32 %v2835, %v202
    %v2952 = vsel %vm72, %v2950, 0
    %2954 = vmatprep.subr.mxu0 0.0
    %2955 = vmatpush1.xpose.msra.mxu0 %v2860
    %2956 = vmatprep.subr.mxu0 0.0
    %2957 = vmatpush1.xpose.msra.mxu0 %v2863
    %2958 = vmatprep.subr.mxu0 0.0
    %2959 = vmatpush1.xpose.msra.mxu0 0.0
    %2960 = vmatprep.subr.mxu0 0.0
    %2961 = vmatpush1.xpose.msra.mxu0 0.0
    %2962 = vmatprep.subr.mxu0 0.0
    %2963 = vmatpush1.xpose.msra.mxu0 0.0
    %2964 = vmatprep.subr.mxu0 0.0
    %2965 = vmatpush1.xpose.msra.mxu0 0.0
    %2966 = vmatprep.subr.mxu0 0.0
    %2967 = vmatpush1.xpose.msra.mxu0 0.0
    %2968 = vmatprep.subr.mxu0 0.0
    %2969 = vmatpush1.xpose.msra.mxu0 0.0
    %2970 = vmatprep.subr.mxu0 0.0
    %2971 = vmatpush1.xpose.msra.mxu0 0.0
    %2972 = vmatprep.subr.mxu0 0.0
    %2973 = vmatpush1.xpose.msra.mxu0 0.0
    %2974 = vmatprep.subr.mxu0 0.0
    %2975 = vmatpush1.xpose.msra.mxu0 0.0
    %2976 = vmatprep.subr.mxu0 0.0
    %2977 = vmatpush1.xpose.msra.mxu0 0.0
    %2978 = vmatprep.subr.mxu0 0.0
    %2979 = vmatpush1.xpose.msra.mxu0 0.0
    %2980 = vmatprep.subr.mxu0 0.0
    %2981 = vmatpush1.xpose.msra.mxu0 0.0
    %2982 = vmatprep.subr.mxu0 0.0
    %2983 = vmatpush1.xpose.msra.mxu0 0.0
    %2984 = vmatprep.subr.mxu0 0.0
    %2985 = vmatpush1.xpose.msra.mxu0 0.0
    %2986 = vmatprep.subr.mxu0 0.0
    %2987 = vmatpush1.xpose.msra.mxu0 0.0
    %2988 = vmatprep.subr.mxu0 0.0
    %2989 = vmatpush1.xpose.msra.mxu0 0.0
    %2990 = vmatprep.subr.mxu0 0.0
    %2991 = vmatpush1.xpose.msra.mxu0 0.0
    %2992 = vmatprep.subr.mxu0 0.0
    %2993 = vmatpush1.xpose.msra.mxu0 0.0
    %2994 = vmatprep.subr.mxu0 0.0
    %2995 = vmatpush1.xpose.msra.mxu0 0.0
    %2996 = vmatprep.subr.mxu0 0.0
    %2997 = vmatpush1.xpose.msra.mxu0 0.0
    %2998 = vmatprep.subr.mxu0 0.0
    %2999 = vmatpush1.xpose.msra.mxu0 0.0
    %3000 = vmatprep.subr.mxu0 0.0
    %3001 = vmatpush1.xpose.msra.mxu0 0.0
    %3002 = vmatprep.subr.mxu0 0.0
    %3003 = vmatpush1.xpose.msra.mxu0 0.0
    %3004 = vmatprep.subr.mxu0 0.0
    %3005 = vmatpush1.xpose.msra.mxu0 0.0
    %3006 = vmatprep.subr.mxu0 0.0
    %3007 = vmatpush1.xpose.msra.mxu0 0.0
    %3008 = vmatprep.subr.mxu0 0.0
    %3009 = vmatpush1.xpose.msra.mxu0 0.0
    %3010 = vmatprep.subr.mxu0 0.0
    %3011 = vmatpush1.xpose.msra.mxu0 0.0
    %3012 = vmatprep.subr.mxu0 0.0
    %3013 = vmatpush1.xpose.msra.mxu0 0.0
    %3014 = vmatprep.subr.mxu0 0.0
    %3015 = vmatpush1.xpose.msra.mxu0 0.0
    %3016 = vmatprep.subr.mxu0 0.0
    %3017 = vmatpush1.xpose.msra.mxu0 0.0
    %3018 = vmatprep.mubr.f32.mxu0 0.0
    %3019 = vmatmul.mubr.f32.gmra.mrb[0].mxu0 %v2952
    %v3020 = vpop.f32.mrb[0].mxu0
    %v3021 = vadd.f32 0.0, %v3020
    %v3022 = vpop.f32.mrb[0].mxu0
    %3023 = vdwg.mxu0
    %v3024 = vmul.f32 %v3021, 0.25
    %v3025 = vsel %vm2854, %v3024, -1e+30
    %v3026 = vsel %vm388, %v3025, -inf
    %3027 = vmax.xlane.f32.xlu0 %v3026
    %v3028 = vpop.xlane.xlu0 %3027
    %v3029 = vsub.f32 %v3025, %v3028
    %v3030 = vmul.f32 %v3029, 1.442695
    %v3031 = vpow.pop %v3030
    %v3032 = vsel %vm388, %v3031, 0.0
    %3033 = vadd.xlane.f32.xlu0 %v3032
    %v3034 = vpop.xlane.xlu0 %3033
    %v3035 = vrcp.pop %v3034
    %v3036 = vmul.f32 %v3031, %v3035
    %v3037 = vmul.f32 %v2851, %v202
    %v3038 = vmul.f32 %v2852, %v202
    %v3040 = vsel %vm491, %v3036, 0
    %3042 = vmatprep.subr.mxu0 0.0
    %3043 = vmatpush1.msra.mxu0 %v3037
    %3044 = vmatprep.subr.mxu0 0.0
    %3045 = vmatpush1.msra.mxu0 %v3038
    %3046 = vmatprep.subr.mxu0 0.0
    %3047 = vmatpush1.msra.mxu0 0.0
    %3048 = vmatprep.subr.mxu0 0.0
    %3049 = vmatpush1.msra.mxu0 0.0
    %3050 = vmatprep.subr.mxu0 0.0
    %3051 = vmatpush1.msra.mxu0 0.0
    %3052 = vmatprep.subr.mxu0 0.0
    %3053 = vmatpush1.msra.mxu0 0.0
    %3054 = vmatprep.subr.mxu0 0.0
    %3055 = vmatpush1.msra.mxu0 0.0
    %3056 = vmatprep.subr.mxu0 0.0
    %3057 = vmatpush1.msra.mxu0 0.0
    %3058 = vmatprep.subr.mxu0 0.0
    %3059 = vmatpush1.msra.mxu0 0.0
    %3060 = vmatprep.subr.mxu0 0.0
    %3061 = vmatpush1.msra.mxu0 0.0
    %3062 = vmatprep.subr.mxu0 0.0
    %3063 = vmatpush1.msra.mxu0 0.0
    %3064 = vmatprep.subr.mxu0 0.0
    %3065 = vmatpush1.msra.mxu0 0.0
    %3066 = vmatprep.subr.mxu0 0.0
    %3067 = vmatpush1.msra.mxu0 0.0
    %3068 = vmatprep.subr.mxu0 0.0
    %3069 = vmatpush1.msra.mxu0 0.0
    %3070 = vmatprep.subr.mxu0 0.0
    %3071 = vmatpush1.msra.mxu0 0.0
    %3072 = vmatprep.subr.mxu0 0.0
    %3073 = vmatpush1.msra.mxu0 0.0
    %3074 = vmatprep.subr.mxu0 0.0
    %3075 = vmatpush1.msra.mxu0 0.0
    %3076 = vmatprep.subr.mxu0 0.0
    %3077 = vmatpush1.msra.mxu0 0.0
    %3078 = vmatprep.subr.mxu0 0.0
    %3079 = vmatpush1.msra.mxu0 0.0
    %3080 = vmatprep.subr.mxu0 0.0
    %3081 = vmatpush1.msra.mxu0 0.0
    %3082 = vmatprep.subr.mxu0 0.0
    %3083 = vmatpush1.msra.mxu0 0.0
    %3084 = vmatprep.subr.mxu0 0.0
    %3085 = vmatpush1.msra.mxu0 0.0
    %3086 = vmatprep.subr.mxu0 0.0
    %3087 = vmatpush1.msra.mxu0 0.0
    %3088 = vmatprep.subr.mxu0 0.0
    %3089 = vmatpush1.msra.mxu0 0.0
    %3090 = vmatprep.subr.mxu0 0.0
    %3091 = vmatpush1.msra.mxu0 0.0
    %3092 = vmatprep.subr.mxu0 0.0
    %3093 = vmatpush1.msra.mxu0 0.0
    %3094 = vmatprep.subr.mxu0 0.0
    %3095 = vmatpush1.msra.mxu0 0.0
    %3096 = vmatprep.subr.mxu0 0.0
    %3097 = vmatpush1.msra.mxu0 0.0
    %3098 = vmatprep.subr.mxu0 0.0
    %3099 = vmatpush1.msra.mxu0 0.0
    %3100 = vmatprep.subr.mxu0 0.0
    %3101 = vmatpush1.msra.mxu0 0.0
    %3102 = vmatprep.subr.mxu0 0.0
    %3103 = vmatpush1.msra.mxu0 0.0
    %3104 = vmatprep.subr.mxu0 0.0
    %3105 = vmatpush1.msra.mxu0 0.0
    %3106 = vmatprep.mubr.f32.mxu0 0.0
    %3107 = vmatmul.mubr.f32.gmra.mrb[0].mxu0 %v3040
    %v3108 = vpop.f32.mrb[0].mxu0
    %v3109 = vadd.f32 0.0, %v3108
    %v3110 = vpop.f32.mrb[0].mxu0
    %3111 = vdwg.mxu0
    %v3113 = vsel %vm491, %v2947, 0
    %3115 = vmatprep.subr.mxu0 0.0
    %3116 = vmatpush1.msra.mxu0 %v2948
    %3117 = vmatprep.subr.mxu0 0.0
    %3118 = vmatpush1.msra.mxu0 %v2949
    %3119 = vmatprep.subr.mxu0 0.0
    %3120 = vmatpush1.msra.mxu0 0.0
    %3121 = vmatprep.subr.mxu0 0.0
    %3122 = vmatpush1.msra.mxu0 0.0
    %3123 = vmatprep.subr.mxu0 0.0
    %3124 = vmatpush1.msra.mxu0 0.0
    %3125 = vmatprep.subr.mxu0 0.0
    %3126 = vmatpush1.msra.mxu0 0.0
    %3127 = vmatprep.subr.mxu0 0.0
    %3128 = vmatpush1.msra.mxu0 0.0
    %3129 = vmatprep.subr.mxu0 0.0
    %3130 = vmatpush1.msra.mxu0 0.0
    %3131 = vmatprep.subr.mxu0 0.0
    %3132 = vmatpush1.msra.mxu0 0.0
    %3133 = vmatprep.subr.mxu0 0.0
    %3134 = vmatpush1.msra.mxu0 0.0
    %3135 = vmatprep.subr.mxu0 0.0
    %3136 = vmatpush1.msra.mxu0 0.0
    %3137 = vmatprep.subr.mxu0 0.0
    %3138 = vmatpush1.msra.mxu0 0.0
    %3139 = vmatprep.subr.mxu0 0.0
    %3140 = vmatpush1.msra.mxu0 0.0
    %3141 = vmatprep.subr.mxu0 0.0
    %3142 = vmatpush1.msra.mxu0 0.0
    %3143 = vmatprep.subr.mxu0 0.0
    %3144 = vmatpush1.msra.mxu0 0.0
    %3145 = vmatprep.subr.mxu0 0.0
    %3146 = vmatpush1.msra.mxu0 0.0
    %3147 = vmatprep.subr.mxu0 0.0
    %3148 = vmatpush1.msra.mxu0 0.0
    %3149 = vmatprep.subr.mxu0 0.0
    %3150 = vmatpush1.msra.mxu0 0.0
    %3151 = vmatprep.subr.mxu0 0.0
    %3152 = vmatpush1.msra.mxu0 0.0
    %3153 = vmatprep.subr.mxu0 0.0
    %3154 = vmatpush1.msra.mxu0 0.0
    %3155 = vmatprep.subr.mxu0 0.0
    %3156 = vmatpush1.msra.mxu0 0.0
    %3157 = vmatprep.subr.mxu0 0.0
    %3158 = vmatpush1.msra.mxu0 0.0
    %3159 = vmatprep.subr.mxu0 0.0
    %3160 = vmatpush1.msra.mxu0 0.0
    %3161 = vmatprep.subr.mxu0 0.0
    %3162 = vmatpush1.msra.mxu0 0.0
    %3163 = vmatprep.subr.mxu0 0.0
    %3164 = vmatpush1.msra.mxu0 0.0
    %3165 = vmatprep.subr.mxu0 0.0
    %3166 = vmatpush1.msra.mxu0 0.0
    %3167 = vmatprep.subr.mxu0 0.0
    %3168 = vmatpush1.msra.mxu0 0.0
    %3169 = vmatprep.subr.mxu0 0.0
    %3170 = vmatpush1.msra.mxu0 0.0
    %3171 = vmatprep.subr.mxu0 0.0
    %3172 = vmatpush1.msra.mxu0 0.0
    %3173 = vmatprep.subr.mxu0 0.0
    %3174 = vmatpush1.msra.mxu0 0.0
    %3175 = vmatprep.subr.mxu0 0.0
    %3176 = vmatpush1.msra.mxu0 0.0
    %3177 = vmatprep.subr.mxu0 0.0
    %3178 = vmatpush1.msra.mxu0 0.0
    %3179 = vmatprep.mubr.f32.mxu0 0.0
    %3180 = vmatmul.mubr.f32.gmra.mrb[0].mxu0 %v3113
    %v3181 = vpop.f32.mrb[0].mxu0
    %v3182 = vadd.f32 %v3109, %v3181
    %v3183 = vpop.f32.mrb[0].mxu0
    %3184 = vdwg.mxu0
    %v3186 = vsel %vm72, %v3182, 0
    %3188 = vmatprep.subr.mxu0 0.0
    %3189 = vmatpush1.msra.mxu0 %v48
    %3190 = vmatprep.subr.mxu0 0.0
    %3191 = vmatpush1.msra.mxu0 %v49
    %3192 = vmatprep.subr.mxu0 0.0
    %3193 = vmatpush1.msra.mxu0 %v50
    %3194 = vmatprep.subr.mxu0 0.0
    %3195 = vmatpush1.msra.mxu0 %v51
    %3196 = vmatprep.subr.mxu0 0.0
    %3197 = vmatpush1.msra.mxu0 0.0
    %3198 = vmatprep.subr.mxu0 0.0
    %3199 = vmatpush1.msra.mxu0 0.0
    %3200 = vmatprep.subr.mxu0 0.0
    %3201 = vmatpush1.msra.mxu0 0.0
    %3202 = vmatprep.subr.mxu0 0.0
    %3203 = vmatpush1.msra.mxu0 0.0
    %3204 = vmatprep.subr.mxu0 0.0
    %3205 = vmatpush1.msra.mxu0 0.0
    %3206 = vmatprep.subr.mxu0 0.0
    %3207 = vmatpush1.msra.mxu0 0.0
    %3208 = vmatprep.subr.mxu0 0.0
    %3209 = vmatpush1.msra.mxu0 0.0
    %3210 = vmatprep.subr.mxu0 0.0
    %3211 = vmatpush1.msra.mxu0 0.0
    %3212 = vmatprep.subr.mxu0 0.0
    %3213 = vmatpush1.msra.mxu0 0.0
    %3214 = vmatprep.subr.mxu0 0.0
    %3215 = vmatpush1.msra.mxu0 0.0
    %3216 = vmatprep.subr.mxu0 0.0
    %3217 = vmatpush1.msra.mxu0 0.0
    %3218 = vmatprep.subr.mxu0 0.0
    %3219 = vmatpush1.msra.mxu0 0.0
    %3220 = vmatprep.subr.mxu0 0.0
    %3221 = vmatpush1.msra.mxu0 0.0
    %3222 = vmatprep.subr.mxu0 0.0
    %3223 = vmatpush1.msra.mxu0 0.0
    %3224 = vmatprep.subr.mxu0 0.0
    %3225 = vmatpush1.msra.mxu0 0.0
    %3226 = vmatprep.subr.mxu0 0.0
    %3227 = vmatpush1.msra.mxu0 0.0
    %3228 = vmatprep.subr.mxu0 0.0
    %3229 = vmatpush1.msra.mxu0 0.0
    %3230 = vmatprep.subr.mxu0 0.0
    %3231 = vmatpush1.msra.mxu0 0.0
    %3232 = vmatprep.subr.mxu0 0.0
    %3233 = vmatpush1.msra.mxu0 0.0
    %3234 = vmatprep.subr.mxu0 0.0
    %3235 = vmatpush1.msra.mxu0 0.0
    %3236 = vmatprep.subr.mxu0 0.0
    %3237 = vmatpush1.msra.mxu0 0.0
    %3238 = vmatprep.subr.mxu0 0.0
    %3239 = vmatpush1.msra.mxu0 0.0
    %3240 = vmatprep.subr.mxu0 0.0
    %3241 = vmatpush1.msra.mxu0 0.0
    %3242 = vmatprep.subr.mxu0 0.0
    %3243 = vmatpush1.msra.mxu0 0.0
    %3244 = vmatprep.subr.mxu0 0.0
    %3245 = vmatpush1.msra.mxu0 0.0
    %3246 = vmatprep.subr.mxu0 0.0
    %3247 = vmatpush1.msra.mxu0 0.0
    %3248 = vmatprep.subr.mxu0 0.0
    %3249 = vmatpush1.msra.mxu0 0.0
    %3250 = vmatprep.subr.mxu0 0.0
    %3251 = vmatpush1.msra.mxu0 0.0
    %3252 = vmatprep.mubr.f32.mxu0 0.0
    %3253 = vmatmul.mubr.f32.gmra.mrb[0].mxu0 %v3186
    %v3254 = vpop.f32.mrb[0].mxu0
    %v3255 = vadd.f32 0.0, %v3254
    %v3256 = vpop.f32.mrb[0].mxu0
    %3257 = vdwg.mxu0
    %v3258 = vadd.f32 %v2752, %v3255
    %v3259 = vmul.f32 %v3258, %v3258
    %v3260 = vsel %vm207, %v3259, 0.0
    %3261 = vadd.xlane.f32.xlu0 %v3260
    %v3262 = vpop.xlane.xlu0 %3261
    %v3263 = vmul.f32 %v3262, %v79
    %v3264 = vadd.f32 %v3263, 1e-06
    %v3265 = vrsqrt.pop %v3264
    %v3266 = vmul.f32 %v3258, %v3265
    %v3267 = vmul.f32 %v3266, %v34
    %v3269 = vsel %vm72, %v3267, 0
    %3271 = vmatprep.subr.mxu0 0.0
    %3272 = vmatpush1.msra.mxu0 %v52
    %3273 = vmatprep.subr.mxu0 0.0
    %3274 = vmatpush1.msra.mxu0 %v53
    %3275 = vmatprep.subr.mxu0 0.0
    %3276 = vmatpush1.msra.mxu0 %v54
    %3277 = vmatprep.subr.mxu0 0.0
    %3278 = vmatpush1.msra.mxu0 %v55
    %3279 = vmatprep.subr.mxu0 0.0
    %3280 = vmatpush1.msra.mxu0 0.0
    %3281 = vmatprep.subr.mxu0 0.0
    %3282 = vmatpush1.msra.mxu0 0.0
    %3283 = vmatprep.subr.mxu0 0.0
    %3284 = vmatpush1.msra.mxu0 0.0
    %3285 = vmatprep.subr.mxu0 0.0
    %3286 = vmatpush1.msra.mxu0 0.0
    %3287 = vmatprep.subr.mxu0 0.0
    %3288 = vmatpush1.msra.mxu0 0.0
    %3289 = vmatprep.subr.mxu0 0.0
    %3290 = vmatpush1.msra.mxu0 0.0
    %3291 = vmatprep.subr.mxu0 0.0
    %3292 = vmatpush1.msra.mxu0 0.0
    %3293 = vmatprep.subr.mxu0 0.0
    %3294 = vmatpush1.msra.mxu0 0.0
    %3295 = vmatprep.subr.mxu0 0.0
    %3296 = vmatpush1.msra.mxu0 0.0
    %3297 = vmatprep.subr.mxu0 0.0
    %3298 = vmatpush1.msra.mxu0 0.0
    %3299 = vmatprep.subr.mxu0 0.0
    %3300 = vmatpush1.msra.mxu0 0.0
    %3301 = vmatprep.subr.mxu0 0.0
    %3302 = vmatpush1.msra.mxu0 0.0
    %3303 = vmatprep.subr.mxu0 0.0
    %3304 = vmatpush1.msra.mxu0 0.0
    %3305 = vmatprep.subr.mxu0 0.0
    %3306 = vmatpush1.msra.mxu0 0.0
    %3307 = vmatprep.subr.mxu0 0.0
    %3308 = vmatpush1.msra.mxu0 0.0
    %3309 = vmatprep.subr.mxu0 0.0
    %3310 = vmatpush1.msra.mxu0 0.0
    %3311 = vmatprep.subr.mxu0 0.0
    %3312 = vmatpush1.msra.mxu0 0.0
    %3313 = vmatprep.subr.mxu0 0.0
    %3314 = vmatpush1.msra.mxu0 0.0
    %3315 = vmatprep.subr.mxu0 0.0
    %3316 = vmatpush1.msra.mxu0 0.0
    %3317 = vmatprep.subr.mxu0 0.0
    %3318 = vmatpush1.msra.mxu0 0.0
    %3319 = vmatprep.subr.mxu0 0.0
    %3320 = vmatpush1.msra.mxu0 0.0
    %3321 = vmatprep.subr.mxu0 0.0
    %3322 = vmatpush1.msra.mxu0 0.0
    %3323 = vmatprep.subr.mxu0 0.0
    %3324 = vmatpush1.msra.mxu0 0.0
    %3325 = vmatprep.subr.mxu0 0.0
    %3326 = vmatpush1.msra.mxu0 0.0
    %3327 = vmatprep.subr.mxu0 0.0
    %3328 = vmatpush1.msra.mxu0 0.0
    %3329 = vmatprep.subr.mxu0 0.0
    %3330 = vmatpush1.msra.mxu0 0.0
    %3331 = vmatprep.subr.mxu0 0.0
    %3332 = vmatpush1.msra.mxu0 0.0
    %3333 = vmatprep.subr.mxu0 0.0
    %3334 = vmatpush1.msra.mxu0 0.0
    %3335 = vmatprep.mubr.f32.mxu0 0.0
    %3336 = vmatmul.mubr.f32.gmra.mrb[0].mxu0 %v3269
    %v3337 = vpop.f32.mrb[0].mxu0
    %v3338 = vadd.f32 0.0, %v3337
    %v3339 = vpop.f32.mrb[0].mxu0
    %3340 = vdwg.mxu0
    %v3341 = vxor.u32 %v3338, 2147483648
    %v3342 = vmul.f32 %v3341, 1.442695
    %v3343 = vpow.pop %v3342
    %v3344 = vadd.f32 %v3343, 1.0
    %v3345 = vrcp.pop %v3344
    %v3346 = vmul.f32 1.0, %v3345
    %v3347 = vmul.f32 %v3338, %v3346
    %3349 = vrot.lane.b32.xlu0 %v3338, 64
    %v3350 = vpop.permute.xlu0 %3349
    %v3352 = vmul.f32 %v3347, %v3350
    %v3354 = vsel %vm806, %v3352, 0
    %3356 = vmatprep.subr.mxu0 0.0
    %3357 = vmatpush1.msra.mxu0 %v56
    %3358 = vmatprep.subr.mxu0 0.0
    %3359 = vmatpush1.msra.mxu0 %v57
    %3360 = vmatprep.subr.mxu0 0.0
    %3361 = vmatpush1.msra.mxu0 %v58
    %3362 = vmatprep.subr.mxu0 0.0
    %3363 = vmatpush1.msra.mxu0 %v59
    %3364 = vmatprep.subr.mxu0 0.0
    %3365 = vmatpush1.msra.mxu0 %v60
    %3366 = vmatprep.subr.mxu0 0.0
    %3367 = vmatpush1.msra.mxu0 %v61
    %3368 = vmatprep.subr.mxu0 0.0
    %3369 = vmatpush1.msra.mxu0 %v62
    %3370 = vmatprep.subr.mxu0 0.0
    %3371 = vmatpush1.msra.mxu0 %v63
    %3372 = vmatprep.subr.mxu0 0.0
    %3373 = vmatpush1.msra.mxu0 0.0
    %3374 = vmatprep.subr.mxu0 0.0
    %3375 = vmatpush1.msra.mxu0 0.0
    %3376 = vmatprep.subr.mxu0 0.0
    %3377 = vmatpush1.msra.mxu0 0.0
    %3378 = vmatprep.subr.mxu0 0.0
    %3379 = vmatpush1.msra.mxu0 0.0
    %3380 = vmatprep.subr.mxu0 0.0
    %3381 = vmatpush1.msra.mxu0 0.0
    %3382 = vmatprep.subr.mxu0 0.0
    %3383 = vmatpush1.msra.mxu0 0.0
    %3384 = vmatprep.subr.mxu0 0.0
    %3385 = vmatpush1.msra.mxu0 0.0
    %3386 = vmatprep.subr.mxu0 0.0
    %3387 = vmatpush1.msra.mxu0 0.0
    %3388 = vmatprep.subr.mxu0 0.0
    %3389 = vmatpush1.msra.mxu0 0.0
    %3390 = vmatprep.subr.mxu0 0.0
    %3391 = vmatpush1.msra.mxu0 0.0
    %3392 = vmatprep.subr.mxu0 0.0
    %3393 = vmatpush1.msra.mxu0 0.0
    %3394 = vmatprep.subr.mxu0 0.0
    %3395 = vmatpush1.msra.mxu0 0.0
    %3396 = vmatprep.subr.mxu0 0.0
    %3397 = vmatpush1.msra.mxu0 0.0
    %3398 = vmatprep.subr.mxu0 0.0
    %3399 = vmatpush1.msra.mxu0 0.0
    %3400 = vmatprep.subr.mxu0 0.0
    %3401 = vmatpush1.msra.mxu0 0.0
    %3402 = vmatprep.subr.mxu0 0.0
    %3403 = vmatpush1.msra.mxu0 0.0
    %3404 = vmatprep.subr.mxu0 0.0
    %3405 = vmatpush1.msra.mxu0 0.0
    %3406 = vmatprep.subr.mxu0 0.0
    %3407 = vmatpush1.msra.mxu0 0.0
    %3408 = vmatprep.subr.mxu0 0.0
    %3409 = vmatpush1.msra.mxu0 0.0
    %3410 = vmatprep.subr.mxu0 0.0
    %3411 = vmatpush1.msra.mxu0 0.0
    %3412 = vmatprep.subr.mxu0 0.0
    %3413 = vmatpush1.msra.mxu0 0.0
    %3414 = vmatprep.subr.mxu0 0.0
    %3415 = vmatpush1.msra.mxu0 0.0
    %3416 = vmatprep.subr.mxu0 0.0
    %3417 = vmatpush1.msra.mxu0 0.0
    %3418 = vmatprep.subr.mxu0 0.0
    %3419 = vmatpush1.msra.mxu0 0.0
    %3420 = vmatprep.mubr.f32.mxu0 0.0
    %3421 = vmatmul.mubr.f32.gmra.mrb[0].mxu0 %v3354
    %v3422 = vpop.f32.mrb[0].mxu0
    %v3423 = vadd.f32 0.0, %v3422
    %v3424 = vpop.f32.mrb[0].mxu0
    %3425 = vdwg.mxu0
    %v3426 = vadd.f32 %v3258, %v3423
    %v3427 = vmul.f32 %v3426, %v3426
    %v3428 = vsel %vm207, %v3427, 0.0
    %3429 = vadd.xlane.f32.xlu0 %v3428
    %v3430 = vpop.xlane.xlu0 %3429
    %v3431 = vmul.f32 %v3430, %v79
    %v3432 = vadd.f32 %v3431, 1e-06
    %v3433 = vrsqrt.pop %v3432
    %v3434 = vmul.f32 %v3426, %v3433
    %v3435 = vmul.f32 %v3434, %v35
    %v3437 = vsel %vm72, %v3435, 0
    %3439 = vmatprep.subr.mxu0 0.0
    %3440 = vmatpush1.msra.mxu0 %v64
    %3441 = vmatprep.subr.mxu0 0.0
    %3442 = vmatpush1.msra.mxu0 %v65
    %3443 = vmatprep.subr.mxu0 0.0
    %3444 = vmatpush1.msra.mxu0 %v66
    %3445 = vmatprep.subr.mxu0 0.0
    %3446 = vmatpush1.msra.mxu0 %v67
    %3447 = vmatprep.subr.mxu0 0.0
    %3448 = vmatpush1.msra.mxu0 0.0
    %3449 = vmatprep.subr.mxu0 0.0
    %3450 = vmatpush1.msra.mxu0 0.0
    %3451 = vmatprep.subr.mxu0 0.0
    %3452 = vmatpush1.msra.mxu0 0.0
    %3453 = vmatprep.subr.mxu0 0.0
    %3454 = vmatpush1.msra.mxu0 0.0
    %3455 = vmatprep.subr.mxu0 0.0
    %3456 = vmatpush1.msra.mxu0 0.0
    %3457 = vmatprep.subr.mxu0 0.0
    %3458 = vmatpush1.msra.mxu0 0.0
    %3459 = vmatprep.subr.mxu0 0.0
    %3460 = vmatpush1.msra.mxu0 0.0
    %3461 = vmatprep.subr.mxu0 0.0
    %3462 = vmatpush1.msra.mxu0 0.0
    %3463 = vmatprep.subr.mxu0 0.0
    %3464 = vmatpush1.msra.mxu0 0.0
    %3465 = vmatprep.subr.mxu0 0.0
    %3466 = vmatpush1.msra.mxu0 0.0
    %3467 = vmatprep.subr.mxu0 0.0
    %3468 = vmatpush1.msra.mxu0 0.0
    %3469 = vmatprep.subr.mxu0 0.0
    %3470 = vmatpush1.msra.mxu0 0.0
    %3471 = vmatprep.subr.mxu0 0.0
    %3472 = vmatpush1.msra.mxu0 0.0
    %3473 = vmatprep.subr.mxu0 0.0
    %3474 = vmatpush1.msra.mxu0 0.0
    %3475 = vmatprep.subr.mxu0 0.0
    %3476 = vmatpush1.msra.mxu0 0.0
    %3477 = vmatprep.subr.mxu0 0.0
    %3478 = vmatpush1.msra.mxu0 0.0
    %3479 = vmatprep.subr.mxu0 0.0
    %3480 = vmatpush1.msra.mxu0 0.0
    %3481 = vmatprep.subr.mxu0 0.0
    %3482 = vmatpush1.msra.mxu0 0.0
    %3483 = vmatprep.subr.mxu0 0.0
    %3484 = vmatpush1.msra.mxu0 0.0
    %3485 = vmatprep.subr.mxu0 0.0
    %3486 = vmatpush1.msra.mxu0 0.0
    %3487 = vmatprep.subr.mxu0 0.0
    %3488 = vmatpush1.msra.mxu0 0.0
    %3489 = vmatprep.subr.mxu0 0.0
    %3490 = vmatpush1.msra.mxu0 0.0
    %3491 = vmatprep.subr.mxu0 0.0
    %3492 = vmatpush1.msra.mxu0 0.0
    %3493 = vmatprep.subr.mxu0 0.0
    %3494 = vmatpush1.msra.mxu0 0.0
    %3495 = vmatprep.subr.mxu0 0.0
    %3496 = vmatpush1.msra.mxu0 0.0
    %3497 = vmatprep.subr.mxu0 0.0
    %3498 = vmatpush1.msra.mxu0 0.0
    %3499 = vmatprep.subr.mxu0 0.0
    %3500 = vmatpush1.msra.mxu0 0.0
    %3501 = vmatprep.subr.mxu0 0.0
    %3502 = vmatpush1.msra.mxu0 0.0
    %3503 = vmatprep.mubr.f32.mxu0 0.0
    %3504 = vmatmul.mubr.f32.gmra.mrb[0].mxu0 %v3437
    %v3505 = vpop.f32.mrb[0].mxu0
    %v3506 = vadd.f32 0.0, %v3505
    %v3507 = vpop.f32.mrb[0].mxu0
    %3508 = vdwg.mxu0
    %v3509 = vsel %vm963, %v3506, -1e+30
    %v3510 = vsel %vm965, %v3509, -inf
    %3511 = vmax.xlane.f32.xlu0 %v3510
    %v3512 = vpop.xlane.xlu0 %3511
    %vm3513 = vcmp.ge.f32.partialorder %v3509, %v3512
    %v3514 = vsel %vm3513, %v970, 128.0
    %v3515 = vsel %vm965, %v3514, inf
    %3516 = vmin.xlane.f32.xlu0 %v3515
    %v3517 = vpop.xlane.xlu0 %3516
    %v3518 = vcvt.f32.s32.to.zero.pseudo %v3517
    %v3519 = vsub.f32 %v3509, %v3512
    %v3520 = vmul.f32 %v3519, 1.442695
    %v3521 = vpow.pop %v3520
    %v3522 = vsel %vm965, %v3521, 0.0
    %3523 = vadd.xlane.f32.xlu0 %v3522
    %v3524 = vpop.xlane.xlu0 %3523
    %v3525 = vrcp.pop %v3524
    %v3526 = vmin.f32 %v3525, 1.0
    %v3527 = vcvt.s32.f32 %v3518
    %v3529 = vrot.slane %v1831, 7
    %v3532 = vrot.slane %v2679, 6
    %v3535 = vrot.slane %v3527, 5
    %v3538 = vrot.slane %v983, 4
    %v3541 = vrot.slane %v1830, 3
    %v3544 = vrot.slane %v2678, 2
    %v3547 = vrot.slane %v3526, 1
    %v3549 = vsel %vm965, %v984, %v3529
    %vm3550 = vcmask 1041408
    %v3551 = vsel %vm3550, %v3549, %v3532
    %vm3552 = vcmask 1042432
    %v3553 = vsel %vm3552, %v3551, %v3535
    %vm3554 = vcmask 1043456
    %v3555 = vsel %vm3554, %v3553, %v3538
    %vm3556 = vcmask 1044480
    %v3557 = vsel %vm3556, %v3555, %v3541
    %vm3558 = vcmask 1045504
    %v3559 = vsel %vm3558, %v3557, %v3544
    %vm3560 = vcmask 1046528
    %v3561 = vsel %vm3560, %v3559, %v3547
    %3562 = vst [vmem:[#allocation6] sm:$0xff] %v3561
    // Predicated region
    $region34: #{tpu_custom_call.1} parent=1 // pred_check
      _
    $region35: #{tpu_custom_call.1} parent=1 // pred_check_branch
      %3564 = sbr.rel (0) target = $region37
    $region36: #{tpu_custom_call.1} parent=1 // pred_region
      %s3566 = ssub.s32 128, 128
      %3567 = vsyncadd [#allocation7], %s3566
      %s3569 = sshll.u32 [#allocation6], 4
      %s3570 = int_to_ptr.vmem [resolvable:$true] %s3569
      %3572 = dma.vmem_to_hbm [thread:$0]  %s3570, 128, %s9, [#allocation7]
    $region37: #{tpu_custom_call.1} parent=1 // pred_fallthru
      _
    // Predicated region
    $region38: #{tpu_custom_call.1} parent=1 // pred_check
      _
    $region39: #{tpu_custom_call.1} parent=1 // pred_check_branch
      %3574 = sbr.rel (0) target = $region41
    $region40: #{tpu_custom_call.1} parent=1 // pred_region
      %3575 = dma.done [#allocation7], 128
    $region41: #{tpu_custom_call.1} parent=1 // pred_fallthru
      _
    %3576 = vsyncpa [#allocation7], 1

</llo_original>
